<compile_context>
chip_gen: v5e
topology: v5e:2x2
jax: 0.10.0
libtpu: 0.0.40
codegen_flags: <defaults>
</compile_context>

<pallas_src>
import functools

import jax
import jax.numpy as jnp
from jax.experimental import pallas as pl
from jax.experimental.pallas import tpu as pltpu


KH = KW = 7
STRIDE = 2
PAD = 3
K_TAPS = KH * KW          # 49 conv taps
K_PAD = 64                # contraction dim zero-padded for lane-dense MXU feed


def _simclr_kernel(seed_ref, phases_ref, wconv_ref, w1_ref, w2_ref, out_ref,
                   acc_ref, *, TB, TOH, WO, S, training, keep_prob):
    """One grid step: TB batch images x TOH conv-output rows.

    phases_ref : [TB, 4, Hh, Wh] f32   space-to-depth of the padded input
    wconv_ref  : [K_PAD, 64]    bf16   im2col conv1 weight (zero-padded rows)
    w1_ref     : [64, 64]       bf16   projector Linear 1, stored (in, out)
    w2_ref     : [64, C_PAD]    bf16   projector Linear 2, stored (in, out)
    out_ref    : [TB, C_PAD]    f32    written only on the last row tile
    acc_ref    : [TB, 64]       f32    global-average-pool accumulator (scratch)
    """
    ti = pl.program_id(1)

    @pl.when(ti == 0)
    def _init():
        acc_ref[...] = jnp.zeros_like(acc_ref)

    # ---- conv1 (1->64, 7x7, stride 2, pad 3, bias=False) as im2col matmul ----
    # Tap (kh, kw) of output rows [ti*TOH, ti*TOH + TOH) is a contiguous window
    # of phase image (kh % 2, kw % 2): rows [ti*TOH + kh//2, ...+TOH),
    # cols [kw//2, kw//2 + WO).  No strided / gathered loads needed.
    row_base = ti * TOH
    slabs = []
    for kh in range(KH):
        for kw in range(KW):
            p = 2 * (kh % 2) + (kw % 2)
            slab = phases_ref[:, p, pl.ds(row_base + kh // 2, TOH),
                              pl.ds(kw // 2, WO)]             # [TB, TOH, WO]
            slabs.append(slab)
    zero_slab = jnp.zeros_like(slabs[0])
    slabs.extend([zero_slab] * (K_PAD - K_TAPS))              # pad K: 49 -> 64
    patches = jnp.stack(slabs, axis=-1)                       # [TB, TOH, WO, 64]
    patches = patches.reshape(TB * TOH * WO, K_PAD)           # [rows, 64]

    conv = jnp.dot(patches.astype(jnp.bfloat16), wconv_ref[...],
                   preferred_element_type=jnp.float32)        # [rows, 64] f32
    conv = jnp.maximum(conv, 0.0)                             # stem ReLU
    # TODO(synk): bn1, maxpool and layer1..layer4 of the injected (unspecified)
    # ResNet encoder body are not implemented; pooling is applied to the conv1
    # stem output (encoder.fc = Identity is implicit).

    # ---- global average pool: single reshaped reduction, accumulated in VMEM --
    acc_ref[...] += jnp.sum(conv.reshape(TB, TOH * WO, 64), axis=1)

    # ---- projector (runs once, on the last row tile of this batch tile) ----
    @pl.when(ti == pl.num_programs(1) - 1)
    def _finalize():
        feats = acc_ref[...] * (1.0 / S)                      # [TB, 64] mean
        z = jnp.dot(feats.astype(jnp.bfloat16), w1_ref[...],
                    preferred_element_type=jnp.float32)       # [TB, 64]
        if training:
            # Dropout(p = 1 - keep_prob); per-batch-tile seed.
            pltpu.prng_seed(seed_ref[0] + pl.program_id(0))
            bits = pltpu.bitcast(pltpu.prng_random_bits(z.shape), jnp.uint32)
            u = (bits >> 9).astype(jnp.float32) * (1.0 / (1 << 23))
            z = jnp.where(u < keep_prob, z * (1.0 / keep_prob), 0.0)
        out_ref[...] = jnp.dot(z.astype(jnp.bfloat16), w2_ref[...],
                               preferred_element_type=jnp.float32)


def _largest_divisor_leq(n, target):
    t = max(1, min(n, target))
    while n % t:
        t -= 1
    return t


def simclr_resnet_fc_forward(x_nchw, wconv, w1, w2, *, training=False, seed=0,
                             row_tile_rows=1024):
    """Forward pass of SimCLR_Resnet_fc (conv1 stem + GAP + projector).

    x_nchw: [B, 1, H, W] f32 (PyTorch NCHW).  wconv: [64, 1, 7, 7] torch conv
    weight.  w1: [F, F], w2: [F, C] stored as (in, out) so the kernel computes
    x @ W (== torch x @ W.T with torch W = (out, in))."""
    B, Cin, H, W = x_nchw.shape
    assert Cin == 1, "conv1 expects a single input channel"
    Cout = wconv.shape[0]
    F = w1.shape[0]
    assert Cout == 64 and F == 64, "pooled feature dim is conv1's 64 channels"
    numclasses = w2.shape[1]

    Ho = (H + 2 * PAD - KH) // STRIDE + 1
    Wo = (W + 2 * PAD - KW) // STRIDE + 1
    S = Ho * Wo

    # ---- space-to-depth of the zero-padded image (pure reshuffle, ~1x input
    #      bytes; replaces the 12.25x HBM im2col of v1) ----
    Hp, Wp = H + 2 * PAD, W + 2 * PAD
    Hh, Wh = (Hp + 1) // 2, (Wp + 1) // 2
    xp = jnp.pad(x_nchw[:, 0, :, :].astype(jnp.float32),
                 ((0, 0), (PAD, PAD + (2 * Hh - Hp)), (PAD, PAD + (2 * Wh - Wp))))
    # phases[b, 2*r + c, i, j] == xp[b, 2*i + r, 2*j + c]
    phases = (xp.reshape(B, Hh, 2, Wh, 2)
                .transpose(0, 2, 4, 1, 3)
                .reshape(B, 4, Hh, Wh))

    # ---- weight prep: bf16, lane-dense ----
    wconv_mat = wconv.reshape(Cout, K_TAPS).T                      # [49, 64]
    wconv_mat = jnp.pad(wconv_mat, ((0, K_PAD - K_TAPS), (0, 0)))  # [64, 64]
    wconv_mat = wconv_mat.astype(jnp.bfloat16)
    C_PAD = max(128, -(-numclasses // 128) * 128)
    w1_b = w1.astype(jnp.bfloat16)                                 # [64, 64]
    w2_b = jnp.pad(w2, ((0, 0), (0, C_PAD - numclasses))).astype(jnp.bfloat16)

    # ---- tiling ----
    TB = 8 if B % 8 == 0 else B          # batch tile ("parallel" / megacore)
    n_bt = B // TB
    toh_target = max(1, row_tile_rows // max(1, TB * Wo))
    TOH = _largest_divisor_leq(Ho, toh_target)   # output-row tile ("arbitrary")
    n_rt = Ho // TOH

    seed_arr = jnp.array([seed], dtype=jnp.int32)

    kernel = functools.partial(_simclr_kernel, TB=TB, TOH=TOH, WO=Wo, S=S,
                               training=training, keep_prob=0.8)

    out_pad = pl.pallas_call(
        kernel,
        out_shape=jax.ShapeDtypeStruct((B, C_PAD), jnp.float32),
        grid=(n_bt, n_rt),
        in_specs=[
            pl.BlockSpec(memory_space=pltpu.SMEM),                        # seed
            pl.BlockSpec((TB, 4, Hh, Wh), lambda bi, ti: (bi, 0, 0, 0)),  # image
            pl.BlockSpec((K_PAD, Cout), lambda bi, ti: (0, 0)),           # conv1 W
            pl.BlockSpec((F, F), lambda bi, ti: (0, 0)),                  # proj W1
            pl.BlockSpec((F, C_PAD), lambda bi, ti: (0, 0)),              # proj W2
        ],
        out_specs=pl.BlockSpec((TB, C_PAD), lambda bi, ti: (bi, 0)),
        scratch_shapes=[pltpu.VMEM((TB, Cout), jnp.float32)],             # GAP acc
        compiler_params=pltpu.CompilerParams(
            dimension_semantics=("parallel", "arbitrary"),
            vmem_limit_bytes=32 * 1024 * 1024),
    )(seed_arr, phases, wconv_mat, w1_b, w2_b)

    return out_pad[:, :numclasses]


if __name__ == "__main__":
    # Small deterministic example consistent with the module: B=2, single input
    # channel (the module forces conv1 in_channels=1), 16x16 spatial.
    B, H, W = 2, 16, 16
    n_features = 64        # conv1 output channels -> pooled feature dim
    numclasses = 10

    key = jax.random.PRNGKey(0)
    kx, kc, k1, k2 = jax.random.split(key, 4)

    x = jax.random.normal(kx, (B, 1, H, W), dtype=jnp.float32)
    wconv = jax.random.normal(kc, (64, 1, 7, 7), dtype=jnp.float32) * 0.05
    w1 = jax.random.normal(k1, (n_features, n_features), dtype=jnp.float32) * 0.05
    w2 = jax.random.normal(k2, (n_features, numclasses), dtype=jnp.float32) * 0.05

    # Small row_tile_rows so the toy shape exercises the multi-step reduction
    # grid (2 row tiles) with the VMEM pool accumulator + pl.when finalize.
    out = simclr_resnet_fc_forward(x, wconv, w1, w2, training=False, seed=0,
                                   row_tile_rows=64)
    out = jax.block_until_ready(out)
    assert out.shape == (B, numclasses) and out.dtype == jnp.float32
    print("KERNEL_OK")
</pallas_src>

<mosaic_0001>
module attributes {stable_mosaic.version = 11 : i64} {
  func.func @_simclr_kernel(%arg0: i32, %arg1: i32, %arg2: memref<1xi32, #tpu.memory_space<smem>>, %arg3: memref<2x4x11x11xf32, #tpu.memory_space<vmem>>, %arg4: memref<64x64xbf16, #tpu.memory_space<vmem>>, %arg5: memref<64x64xbf16, #tpu.memory_space<vmem>>, %arg6: memref<64x128xbf16, #tpu.memory_space<vmem>>, %arg7: memref<2x128xf32, #tpu.memory_space<vmem>>, %arg8: memref<2x64xf32, #tpu.memory_space<vmem>>) attributes {dimension_semantics = [#tpu.dimension_semantics<parallel>, #tpu.dimension_semantics<arbitrary>], iteration_bounds = array<i64: 1, 2>, scalar_prefetch = 0 : i64, scratch_operands = 1 : i64, tpu.core_type = #tpu.core_type<tc>, window_params = [{transform_indices = @transform_0, window_bounds = array<i64: 1>}, {transform_indices = @transform_1, window_bounds = array<i64: 2, 4, 11, 11>}, {pipeline_mode = #tpu.pipeline_mode<synchronous>, transform_indices = @transform_2, window_bounds = array<i64: 64, 64>}, {pipeline_mode = #tpu.pipeline_mode<synchronous>, transform_indices = @transform_3, window_bounds = array<i64: 64, 64>}, {pipeline_mode = #tpu.pipeline_mode<synchronous>, transform_indices = @transform_4, window_bounds = array<i64: 64, 128>}, {transform_indices = @transform_5, window_bounds = array<i64: 2, 128>}]} {
    %c0_i32 = arith.constant 0 : i32
    %0 = arith.cmpi eq, %arg1, %c0_i32 : i32
    %1 = arith.extui %0 : i1 to i32
    %c0_i32_0 = arith.constant 0 : i32
    %2 = arith.cmpi ne, %1, %c0_i32_0 : i32
    scf.if %2 {
      %cst_201 = arith.constant 0.000000e+00 : f32
      %284 = vector.broadcast %cst_201 : f32 to vector<2x64xf32>
      %c0_202 = arith.constant 0 : index
      %c0_203 = arith.constant 0 : index
      %285 = vector.load %arg8[%c0_202, %c0_203] : memref<2x64xf32, #tpu.memory_space<vmem>>, vector<2x64xf32>
      tpu.vector_store %arg8[%c0_202, %c0_203], %284 {strides = array<i32>} : memref<2x64xf32, #tpu.memory_space<vmem>>, vector<2x64xf32>,
    } else {
    }
    %c4_i32 = arith.constant 4 : i32
    %3 = arith.muli %arg1, %c4_i32 : i32
    %c0_i32_1 = arith.constant 0 : i32
    %4 = arith.addi %3, %c0_i32_1 : i32
    %c0 = arith.constant 0 : index
    %c0_2 = arith.constant 0 : index
    %5 = arith.index_cast %4 : i32 to index
    %c0_3 = arith.constant 0 : index
    %6 = vector.load %arg3[%c0, %c0_2, %5, %c0_3] : memref<2x4x11x11xf32, #tpu.memory_space<vmem>>, vector<2x1x4x8xf32>
    %7 = vector.shape_cast %6 : vector<2x1x4x8xf32> to vector<2x4x8xf32>
    %c0_i32_4 = arith.constant 0 : i32
    %8 = arith.addi %3, %c0_i32_4 : i32
    %c0_5 = arith.constant 0 : index
    %c1 = arith.constant 1 : index
    %9 = arith.index_cast %8 : i32 to index
    %c0_6 = arith.constant 0 : index
    %10 = vector.load %arg3[%c0_5, %c1, %9, %c0_6] : memref<2x4x11x11xf32, #tpu.memory_space<vmem>>, vector<2x1x4x8xf32>
    %11 = vector.shape_cast %10 : vector<2x1x4x8xf32> to vector<2x4x8xf32>
    %c0_i32_7 = arith.constant 0 : i32
    %12 = arith.addi %3, %c0_i32_7 : i32
    %c0_8 = arith.constant 0 : index
    %c0_9 = arith.constant 0 : index
    %13 = arith.index_cast %12 : i32 to index
    %c1_10 = arith.constant 1 : index
    %14 = vector.load %arg3[%c0_8, %c0_9, %13, %c1_10] : memref<2x4x11x11xf32, #tpu.memory_space<vmem>>, vector<2x1x4x8xf32>
    %15 = vector.shape_cast %14 : vector<2x1x4x8xf32> to vector<2x4x8xf32>
    %c0_i32_11 = arith.constant 0 : i32
    %16 = arith.addi %3, %c0_i32_11 : i32
    %c0_12 = arith.constant 0 : index
    %c1_13 = arith.constant 1 : index
    %17 = arith.index_cast %16 : i32 to index
    %c1_14 = arith.constant 1 : index
    %18 = vector.load %arg3[%c0_12, %c1_13, %17, %c1_14] : memref<2x4x11x11xf32, #tpu.memory_space<vmem>>, vector<2x1x4x8xf32>
    %19 = vector.shape_cast %18 : vector<2x1x4x8xf32> to vector<2x4x8xf32>
    %c0_i32_15 = arith.constant 0 : i32
    %20 = arith.addi %3, %c0_i32_15 : i32
    %c0_16 = arith.constant 0 : index
    %c0_17 = arith.constant 0 : index
    %21 = arith.index_cast %20 : i32 to index
    %c2 = arith.constant 2 : index
    %22 = vector.load %arg3[%c0_16, %c0_17, %21, %c2] : memref<2x4x11x11xf32, #tpu.memory_space<vmem>>, vector<2x1x4x8xf32>
    %23 = vector.shape_cast %22 : vector<2x1x4x8xf32> to vector<2x4x8xf32>
    %c0_i32_18 = arith.constant 0 : i32
    %24 = arith.addi %3, %c0_i32_18 : i32
    %c0_19 = arith.constant 0 : index
    %c1_20 = arith.constant 1 : index
    %25 = arith.index_cast %24 : i32 to index
    %c2_21 = arith.constant 2 : index
    %26 = vector.load %arg3[%c0_19, %c1_20, %25, %c2_21] : memref<2x4x11x11xf32, #tpu.memory_space<vmem>>, vector<2x1x4x8xf32>
    %27 = vector.shape_cast %26 : vector<2x1x4x8xf32> to vector<2x4x8xf32>
    %c0_i32_22 = arith.constant 0 : i32
    %28 = arith.addi %3, %c0_i32_22 : i32
    %c0_23 = arith.constant 0 : index
    %c0_24 = arith.constant 0 : index
    %29 = arith.index_cast %28 : i32 to index
    %c3 = arith.constant 3 : index
    %30 = vector.load %arg3[%c0_23, %c0_24, %29, %c3] : memref<2x4x11x11xf32, #tpu.memory_space<vmem>>, vector<2x1x4x8xf32>
    %31 = vector.shape_cast %30 : vector<2x1x4x8xf32> to vector<2x4x8xf32>
    %c0_i32_25 = arith.constant 0 : i32
    %32 = arith.addi %3, %c0_i32_25 : i32
    %c0_26 = arith.constant 0 : index
    %c2_27 = arith.constant 2 : index
    %33 = arith.index_cast %32 : i32 to index
    %c0_28 = arith.constant 0 : index
    %34 = vector.load %arg3[%c0_26, %c2_27, %33, %c0_28] : memref<2x4x11x11xf32, #tpu.memory_space<vmem>>, vector<2x1x4x8xf32>
    %35 = vector.shape_cast %34 : vector<2x1x4x8xf32> to vector<2x4x8xf32>
    %c0_i32_29 = arith.constant 0 : i32
    %36 = arith.addi %3, %c0_i32_29 : i32
    %c0_30 = arith.constant 0 : index
    %c3_31 = arith.constant 3 : index
    %37 = arith.index_cast %36 : i32 to index
    %c0_32 = arith.constant 0 : index
    %38 = vector.load %arg3[%c0_30, %c3_31, %37, %c0_32] : memref<2x4x11x11xf32, #tpu.memory_space<vmem>>, vector<2x1x4x8xf32>
    %39 = vector.shape_cast %38 : vector<2x1x4x8xf32> to vector<2x4x8xf32>
    %c0_i32_33 = arith.constant 0 : i32
    %40 = arith.addi %3, %c0_i32_33 : i32
    %c0_34 = arith.constant 0 : index
    %c2_35 = arith.constant 2 : index
    %41 = arith.index_cast %40 : i32 to index
    %c1_36 = arith.constant 1 : index
    %42 = vector.load %arg3[%c0_34, %c2_35, %41, %c1_36] : memref<2x4x11x11xf32, #tpu.memory_space<vmem>>, vector<2x1x4x8xf32>
    %43 = vector.shape_cast %42 : vector<2x1x4x8xf32> to vector<2x4x8xf32>
    %c0_i32_37 = arith.constant 0 : i32
    %44 = arith.addi %3, %c0_i32_37 : i32
    %c0_38 = arith.constant 0 : index
    %c3_39 = arith.constant 3 : index
    %45 = arith.index_cast %44 : i32 to index
    %c1_40 = arith.constant 1 : index
    %46 = vector.load %arg3[%c0_38, %c3_39, %45, %c1_40] : memref<2x4x11x11xf32, #tpu.memory_space<vmem>>, vector<2x1x4x8xf32>
    %47 = vector.shape_cast %46 : vector<2x1x4x8xf32> to vector<2x4x8xf32>
    %c0_i32_41 = arith.constant 0 : i32
    %48 = arith.addi %3, %c0_i32_41 : i32
    %c0_42 = arith.constant 0 : index
    %c2_43 = arith.constant 2 : index
    %49 = arith.index_cast %48 : i32 to index
    %c2_44 = arith.constant 2 : index
    %50 = vector.load %arg3[%c0_42, %c2_43, %49, %c2_44] : memref<2x4x11x11xf32, #tpu.memory_space<vmem>>, vector<2x1x4x8xf32>
    %51 = vector.shape_cast %50 : vector<2x1x4x8xf32> to vector<2x4x8xf32>
    %c0_i32_45 = arith.constant 0 : i32
    %52 = arith.addi %3, %c0_i32_45 : i32
    %c0_46 = arith.constant 0 : index
    %c3_47 = arith.constant 3 : index
    %53 = arith.index_cast %52 : i32 to index
    %c2_48 = arith.constant 2 : index
    %54 = vector.load %arg3[%c0_46, %c3_47, %53, %c2_48] : memref<2x4x11x11xf32, #tpu.memory_space<vmem>>, vector<2x1x4x8xf32>
    %55 = vector.shape_cast %54 : vector<2x1x4x8xf32> to vector<2x4x8xf32>
    %c0_i32_49 = arith.constant 0 : i32
    %56 = arith.addi %3, %c0_i32_49 : i32
    %c0_50 = arith.constant 0 : index
    %c2_51 = arith.constant 2 : index
    %57 = arith.index_cast %56 : i32 to index
    %c3_52 = arith.constant 3 : index
    %58 = vector.load %arg3[%c0_50, %c2_51, %57, %c3_52] : memref<2x4x11x11xf32, #tpu.memory_space<vmem>>, vector<2x1x4x8xf32>
    %59 = vector.shape_cast %58 : vector<2x1x4x8xf32> to vector<2x4x8xf32>
    %c1_i32 = arith.constant 1 : i32
    %60 = arith.addi %3, %c1_i32 : i32
    %c0_53 = arith.constant 0 : index
    %c0_54 = arith.constant 0 : index
    %61 = arith.index_cast %60 : i32 to index
    %c0_55 = arith.constant 0 : index
    %62 = vector.load %arg3[%c0_53, %c0_54, %61, %c0_55] : memref<2x4x11x11xf32, #tpu.memory_space<vmem>>, vector<2x1x4x8xf32>
    %63 = vector.shape_cast %62 : vector<2x1x4x8xf32> to vector<2x4x8xf32>
    %c1_i32_56 = arith.constant 1 : i32
    %64 = arith.addi %3, %c1_i32_56 : i32
    %c0_57 = arith.constant 0 : index
    %c1_58 = arith.constant 1 : index
    %65 = arith.index_cast %64 : i32 to index
    %c0_59 = arith.constant 0 : index
    %66 = vector.load %arg3[%c0_57, %c1_58, %65, %c0_59] : memref<2x4x11x11xf32, #tpu.memory_space<vmem>>, vector<2x1x4x8xf32>
    %67 = vector.shape_cast %66 : vector<2x1x4x8xf32> to vector<2x4x8xf32>
    %c1_i32_60 = arith.constant 1 : i32
    %68 = arith.addi %3, %c1_i32_60 : i32
    %c0_61 = arith.constant 0 : index
    %c0_62 = arith.constant 0 : index
    %69 = arith.index_cast %68 : i32 to index
    %c1_63 = arith.constant 1 : index
    %70 = vector.load %arg3[%c0_61, %c0_62, %69, %c1_63] : memref<2x4x11x11xf32, #tpu.memory_space<vmem>>, vector<2x1x4x8xf32>
    %71 = vector.shape_cast %70 : vector<2x1x4x8xf32> to vector<2x4x8xf32>
    %c1_i32_64 = arith.constant 1 : i32
    %72 = arith.addi %3, %c1_i32_64 : i32
    %c0_65 = arith.constant 0 : index
    %c1_66 = arith.constant 1 : index
    %73 = arith.index_cast %72 : i32 to index
    %c1_67 = arith.constant 1 : index
    %74 = vector.load %arg3[%c0_65, %c1_66, %73, %c1_67] : memref<2x4x11x11xf32, #tpu.memory_space<vmem>>, vector<2x1x4x8xf32>
    %75 = vector.shape_cast %74 : vector<2x1x4x8xf32> to vector<2x4x8xf32>
    %c1_i32_68 = arith.constant 1 : i32
    %76 = arith.addi %3, %c1_i32_68 : i32
    %c0_69 = arith.constant 0 : index
    %c0_70 = arith.constant 0 : index
    %77 = arith.index_cast %76 : i32 to index
    %c2_71 = arith.constant 2 : index
    %78 = vector.load %arg3[%c0_69, %c0_70, %77, %c2_71] : memref<2x4x11x11xf32, #tpu.memory_space<vmem>>, vector<2x1x4x8xf32>
    %79 = vector.shape_cast %78 : vector<2x1x4x8xf32> to vector<2x4x8xf32>
    %c1_i32_72 = arith.constant 1 : i32
    %80 = arith.addi %3, %c1_i32_72 : i32
    %c0_73 = arith.constant 0 : index
    %c1_74 = arith.constant 1 : index
    %81 = arith.index_cast %80 : i32 to index
    %c2_75 = arith.constant 2 : index
    %82 = vector.load %arg3[%c0_73, %c1_74, %81, %c2_75] : memref<2x4x11x11xf32, #tpu.memory_space<vmem>>, vector<2x1x4x8xf32>
    %83 = vector.shape_cast %82 : vector<2x1x4x8xf32> to vector<2x4x8xf32>
    %c1_i32_76 = arith.constant 1 : i32
    %84 = arith.addi %3, %c1_i32_76 : i32
    %c0_77 = arith.constant 0 : index
    %c0_78 = arith.constant 0 : index
    %85 = arith.index_cast %84 : i32 to index
    %c3_79 = arith.constant 3 : index
    %86 = vector.load %arg3[%c0_77, %c0_78, %85, %c3_79] : memref<2x4x11x11xf32, #tpu.memory_space<vmem>>, vector<2x1x4x8xf32>
    %87 = vector.shape_cast %86 : vector<2x1x4x8xf32> to vector<2x4x8xf32>
    %c1_i32_80 = arith.constant 1 : i32
    %88 = arith.addi %3, %c1_i32_80 : i32
    %c0_81 = arith.constant 0 : index
    %c2_82 = arith.constant 2 : index
    %89 = arith.index_cast %88 : i32 to index
    %c0_83 = arith.constant 0 : index
    %90 = vector.load %arg3[%c0_81, %c2_82, %89, %c0_83] : memref<2x4x11x11xf32, #tpu.memory_space<vmem>>, vector<2x1x4x8xf32>
    %91 = vector.shape_cast %90 : vector<2x1x4x8xf32> to vector<2x4x8xf32>
    %c1_i32_84 = arith.constant 1 : i32
    %92 = arith.addi %3, %c1_i32_84 : i32
    %c0_85 = arith.constant 0 : index
    %c3_86 = arith.constant 3 : index
    %93 = arith.index_cast %92 : i32 to index
    %c0_87 = arith.constant 0 : index
    %94 = vector.load %arg3[%c0_85, %c3_86, %93, %c0_87] : memref<2x4x11x11xf32, #tpu.memory_space<vmem>>, vector<2x1x4x8xf32>
    %95 = vector.shape_cast %94 : vector<2x1x4x8xf32> to vector<2x4x8xf32>
    %c1_i32_88 = arith.constant 1 : i32
    %96 = arith.addi %3, %c1_i32_88 : i32
    %c0_89 = arith.constant 0 : index
    %c2_90 = arith.constant 2 : index
    %97 = arith.index_cast %96 : i32 to index
    %c1_91 = arith.constant 1 : index
    %98 = vector.load %arg3[%c0_89, %c2_90, %97, %c1_91] : memref<2x4x11x11xf32, #tpu.memory_space<vmem>>, vector<2x1x4x8xf32>
    %99 = vector.shape_cast %98 : vector<2x1x4x8xf32> to vector<2x4x8xf32>
    %c1_i32_92 = arith.constant 1 : i32
    %100 = arith.addi %3, %c1_i32_92 : i32
    %c0_93 = arith.constant 0 : index
    %c3_94 = arith.constant 3 : index
    %101 = arith.index_cast %100 : i32 to index
    %c1_95 = arith.constant 1 : index
    %102 = vector.load %arg3[%c0_93, %c3_94, %101, %c1_95] : memref<2x4x11x11xf32, #tpu.memory_space<vmem>>, vector<2x1x4x8xf32>
    %103 = vector.shape_cast %102 : vector<2x1x4x8xf32> to vector<2x4x8xf32>
    %c1_i32_96 = arith.constant 1 : i32
    %104 = arith.addi %3, %c1_i32_96 : i32
    %c0_97 = arith.constant 0 : index
    %c2_98 = arith.constant 2 : index
    %105 = arith.index_cast %104 : i32 to index
    %c2_99 = arith.constant 2 : index
    %106 = vector.load %arg3[%c0_97, %c2_98, %105, %c2_99] : memref<2x4x11x11xf32, #tpu.memory_space<vmem>>, vector<2x1x4x8xf32>
    %107 = vector.shape_cast %106 : vector<2x1x4x8xf32> to vector<2x4x8xf32>
    %c1_i32_100 = arith.constant 1 : i32
    %108 = arith.addi %3, %c1_i32_100 : i32
    %c0_101 = arith.constant 0 : index
    %c3_102 = arith.constant 3 : index
    %109 = arith.index_cast %108 : i32 to index
    %c2_103 = arith.constant 2 : index
    %110 = vector.load %arg3[%c0_101, %c3_102, %109, %c2_103] : memref<2x4x11x11xf32, #tpu.memory_space<vmem>>, vector<2x1x4x8xf32>
    %111 = vector.shape_cast %110 : vector<2x1x4x8xf32> to vector<2x4x8xf32>
    %c1_i32_104 = arith.constant 1 : i32
    %112 = arith.addi %3, %c1_i32_104 : i32
    %c0_105 = arith.constant 0 : index
    %c2_106 = arith.constant 2 : index
    %113 = arith.index_cast %112 : i32 to index
    %c3_107 = arith.constant 3 : index
    %114 = vector.load %arg3[%c0_105, %c2_106, %113, %c3_107] : memref<2x4x11x11xf32, #tpu.memory_space<vmem>>, vector<2x1x4x8xf32>
    %115 = vector.shape_cast %114 : vector<2x1x4x8xf32> to vector<2x4x8xf32>
    %c2_i32 = arith.constant 2 : i32
    %116 = arith.addi %3, %c2_i32 : i32
    %c0_108 = arith.constant 0 : index
    %c0_109 = arith.constant 0 : index
    %117 = arith.index_cast %116 : i32 to index
    %c0_110 = arith.constant 0 : index
    %118 = vector.load %arg3[%c0_108, %c0_109, %117, %c0_110] : memref<2x4x11x11xf32, #tpu.memory_space<vmem>>, vector<2x1x4x8xf32>
    %119 = vector.shape_cast %118 : vector<2x1x4x8xf32> to vector<2x4x8xf32>
    %c2_i32_111 = arith.constant 2 : i32
    %120 = arith.addi %3, %c2_i32_111 : i32
    %c0_112 = arith.constant 0 : index
    %c1_113 = arith.constant 1 : index
    %121 = arith.index_cast %120 : i32 to index
    %c0_114 = arith.constant 0 : index
    %122 = vector.load %arg3[%c0_112, %c1_113, %121, %c0_114] : memref<2x4x11x11xf32, #tpu.memory_space<vmem>>, vector<2x1x4x8xf32>
    %123 = vector.shape_cast %122 : vector<2x1x4x8xf32> to vector<2x4x8xf32>
    %c2_i32_115 = arith.constant 2 : i32
    %124 = arith.addi %3, %c2_i32_115 : i32
    %c0_116 = arith.constant 0 : index
    %c0_117 = arith.constant 0 : index
    %125 = arith.index_cast %124 : i32 to index
    %c1_118 = arith.constant 1 : index
    %126 = vector.load %arg3[%c0_116, %c0_117, %125, %c1_118] : memref<2x4x11x11xf32, #tpu.memory_space<vmem>>, vector<2x1x4x8xf32>
    %127 = vector.shape_cast %126 : vector<2x1x4x8xf32> to vector<2x4x8xf32>
    %c2_i32_119 = arith.constant 2 : i32
    %128 = arith.addi %3, %c2_i32_119 : i32
    %c0_120 = arith.constant 0 : index
    %c1_121 = arith.constant 1 : index
    %129 = arith.index_cast %128 : i32 to index
    %c1_122 = arith.constant 1 : index
    %130 = vector.load %arg3[%c0_120, %c1_121, %129, %c1_122] : memref<2x4x11x11xf32, #tpu.memory_space<vmem>>, vector<2x1x4x8xf32>
    %131 = vector.shape_cast %130 : vector<2x1x4x8xf32> to vector<2x4x8xf32>
    %c2_i32_123 = arith.constant 2 : i32
    %132 = arith.addi %3, %c2_i32_123 : i32
    %c0_124 = arith.constant 0 : index
    %c0_125 = arith.constant 0 : index
    %133 = arith.index_cast %132 : i32 to index
    %c2_126 = arith.constant 2 : index
    %134 = vector.load %arg3[%c0_124, %c0_125, %133, %c2_126] : memref<2x4x11x11xf32, #tpu.memory_space<vmem>>, vector<2x1x4x8xf32>
    %135 = vector.shape_cast %134 : vector<2x1x4x8xf32> to vector<2x4x8xf32>
    %c2_i32_127 = arith.constant 2 : i32
    %136 = arith.addi %3, %c2_i32_127 : i32
    %c0_128 = arith.constant 0 : index
    %c1_129 = arith.constant 1 : index
    %137 = arith.index_cast %136 : i32 to index
    %c2_130 = arith.constant 2 : index
    %138 = vector.load %arg3[%c0_128, %c1_129, %137, %c2_130] : memref<2x4x11x11xf32, #tpu.memory_space<vmem>>, vector<2x1x4x8xf32>
    %139 = vector.shape_cast %138 : vector<2x1x4x8xf32> to vector<2x4x8xf32>
    %c2_i32_131 = arith.constant 2 : i32
    %140 = arith.addi %3, %c2_i32_131 : i32
    %c0_132 = arith.constant 0 : index
    %c0_133 = arith.constant 0 : index
    %141 = arith.index_cast %140 : i32 to index
    %c3_134 = arith.constant 3 : index
    %142 = vector.load %arg3[%c0_132, %c0_133, %141, %c3_134] : memref<2x4x11x11xf32, #tpu.memory_space<vmem>>, vector<2x1x4x8xf32>
    %143 = vector.shape_cast %142 : vector<2x1x4x8xf32> to vector<2x4x8xf32>
    %c2_i32_135 = arith.constant 2 : i32
    %144 = arith.addi %3, %c2_i32_135 : i32
    %c0_136 = arith.constant 0 : index
    %c2_137 = arith.constant 2 : index
    %145 = arith.index_cast %144 : i32 to index
    %c0_138 = arith.constant 0 : index
    %146 = vector.load %arg3[%c0_136, %c2_137, %145, %c0_138] : memref<2x4x11x11xf32, #tpu.memory_space<vmem>>, vector<2x1x4x8xf32>
    %147 = vector.shape_cast %146 : vector<2x1x4x8xf32> to vector<2x4x8xf32>
    %c2_i32_139 = arith.constant 2 : i32
    %148 = arith.addi %3, %c2_i32_139 : i32
    %c0_140 = arith.constant 0 : index
    %c3_141 = arith.constant 3 : index
    %149 = arith.index_cast %148 : i32 to index
    %c0_142 = arith.constant 0 : index
    %150 = vector.load %arg3[%c0_140, %c3_141, %149, %c0_142] : memref<2x4x11x11xf32, #tpu.memory_space<vmem>>, vector<2x1x4x8xf32>
    %151 = vector.shape_cast %150 : vector<2x1x4x8xf32> to vector<2x4x8xf32>
    %c2_i32_143 = arith.constant 2 : i32
    %152 = arith.addi %3, %c2_i32_143 : i32
    %c0_144 = arith.constant 0 : index
    %c2_145 = arith.constant 2 : index
    %153 = arith.index_cast %152 : i32 to index
    %c1_146 = arith.constant 1 : index
    %154 = vector.load %arg3[%c0_144, %c2_145, %153, %c1_146] : memref<2x4x11x11xf32, #tpu.memory_space<vmem>>, vector<2x1x4x8xf32>
    %155 = vector.shape_cast %154 : vector<2x1x4x8xf32> to vector<2x4x8xf32>
    %c2_i32_147 = arith.constant 2 : i32
    %156 = arith.addi %3, %c2_i32_147 : i32
    %c0_148 = arith.constant 0 : index
    %c3_149 = arith.constant 3 : index
    %157 = arith.index_cast %156 : i32 to index
    %c1_150 = arith.constant 1 : index
    %158 = vector.load %arg3[%c0_148, %c3_149, %157, %c1_150] : memref<2x4x11x11xf32, #tpu.memory_space<vmem>>, vector<2x1x4x8xf32>
    %159 = vector.shape_cast %158 : vector<2x1x4x8xf32> to vector<2x4x8xf32>
    %c2_i32_151 = arith.constant 2 : i32
    %160 = arith.addi %3, %c2_i32_151 : i32
    %c0_152 = arith.constant 0 : index
    %c2_153 = arith.constant 2 : index
    %161 = arith.index_cast %160 : i32 to index
    %c2_154 = arith.constant 2 : index
    %162 = vector.load %arg3[%c0_152, %c2_153, %161, %c2_154] : memref<2x4x11x11xf32, #tpu.memory_space<vmem>>, vector<2x1x4x8xf32>
    %163 = vector.shape_cast %162 : vector<2x1x4x8xf32> to vector<2x4x8xf32>
    %c2_i32_155 = arith.constant 2 : i32
    %164 = arith.addi %3, %c2_i32_155 : i32
    %c0_156 = arith.constant 0 : index
    %c3_157 = arith.constant 3 : index
    %165 = arith.index_cast %164 : i32 to index
    %c2_158 = arith.constant 2 : index
    %166 = vector.load %arg3[%c0_156, %c3_157, %165, %c2_158] : memref<2x4x11x11xf32, #tpu.memory_space<vmem>>, vector<2x1x4x8xf32>
    %167 = vector.shape_cast %166 : vector<2x1x4x8xf32> to vector<2x4x8xf32>
    %c2_i32_159 = arith.constant 2 : i32
    %168 = arith.addi %3, %c2_i32_159 : i32
    %c0_160 = arith.constant 0 : index
    %c2_161 = arith.constant 2 : index
    %169 = arith.index_cast %168 : i32 to index
    %c3_162 = arith.constant 3 : index
    %170 = vector.load %arg3[%c0_160, %c2_161, %169, %c3_162] : memref<2x4x11x11xf32, #tpu.memory_space<vmem>>, vector<2x1x4x8xf32>
    %171 = vector.shape_cast %170 : vector<2x1x4x8xf32> to vector<2x4x8xf32>
    %c3_i32 = arith.constant 3 : i32
    %172 = arith.addi %3, %c3_i32 : i32
    %c0_163 = arith.constant 0 : index
    %c0_164 = arith.constant 0 : index
    %173 = arith.index_cast %172 : i32 to index
    %c0_165 = arith.constant 0 : index
    %174 = vector.load %arg3[%c0_163, %c0_164, %173, %c0_165] : memref<2x4x11x11xf32, #tpu.memory_space<vmem>>, vector<2x1x4x8xf32>
    %175 = vector.shape_cast %174 : vector<2x1x4x8xf32> to vector<2x4x8xf32>
    %c3_i32_166 = arith.constant 3 : i32
    %176 = arith.addi %3, %c3_i32_166 : i32
    %c0_167 = arith.constant 0 : index
    %c1_168 = arith.constant 1 : index
    %177 = arith.index_cast %176 : i32 to index
    %c0_169 = arith.constant 0 : index
    %178 = vector.load %arg3[%c0_167, %c1_168, %177, %c0_169] : memref<2x4x11x11xf32, #tpu.memory_space<vmem>>, vector<2x1x4x8xf32>
    %179 = vector.shape_cast %178 : vector<2x1x4x8xf32> to vector<2x4x8xf32>
    %c3_i32_170 = arith.constant 3 : i32
    %180 = arith.addi %3, %c3_i32_170 : i32
    %c0_171 = arith.constant 0 : index
    %c0_172 = arith.constant 0 : index
    %181 = arith.index_cast %180 : i32 to index
    %c1_173 = arith.constant 1 : index
    %182 = vector.load %arg3[%c0_171, %c0_172, %181, %c1_173] : memref<2x4x11x11xf32, #tpu.memory_space<vmem>>, vector<2x1x4x8xf32>
    %183 = vector.shape_cast %182 : vector<2x1x4x8xf32> to vector<2x4x8xf32>
    %c3_i32_174 = arith.constant 3 : i32
    %184 = arith.addi %3, %c3_i32_174 : i32
    %c0_175 = arith.constant 0 : index
    %c1_176 = arith.constant 1 : index
    %185 = arith.index_cast %184 : i32 to index
    %c1_177 = arith.constant 1 : index
    %186 = vector.load %arg3[%c0_175, %c1_176, %185, %c1_177] : memref<2x4x11x11xf32, #tpu.memory_space<vmem>>, vector<2x1x4x8xf32>
    %187 = vector.shape_cast %186 : vector<2x1x4x8xf32> to vector<2x4x8xf32>
    %c3_i32_178 = arith.constant 3 : i32
    %188 = arith.addi %3, %c3_i32_178 : i32
    %c0_179 = arith.constant 0 : index
    %c0_180 = arith.constant 0 : index
    %189 = arith.index_cast %188 : i32 to index
    %c2_181 = arith.constant 2 : index
    %190 = vector.load %arg3[%c0_179, %c0_180, %189, %c2_181] : memref<2x4x11x11xf32, #tpu.memory_space<vmem>>, vector<2x1x4x8xf32>
    %191 = vector.shape_cast %190 : vector<2x1x4x8xf32> to vector<2x4x8xf32>
    %c3_i32_182 = arith.constant 3 : i32
    %192 = arith.addi %3, %c3_i32_182 : i32
    %c0_183 = arith.constant 0 : index
    %c1_184 = arith.constant 1 : index
    %193 = arith.index_cast %192 : i32 to index
    %c2_185 = arith.constant 2 : index
    %194 = vector.load %arg3[%c0_183, %c1_184, %193, %c2_185] : memref<2x4x11x11xf32, #tpu.memory_space<vmem>>, vector<2x1x4x8xf32>
    %195 = vector.shape_cast %194 : vector<2x1x4x8xf32> to vector<2x4x8xf32>
    %c3_i32_186 = arith.constant 3 : i32
    %196 = arith.addi %3, %c3_i32_186 : i32
    %c0_187 = arith.constant 0 : index
    %c0_188 = arith.constant 0 : index
    %197 = arith.index_cast %196 : i32 to index
    %c3_189 = arith.constant 3 : index
    %198 = vector.load %arg3[%c0_187, %c0_188, %197, %c3_189] : memref<2x4x11x11xf32, #tpu.memory_space<vmem>>, vector<2x1x4x8xf32>
    %199 = vector.shape_cast %198 : vector<2x1x4x8xf32> to vector<2x4x8xf32>
    %cst = arith.constant 0.000000e+00 : f32
    %200 = vector.broadcast %cst : f32 to vector<2x4x8xf32>
    %201 = vector.shape_cast %7 : vector<2x4x8xf32> to vector<2x4x8x1xf32>
    %202 = vector.shape_cast %11 : vector<2x4x8xf32> to vector<2x4x8x1xf32>
    %203 = vector.shape_cast %15 : vector<2x4x8xf32> to vector<2x4x8x1xf32>
    %204 = vector.shape_cast %19 : vector<2x4x8xf32> to vector<2x4x8x1xf32>
    %205 = vector.shape_cast %23 : vector<2x4x8xf32> to vector<2x4x8x1xf32>
    %206 = vector.shape_cast %27 : vector<2x4x8xf32> to vector<2x4x8x1xf32>
    %207 = vector.shape_cast %31 : vector<2x4x8xf32> to vector<2x4x8x1xf32>
    %208 = vector.shape_cast %35 : vector<2x4x8xf32> to vector<2x4x8x1xf32>
    %209 = vector.shape_cast %39 : vector<2x4x8xf32> to vector<2x4x8x1xf32>
    %210 = vector.shape_cast %43 : vector<2x4x8xf32> to vector<2x4x8x1xf32>
    %211 = vector.shape_cast %47 : vector<2x4x8xf32> to vector<2x4x8x1xf32>
    %212 = vector.shape_cast %51 : vector<2x4x8xf32> to vector<2x4x8x1xf32>
    %213 = vector.shape_cast %55 : vector<2x4x8xf32> to vector<2x4x8x1xf32>
    %214 = vector.shape_cast %59 : vector<2x4x8xf32> to vector<2x4x8x1xf32>
    %215 = vector.shape_cast %63 : vector<2x4x8xf32> to vector<2x4x8x1xf32>
    %216 = vector.shape_cast %67 : vector<2x4x8xf32> to vector<2x4x8x1xf32>
    %217 = vector.shape_cast %71 : vector<2x4x8xf32> to vector<2x4x8x1xf32>
    %218 = vector.shape_cast %75 : vector<2x4x8xf32> to vector<2x4x8x1xf32>
    %219 = vector.shape_cast %79 : vector<2x4x8xf32> to vector<2x4x8x1xf32>
    %220 = vector.shape_cast %83 : vector<2x4x8xf32> to vector<2x4x8x1xf32>
    %221 = vector.shape_cast %87 : vector<2x4x8xf32> to vector<2x4x8x1xf32>
    %222 = vector.shape_cast %91 : vector<2x4x8xf32> to vector<2x4x8x1xf32>
    %223 = vector.shape_cast %95 : vector<2x4x8xf32> to vector<2x4x8x1xf32>
    %224 = vector.shape_cast %99 : vector<2x4x8xf32> to vector<2x4x8x1xf32>
    %225 = vector.shape_cast %103 : vector<2x4x8xf32> to vector<2x4x8x1xf32>
    %226 = vector.shape_cast %107 : vector<2x4x8xf32> to vector<2x4x8x1xf32>
    %227 = vector.shape_cast %111 : vector<2x4x8xf32> to vector<2x4x8x1xf32>
    %228 = vector.shape_cast %115 : vector<2x4x8xf32> to vector<2x4x8x1xf32>
    %229 = vector.shape_cast %119 : vector<2x4x8xf32> to vector<2x4x8x1xf32>
    %230 = vector.shape_cast %123 : vector<2x4x8xf32> to vector<2x4x8x1xf32>
    %231 = vector.shape_cast %127 : vector<2x4x8xf32> to vector<2x4x8x1xf32>
    %232 = vector.shape_cast %131 : vector<2x4x8xf32> to vector<2x4x8x1xf32>
    %233 = vector.shape_cast %135 : vector<2x4x8xf32> to vector<2x4x8x1xf32>
    %234 = vector.shape_cast %139 : vector<2x4x8xf32> to vector<2x4x8x1xf32>
    %235 = vector.shape_cast %143 : vector<2x4x8xf32> to vector<2x4x8x1xf32>
    %236 = vector.shape_cast %147 : vector<2x4x8xf32> to vector<2x4x8x1xf32>
    %237 = vector.shape_cast %151 : vector<2x4x8xf32> to vector<2x4x8x1xf32>
    %238 = vector.shape_cast %155 : vector<2x4x8xf32> to vector<2x4x8x1xf32>
    %239 = vector.shape_cast %159 : vector<2x4x8xf32> to vector<2x4x8x1xf32>
    %240 = vector.shape_cast %163 : vector<2x4x8xf32> to vector<2x4x8x1xf32>
    %241 = vector.shape_cast %167 : vector<2x4x8xf32> to vector<2x4x8x1xf32>
    %242 = vector.shape_cast %171 : vector<2x4x8xf32> to vector<2x4x8x1xf32>
    %243 = vector.shape_cast %175 : vector<2x4x8xf32> to vector<2x4x8x1xf32>
    %244 = vector.shape_cast %179 : vector<2x4x8xf32> to vector<2x4x8x1xf32>
    %245 = vector.shape_cast %183 : vector<2x4x8xf32> to vector<2x4x8x1xf32>
    %246 = vector.shape_cast %187 : vector<2x4x8xf32> to vector<2x4x8x1xf32>
    %247 = vector.shape_cast %191 : vector<2x4x8xf32> to vector<2x4x8x1xf32>
    %248 = vector.shape_cast %195 : vector<2x4x8xf32> to vector<2x4x8x1xf32>
    %249 = vector.shape_cast %199 : vector<2x4x8xf32> to vector<2x4x8x1xf32>
    %250 = vector.shape_cast %200 : vector<2x4x8xf32> to vector<2x4x8x1xf32>
    %251 = vector.shape_cast %200 : vector<2x4x8xf32> to vector<2x4x8x1xf32>
    %252 = vector.shape_cast %200 : vector<2x4x8xf32> to vector<2x4x8x1xf32>
    %253 = vector.shape_cast %200 : vector<2x4x8xf32> to vector<2x4x8x1xf32>
    %254 = vector.shape_cast %200 : vector<2x4x8xf32> to vector<2x4x8x1xf32>
    %255 = vector.shape_cast %200 : vector<2x4x8xf32> to vector<2x4x8x1xf32>
    %256 = vector.shape_cast %200 : vector<2x4x8xf32> to vector<2x4x8x1xf32>
    %257 = vector.shape_cast %200 : vector<2x4x8xf32> to vector<2x4x8x1xf32>
    %258 = vector.shape_cast %200 : vector<2x4x8xf32> to vector<2x4x8x1xf32>
    %259 = vector.shape_cast %200 : vector<2x4x8xf32> to vector<2x4x8x1xf32>
    %260 = vector.shape_cast %200 : vector<2x4x8xf32> to vector<2x4x8x1xf32>
    %261 = vector.shape_cast %200 : vector<2x4x8xf32> to vector<2x4x8x1xf32>
    %262 = vector.shape_cast %200 : vector<2x4x8xf32> to vector<2x4x8x1xf32>
    %263 = vector.shape_cast %200 : vector<2x4x8xf32> to vector<2x4x8x1xf32>
    %264 = vector.shape_cast %200 : vector<2x4x8xf32> to vector<2x4x8x1xf32>
    %265 = tpu.concatenate %201, %202, %203, %204, %205, %206, %207, %208, %209, %210, %211, %212, %213, %214, %215, %216 in 3 : vector<2x4x8x1xf32>, vector<2x4x8x1xf32>, vector<2x4x8x1xf32>, vector<2x4x8x1xf32>, vector<2x4x8x1xf32>, vector<2x4x8x1xf32>, vector<2x4x8x1xf32>, vector<2x4x8x1xf32>, vector<2x4x8x1xf32>, vector<2x4x8x1xf32>, vector<2x4x8x1xf32>, vector<2x4x8x1xf32>, vector<2x4x8x1xf32>, vector<2x4x8x1xf32>, vector<2x4x8x1xf32>, vector<2x4x8x1xf32> -> vector<2x4x8x16xf32>
    %266 = tpu.concatenate %217, %218, %219, %220, %221, %222, %223, %224, %225, %226, %227, %228, %229, %230, %231, %232 in 3 : vector<2x4x8x1xf32>, vector<2x4x8x1xf32>, vector<2x4x8x1xf32>, vector<2x4x8x1xf32>, vector<2x4x8x1xf32>, vector<2x4x8x1xf32>, vector<2x4x8x1xf32>, vector<2x4x8x1xf32>, vector<2x4x8x1xf32>, vector<2x4x8x1xf32>, vector<2x4x8x1xf32>, vector<2x4x8x1xf32>, vector<2x4x8x1xf32>, vector<2x4x8x1xf32>, vector<2x4x8x1xf32>, vector<2x4x8x1xf32> -> vector<2x4x8x16xf32>
    %267 = tpu.concatenate %233, %234, %235, %236, %237, %238, %239, %240, %241, %242, %243, %244, %245, %246, %247, %248 in 3 : vector<2x4x8x1xf32>, vector<2x4x8x1xf32>, vector<2x4x8x1xf32>, vector<2x4x8x1xf32>, vector<2x4x8x1xf32>, vector<2x4x8x1xf32>, vector<2x4x8x1xf32>, vector<2x4x8x1xf32>, vector<2x4x8x1xf32>, vector<2x4x8x1xf32>, vector<2x4x8x1xf32>, vector<2x4x8x1xf32>, vector<2x4x8x1xf32>, vector<2x4x8x1xf32>, vector<2x4x8x1xf32>, vector<2x4x8x1xf32> -> vector<2x4x8x16xf32>
    %268 = tpu.concatenate %249, %250, %251, %252, %253, %254, %255, %256, %257, %258, %259, %260, %261, %262, %263, %264 in 3 : vector<2x4x8x1xf32>, vector<2x4x8x1xf32>, vector<2x4x8x1xf32>, vector<2x4x8x1xf32>, vector<2x4x8x1xf32>, vector<2x4x8x1xf32>, vector<2x4x8x1xf32>, vector<2x4x8x1xf32>, vector<2x4x8x1xf32>, vector<2x4x8x1xf32>, vector<2x4x8x1xf32>, vector<2x4x8x1xf32>, vector<2x4x8x1xf32>, vector<2x4x8x1xf32>, vector<2x4x8x1xf32>, vector<2x4x8x1xf32> -> vector<2x4x8x16xf32>
    %269 = tpu.concatenate %265, %266, %267, %268 in 3 : vector<2x4x8x16xf32>, vector<2x4x8x16xf32>, vector<2x4x8x16xf32>, vector<2x4x8x16xf32> -> vector<2x4x8x64xf32>
    %270 = vector.shape_cast %269 : vector<2x4x8x64xf32> to vector<64x64xf32>
    %271 = arith.truncf %270 : vector<64x64xf32> to vector<64x64xbf16>
    %c0_190 = arith.constant 0 : index
    %c0_191 = arith.constant 0 : index
    %272 = vector.load %arg4[%c0_190, %c0_191] : memref<64x64xbf16, #tpu.memory_space<vmem>>, vector<64x64xbf16>
    %cst_192 = arith.constant dense<0.000000e+00> : vector<64x64xf32>
    %273 = tpu.matmul %271, %272, %cst_192 {dimension_numbers = #tpu.dot_dimension_numbers<[1], [0], [0], [1], [0, 0, 1, 1], [], []>} : vector<64x64xbf16>, vector<64x64xbf16>, vector<64x64xf32> -> vector<64x64xf32>
    %cst_193 = arith.constant 0.000000e+00 : f32
    %274 = vector.broadcast %cst_193 : f32 to vector<64x64xf32>
    %275 = arith.maximumf %273, %274 : vector<64x64xf32>
    %c0_194 = arith.constant 0 : index
    %c0_195 = arith.constant 0 : index
    %276 = vector.load %arg8[%c0_194, %c0_195] : memref<2x64xf32, #tpu.memory_space<vmem>>, vector<2x64xf32>
    %277 = vector.shape_cast %275 : vector<64x64xf32> to vector<2x32x64xf32>
    %cst_196 = arith.constant dense<0.000000e+00> : vector<2x64xf32>
    %278 = vector.multi_reduction <add>, %277, %cst_196 [1] : vector<2x32x64xf32> to vector<2x64xf32>
    %279 = arith.addf %276, %278 : vector<2x64xf32>
    %c0_197 = arith.constant 0 : index
    %c0_198 = arith.constant 0 : index
    %280 = vector.load %arg8[%c0_197, %c0_198] : memref<2x64xf32, #tpu.memory_space<vmem>>, vector<2x64xf32>
    tpu.vector_store %arg8[%c0_197, %c0_198], %279 {strides = array<i32>} : memref<2x64xf32, #tpu.memory_space<vmem>>, vector<2x64xf32>,
    %c1_i32_199 = arith.constant 1 : i32
    %281 = arith.cmpi eq, %arg1, %c1_i32_199 : i32
    %282 = arith.extui %281 : i1 to i32
    %c0_i32_200 = arith.constant 0 : i32
    %283 = arith.cmpi ne, %282, %c0_i32_200 : i32
    scf.if %283 {
      %c0_201 = arith.constant 0 : index
      %c0_202 = arith.constant 0 : index
      %284 = vector.load %arg8[%c0_201, %c0_202] : memref<2x64xf32, #tpu.memory_space<vmem>>, vector<2x64xf32>
      %cst_203 = arith.constant 1.562500e-02 : f32
      %285 = vector.broadcast %cst_203 : f32 to vector<2x64xf32>
      %286 = arith.mulf %284, %285 : vector<2x64xf32>
      %287 = arith.truncf %286 : vector<2x64xf32> to vector<2x64xbf16>
      %c0_204 = arith.constant 0 : index
      %c0_205 = arith.constant 0 : index
      %288 = vector.load %arg5[%c0_204, %c0_205] : memref<64x64xbf16, #tpu.memory_space<vmem>>, vector<64x64xbf16>
      %cst_206 = arith.constant dense<0.000000e+00> : vector<2x64xf32>
      %289 = tpu.matmul %287, %288, %cst_206 {dimension_numbers = #tpu.dot_dimension_numbers<[1], [0], [0], [1], [0, 0, 1, 1], [], []>} : vector<2x64xbf16>, vector<64x64xbf16>, vector<2x64xf32> -> vector<2x64xf32>
      %290 = arith.truncf %289 : vector<2x64xf32> to vector<2x64xbf16>
      %c0_207 = arith.constant 0 : index
      %c0_208 = arith.constant 0 : index
      %291 = vector.load %arg6[%c0_207, %c0_208] : memref<64x128xbf16, #tpu.memory_space<vmem>>, vector<64x128xbf16>
      %cst_209 = arith.constant dense<0.000000e+00> : vector<2x128xf32>
      %292 = tpu.matmul %290, %291, %cst_209 {dimension_numbers = #tpu.dot_dimension_numbers<[1], [0], [0], [1], [0, 0, 1, 1], [], []>} : vector<2x64xbf16>, vector<64x128xbf16>, vector<2x128xf32> -> vector<2x128xf32>
      %c0_210 = arith.constant 0 : index
      %c0_211 = arith.constant 0 : index
      %293 = vector.load %arg7[%c0_210, %c0_211] : memref<2x128xf32, #tpu.memory_space<vmem>>, vector<2x128xf32>
      tpu.vector_store %arg7[%c0_210, %c0_211], %292 {strides = array<i32>} : memref<2x128xf32, #tpu.memory_space<vmem>>, vector<2x128xf32>,
    } else {
    }
    return
  }
  func.func @transform_0(%arg0: i32, %arg1: i32) -> i32 {
    %c0_i32 = arith.constant 0 : i32
    %c0_i32_0 = arith.constant 0 : i32
    return %c0_i32 : i32
  }
  func.func @transform_1(%arg0: i32, %arg1: i32) -> (i32, i32, i32, i32) {
    %c0_i32 = arith.constant 0 : i32
    %c0_i32_0 = arith.constant 0 : i32
    %c0_i32_1 = arith.constant 0 : i32
    %c0_i32_2 = arith.constant 0 : i32
    return %arg0, %c0_i32, %c0_i32_0, %c0_i32_1 : i32, i32, i32, i32
  }
  func.func @transform_2(%arg0: i32, %arg1: i32) -> (i32, i32) {
    %c0_i32 = arith.constant 0 : i32
    %c0_i32_0 = arith.constant 0 : i32
    %c0_i32_1 = arith.constant 0 : i32
    return %c0_i32, %c0_i32_0 : i32, i32
  }
  func.func @transform_3(%arg0: i32, %arg1: i32) -> (i32, i32) {
    %c0_i32 = arith.constant 0 : i32
    %c0_i32_0 = arith.constant 0 : i32
    %c0_i32_1 = arith.constant 0 : i32
    return %c0_i32, %c0_i32_0 : i32, i32
  }
  func.func @transform_4(%arg0: i32, %arg1: i32) -> (i32, i32) {
    %c0_i32 = arith.constant 0 : i32
    %c0_i32_0 = arith.constant 0 : i32
    %c0_i32_1 = arith.constant 0 : i32
    return %c0_i32, %c0_i32_0 : i32, i32
  }
  func.func @transform_5(%arg0: i32, %arg1: i32) -> (i32, i32) {
    %c0_i32 = arith.constant 0 : i32
    %c0_i32_0 = arith.constant 0 : i32
    return %arg0, %c0_i32 : i32, i32
  }
}

</mosaic_0001>

<llo_original>
// kernel: tpu_custom_call.1
$region0: #{tpu_custom_call.1}
  #allocation0 [shape = 'u32[]', space=smem, size = 0x4, offset = 0x4, fixed_abs, tag = 'smem constant byte address 0x4 - core index']
  #allocation1 [shape = 'u32[72,128]{1,0:T(1,128)}', space=vmem, size = 0x9000, scoped, tag = 'internal scratch']
  #allocation2 [shape = 'f32[2,64]{1,0:T(2,128)}', space=vmem, size = 0x400, scoped, tag = 'scratch operand']
  #allocation3 [shape = 's32[1]{0:T(128)S(6)}', space=smem, size = 0x200, scoped, tag = 'scoped memory for tpu_custom_call.1']
  %s0 = inlined_call_operand.<no memory space> [shape: s32[1], index: 0, kind: input, shape index: {}]
  %s1 = inlined_call_operand.vmem [shape: f32[2,4,11,11], index: 1, kind: input, shape index: {}]
  %s2 = inlined_call_operand.vmem [shape: bf16[64,64], index: 2, kind: input, shape index: {}]
  %s3 = inlined_call_operand.vmem [shape: bf16[64,64], index: 3, kind: input, shape index: {}]
  %s4 = inlined_call_operand.vmem [shape: bf16[64,128], index: 4, kind: input, shape index: {}]
  %s5 = inlined_call_operand.hbm [shape: f32[2,128], index: 5, kind: output, shape index: {}]
  %s6 = sld [smem:[#allocation0]]
  $region61: #{tpu_custom_call.1} parent=0
    _
  %s8 = ssub.s32 1, %s6
  %s9 = scalar_select 0, %s8, %s6
  %10 = sst [smem:[#allocation3]] %s0
  $region1: #{tpu_custom_call.1} parent=0
    #allocation4 [shape = 'u8[1024]{0}', space=vmem, size = 0x400, scoped, tag = 'output window, operand 0, single buffered']
    #allocation5 [shape = 's32[2]{0}', space=sflag, size = 0x8, scoped, tag = 'scoped memory for tpu_custom_call.1']
    %11 = vsyncpa [#allocation5], 0
    loop: start=0, step=1, limit=4
    $region2: #{tpu_custom_call.1} parent=1 // loop_pre_header
      _
    $region3: #{tpu_custom_call.1} parent=1 // loop_header
      %s13 = sphi 0, %s17
      %p14 = scmp.ge.s32.totalorder %s13, 4
      %s20 = sphi 0, %s32
      %s21 = sphi 0, %s28
      %s22 = sphi 0, %s20
      %s23 = sphi 0, %s21
      %s24 = sphi 0, %s22
      %s25 = sphi 0, %s23
      %s33 = sphi 0, %s33
      %s35 = sphi 0, %s33
      %s36 = sphi 0, %s35
      %s50 = sphi 0, %s36
      %s56 = sphi 0, %s58
      %s59 = sphi 0, %s56
      %s60 = sphi 0, %s59
      %s76 = sphi 0, %s60
      %s80 = sphi 0, %s80
      %s82 = sphi 0, %s80
      %s83 = sphi 0, %s82
      %s97 = sphi 0, %s83
      %s101 = sphi 0, %s101
      %s103 = sphi 0, %s101
      %s104 = sphi 0, %s103
      %s118 = sphi 0, %s104
      %s122 = sphi 0, %s122
      %s124 = sphi 0, %s122
      %s125 = sphi 0, %s124
      %s139 = sphi 0, %s125
      %s145 = sphi 0, %s147
      %s148 = sphi 0, %s145
      %s149 = sphi 0, %s148
      %s165 = sphi 0, %s149
    $region4: #{tpu_custom_call.1} parent=1 // loop_header_branch
      %16 = sbr.rel (%p14) target = $region8
    $region5: #{tpu_custom_call.1} parent=1 // loop_body
      %s18 = ssub.s32 %s13, 1
      %s19 = ssub.s32 %s13, 2
      %s26 = sadd.s32 1, %s21
      %p27 = scmp.ge.s32.totalorder %s26, 2
      %s28 = scalar_select %p27, 0, %s26
      %s29 = sadd.s32 1, %s20
      %s30 = scalar_select %p27, %s29, %s20
      %p31 = scmp.ge.s32.totalorder %s30, 1
      %s32 = scalar_select %p31, 0, %s30
      %s34 = sadd.s32 %s33, 1
      %p37 = scmp.eq.s32.totalorder %s13, 1
      %p38 = scmp.ne.s32.totalorder %s33, %s35
      %p39 = scmp.eq.s32.totalorder %s13, 0
      %p40 = por %p38, %p39
      %p41 = scmp.ne.s32.totalorder %s33, %s35
      %p42 = scmp.eq.s32.totalorder %s18, 1
      %p43 = por %p41, %p42
      %p44 = scmp.ne.s32.totalorder %s35, %s36
      %p45 = scmp.eq.s32.totalorder %s18, 0
      %p46 = por %p44, %p45
      %p47 = scmp.ne.s32.totalorder %s35, %s36
      %p48 = scmp.eq.s32.totalorder %s19, 1
      %p49 = por %p47, %p48
      %p51 = scmp.ne.s32.totalorder %s36, %s50
      %p52 = scmp.eq.s32.totalorder %s19, 0
      %p53 = por %p51, %p52
      %s54 = ssub.s32 %s20, %s32
      %p55 = scmp.eq.s32.totalorder %s54, 0
      %s57 = sadd.s32 %s56, 1
      %s58 = scalar_select %p55, %s56, %s57
      %p61 = pneg %p55
      %p62 = scmp.eq.s32.totalorder %s13, 1
      %p63 = por %p61, %p62
      %p64 = scmp.ne.s32.totalorder %s56, %s59
      %p65 = scmp.eq.s32.totalorder %s13, 0
      %p66 = por %p64, %p65
      %p67 = scmp.ne.s32.totalorder %s56, %s59
      %p68 = scmp.eq.s32.totalorder %s18, 1
      %p69 = por %p67, %p68
      %p70 = scmp.ne.s32.totalorder %s59, %s60
      %p71 = scmp.eq.s32.totalorder %s18, 0
      %p72 = por %p70, %p71
      %p73 = scmp.ne.s32.totalorder %s59, %s60
      %p74 = scmp.eq.s32.totalorder %s19, 1
      %p75 = por %p73, %p74
      %p77 = scmp.ne.s32.totalorder %s60, %s76
      %p78 = scmp.eq.s32.totalorder %s19, 0
      %p79 = por %p77, %p78
      %s81 = sadd.s32 %s80, 1
      %p84 = scmp.eq.s32.totalorder %s13, 1
      %p85 = scmp.ne.s32.totalorder %s80, %s82
      %p86 = scmp.eq.s32.totalorder %s13, 0
      %p87 = por %p85, %p86
      %p88 = scmp.ne.s32.totalorder %s80, %s82
      %p89 = scmp.eq.s32.totalorder %s18, 1
      %p90 = por %p88, %p89
      %p91 = scmp.ne.s32.totalorder %s82, %s83
      %p92 = scmp.eq.s32.totalorder %s18, 0
      %p93 = por %p91, %p92
      %p94 = scmp.ne.s32.totalorder %s82, %s83
      %p95 = scmp.eq.s32.totalorder %s19, 1
      %p96 = por %p94, %p95
      %p98 = scmp.ne.s32.totalorder %s83, %s97
      %p99 = scmp.eq.s32.totalorder %s19, 0
      %p100 = por %p98, %p99
      %s102 = sadd.s32 %s101, 1
      %p105 = scmp.eq.s32.totalorder %s13, 1
      %p106 = scmp.ne.s32.totalorder %s101, %s103
      %p107 = scmp.eq.s32.totalorder %s13, 0
      %p108 = por %p106, %p107
      %p109 = scmp.ne.s32.totalorder %s101, %s103
      %p110 = scmp.eq.s32.totalorder %s18, 1
      %p111 = por %p109, %p110
      %p112 = scmp.ne.s32.totalorder %s103, %s104
      %p113 = scmp.eq.s32.totalorder %s18, 0
      %p114 = por %p112, %p113
      %p115 = scmp.ne.s32.totalorder %s103, %s104
      %p116 = scmp.eq.s32.totalorder %s19, 1
      %p117 = por %p115, %p116
      %p119 = scmp.ne.s32.totalorder %s104, %s118
      %p120 = scmp.eq.s32.totalorder %s19, 0
      %p121 = por %p119, %p120
      %s123 = sadd.s32 %s122, 1
      %p126 = scmp.eq.s32.totalorder %s13, 1
      %p127 = scmp.ne.s32.totalorder %s122, %s124
      %p128 = scmp.eq.s32.totalorder %s13, 0
      %p129 = por %p127, %p128
      %p130 = scmp.ne.s32.totalorder %s122, %s124
      %p131 = scmp.eq.s32.totalorder %s18, 1
      %p132 = por %p130, %p131
      %p133 = scmp.ne.s32.totalorder %s124, %s125
      %p134 = scmp.eq.s32.totalorder %s18, 0
      %p135 = por %p133, %p134
      %p136 = scmp.ne.s32.totalorder %s124, %s125
      %p137 = scmp.eq.s32.totalorder %s19, 1
      %p138 = por %p136, %p137
      %p140 = scmp.ne.s32.totalorder %s125, %s139
      %p141 = scmp.eq.s32.totalorder %s19, 0
      %p142 = por %p140, %p141
      %s143 = ssub.s32 %s20, %s32
      %p144 = scmp.eq.s32.totalorder %s143, 0
      %s146 = sadd.s32 %s145, 1
      %s147 = scalar_select %p144, %s145, %s146
      %p150 = pneg %p144
      %p151 = scmp.eq.s32.totalorder %s13, 1
      %p152 = por %p150, %p151
      %p153 = scmp.ne.s32.totalorder %s145, %s148
      %p154 = scmp.eq.s32.totalorder %s13, 0
      %p155 = por %p153, %p154
      %p156 = scmp.ne.s32.totalorder %s145, %s148
      %p157 = scmp.eq.s32.totalorder %s18, 1
      %p158 = por %p156, %p157
      %p159 = scmp.ne.s32.totalorder %s148, %s149
      %p160 = scmp.eq.s32.totalorder %s18, 0
      %p161 = por %p159, %p160
      %p162 = scmp.ne.s32.totalorder %s148, %s149
      %p163 = scmp.eq.s32.totalorder %s19, 1
      %p164 = por %p162, %p163
      %p166 = scmp.ne.s32.totalorder %s149, %s165
      %p167 = scmp.eq.s32.totalorder %s19, 0
      %p168 = por %p166, %p167
      %p169 = scmp.le.s32.totalorder 1, %s13
      %p170 = scmp.lt.s32.totalorder %s13, 3
      %p171 = pnand %p169, %p170
      %p172 = pneg %p171
      // Predicated region
      $region9: #{tpu_custom_call.1} parent=5 // pred_check
        _
      $region10: #{tpu_custom_call.1} parent=5 // pred_check_branch
        %174 = sbr.rel (%p171) target = $region12
      $region11: #{tpu_custom_call.1} parent=5 // pred_region
        %s175 = ssub.s32 %s13, 1
        // Predicated region
        $region13: #{tpu_custom_call.1} parent=11 // pred_check
          %p176 = pneg %p46
        $region14: #{tpu_custom_call.1} parent=11 // pred_check_branch
          %178 = sbr.rel (%p176) target = $region16
        $region15: #{tpu_custom_call.1} parent=11 // pred_region
          _
        $region16: #{tpu_custom_call.1} parent=11 // pred_fallthru
          _
        // Predicated region
        $region17: #{tpu_custom_call.1} parent=11 // pred_check
          %p179 = pneg %p72
        $region18: #{tpu_custom_call.1} parent=11 // pred_check_branch
          %181 = sbr.rel (%p179) target = $region20
        $region19: #{tpu_custom_call.1} parent=11 // pred_region
          %s182 = smul.u32 2, %s22
          %p183 = scmp.lt.s32.totalorder %s182, 1
          %s184 = scalar_select %p183, %s182, 1
          %s185 = smul.addr %s184, 8
          %s186 = smul.addr %s185, 8
          %s187 = scalar_lea.vmem %s1, %s186
          %s188 = smul.u32 2, %s22
        $region20: #{tpu_custom_call.1} parent=11 // pred_fallthru
          _
        // Predicated region
        $region21: #{tpu_custom_call.1} parent=11 // pred_check
          %p189 = pneg %p93
        $region22: #{tpu_custom_call.1} parent=11 // pred_check_branch
          %191 = sbr.rel (%p189) target = $region24
        $region23: #{tpu_custom_call.1} parent=11 // pred_region
          _
        $region24: #{tpu_custom_call.1} parent=11 // pred_fallthru
          _
        // Predicated region
        $region25: #{tpu_custom_call.1} parent=11 // pred_check
          %p192 = pneg %p114
        $region26: #{tpu_custom_call.1} parent=11 // pred_check_branch
          %194 = sbr.rel (%p192) target = $region28
        $region27: #{tpu_custom_call.1} parent=11 // pred_region
          _
        $region28: #{tpu_custom_call.1} parent=11 // pred_fallthru
          _
        // Predicated region
        $region29: #{tpu_custom_call.1} parent=11 // pred_check
          %p195 = pneg %p135
        $region30: #{tpu_custom_call.1} parent=11 // pred_check_branch
          %197 = sbr.rel (%p195) target = $region32
        $region31: #{tpu_custom_call.1} parent=11 // pred_region
          _
        $region32: #{tpu_custom_call.1} parent=11 // pred_fallthru
          _
      $region12: #{tpu_custom_call.1} parent=5 // pred_fallthru
        _
      %p198 = scmp.lt.s32.totalorder %s13, 2
      // Predicated region
      $region33: #{tpu_custom_call.1} parent=5 // pred_check
        %p199 = pneg %p198
      $region34: #{tpu_custom_call.1} parent=5 // pred_check_branch
        %201 = sbr.rel (%p199) target = $region36
      $region35: #{tpu_custom_call.1} parent=5 // pred_region
        _
      $region36: #{tpu_custom_call.1} parent=5 // pred_fallthru
        _
      %p202 = scmp.le.s32.totalorder 1, %s13
      %p203 = scmp.lt.s32.totalorder %s13, 3
      %p204 = pnand %p202, %p203
      %p205 = pneg %p204
      // Predicated region
      $region37: #{tpu_custom_call.1} parent=5 // pred_check
        _
      $region38: #{tpu_custom_call.1} parent=5 // pred_check_branch
        %207 = sbr.rel (%p204) target = $region40
      $region39: #{tpu_custom_call.1} parent=5 // pred_region
        %s208 = ssub.s32 %s13, 1
        %p209 = pneg %p46
        %p210 = pneg %p43
        %s211 = smul.u32 2, %s22
        %p212 = scmp.lt.s32.totalorder %s211, 1
        %s213 = scalar_select %p212, %s211, 1
        %s214 = smul.addr %s213, 8
        %s215 = smul.addr %s214, 8
        %s216 = scalar_lea.vmem %s1, %s215
        %p217 = pneg %p72
        %p218 = pneg %p69
        %p219 = pneg %p93
        %p220 = pneg %p90
        %p221 = pneg %p114
        %p222 = pneg %p111
        %p223 = pneg %p135
        %p224 = pneg %p132
        %p225 = pneg %p161
        %p226 = pneg %p158
        %s227 = smul.u32 2, %s22
        %p228 = scmp.lt.s32.totalorder %s227, 1
        %s229 = scalar_select %p228, %s227, 1
        %s230 = smul.addr %s229, 8
        %s231 = smul.addr %s230, 8
        %s232 = scalar_lea.vmem %s1, %s231
        %s233 = smul.u32 2, %s22
        %p235 = scmp.eq.s32.totalorder %s23, 0
        // Predicated region
        $region41: #{tpu_custom_call.1} parent=39 // pred_check
          %p236 = pneg %p235
        $region42: #{tpu_custom_call.1} parent=39 // pred_check_branch
          %238 = sbr.rel (%p236) target = $region44
        $region43: #{tpu_custom_call.1} parent=39 // pred_region
          %vm239 = vcmask 517120
          %240 = vst.msk [vmem:[#allocation2] sm:$0x3] %vm239, 0.0
        $region44: #{tpu_custom_call.1} parent=39 // pred_fallthru
          _
        %s241 = smul.u32 %s23, 4
        %s242 = scalar_lea.vmem %s232, %s241
        %v243 = vld [vmem:[%s242] sm:$0xf]
        %v244 = vld [vmem:[%s242 + $0x40] sm:$0xf]
        %s245 = sadd.s32 %s241, 16
        %s246 = scalar_lea.vmem %s232, %s245
        %v247 = vld [vmem:[%s246] sm:$0xf]
        %v248 = vld [vmem:[%s246 + $0x40] sm:$0xf]
        %s249 = sadd.s32 %s241, 32
        %s250 = scalar_lea.vmem %s232, %s249
        %v251 = vld [vmem:[%s250] sm:$0xf]
        %v252 = vld [vmem:[%s250 + $0x40] sm:$0xf]
        %s253 = sadd.s32 %s241, 48
        %s254 = scalar_lea.vmem %s232, %s253
        %v255 = vld [vmem:[%s254] sm:$0xf]
        %v256 = vld [vmem:[%s254 + $0x40] sm:$0xf]
        %s257 = sadd.s32 %s241, 1
        %s258 = scalar_lea.vmem %s232, %s257
        %v259 = vld [vmem:[%s258] sm:$0xf]
        %v260 = vld [vmem:[%s258 + $0x40] sm:$0xf]
        %s261 = sadd.s32 %s257, 16
        %s262 = scalar_lea.vmem %s232, %s261
        %v263 = vld [vmem:[%s262] sm:$0xf]
        %v264 = vld [vmem:[%s262 + $0x40] sm:$0xf]
        %s265 = sadd.s32 %s257, 32
        %s266 = scalar_lea.vmem %s232, %s265
        %v267 = vld [vmem:[%s266] sm:$0xf]
        %v268 = vld [vmem:[%s266 + $0x40] sm:$0xf]
        %s269 = sadd.s32 %s257, 48
        %s270 = scalar_lea.vmem %s232, %s269
        %v271 = vld [vmem:[%s270] sm:$0xf]
        %v272 = vld [vmem:[%s270 + $0x40] sm:$0xf]
        %s273 = sadd.s32 %s241, 2
        %s274 = scalar_lea.vmem %s232, %s273
        %v275 = vld [vmem:[%s274] sm:$0xf]
        %v276 = vld [vmem:[%s274 + $0x40] sm:$0xf]
        %s277 = sadd.s32 %s273, 16
        %s278 = scalar_lea.vmem %s232, %s277
        %v279 = vld [vmem:[%s278] sm:$0xf]
        %v280 = vld [vmem:[%s278 + $0x40] sm:$0xf]
        %s281 = sadd.s32 %s273, 32
        %s282 = scalar_lea.vmem %s232, %s281
        %v283 = vld [vmem:[%s282] sm:$0xf]
        %v284 = vld [vmem:[%s282 + $0x40] sm:$0xf]
        %s285 = sadd.s32 %s273, 48
        %s286 = scalar_lea.vmem %s232, %s285
        %v287 = vld [vmem:[%s286] sm:$0xf]
        %v288 = vld [vmem:[%s286 + $0x40] sm:$0xf]
        %s289 = sadd.s32 %s241, 3
        %s290 = scalar_lea.vmem %s232, %s289
        %v291 = vld [vmem:[%s290] sm:$0xf]
        %v292 = vld [vmem:[%s290 + $0x40] sm:$0xf]
        %s293 = sadd.s32 %s289, 16
        %s294 = scalar_lea.vmem %s232, %s293
        %v295 = vld [vmem:[%s294] sm:$0xf]
        %v296 = vld [vmem:[%s294 + $0x40] sm:$0xf]
        %v297 = vperm.slane %v243, 0
        %v298 = vlaneseq
        %v299 = vshrl.u32 %v298, 7
        %301 = vset.pattern.permute.xlu0 %v299
        %302 = vperm.xlu0 %301, %v297
        %v303 = vpop.permute.xlu0 %302
        %v304 = vperm.slane %v243, 1
        %v305 = vlaneseq
        %v306 = vshrl.u32 %v305, 7
        %308 = vset.pattern.permute.xlu0 %v306
        %309 = vperm.xlu0 %308, %v304
        %v310 = vpop.permute.xlu0 %309
        %v311 = vperm.slane %v243, 2
        %v312 = vlaneseq
        %v313 = vshrl.u32 %v312, 7
        %315 = vset.pattern.permute.xlu0 %v313
        %316 = vperm.xlu0 %315, %v311
        %v317 = vpop.permute.xlu0 %316
        %v318 = vperm.slane %v243, 3
        %v319 = vlaneseq
        %v320 = vshrl.u32 %v319, 7
        %322 = vset.pattern.permute.xlu0 %v320
        %323 = vperm.xlu0 %322, %v318
        %v324 = vpop.permute.xlu0 %323
        %v325 = vperm.slane %v244, 0
        %v326 = vlaneseq
        %v327 = vshrl.u32 %v326, 7
        %329 = vset.pattern.permute.xlu0 %v327
        %330 = vperm.xlu0 %329, %v325
        %v331 = vpop.permute.xlu0 %330
        %v332 = vperm.slane %v244, 1
        %v333 = vlaneseq
        %v334 = vshrl.u32 %v333, 7
        %336 = vset.pattern.permute.xlu0 %v334
        %337 = vperm.xlu0 %336, %v332
        %v338 = vpop.permute.xlu0 %337
        %v339 = vperm.slane %v244, 2
        %v340 = vlaneseq
        %v341 = vshrl.u32 %v340, 7
        %343 = vset.pattern.permute.xlu0 %v341
        %344 = vperm.xlu0 %343, %v339
        %v345 = vpop.permute.xlu0 %344
        %v346 = vperm.slane %v244, 3
        %v347 = vlaneseq
        %v348 = vshrl.u32 %v347, 7
        %350 = vset.pattern.permute.xlu0 %v348
        %351 = vperm.xlu0 %350, %v346
        %v352 = vpop.permute.xlu0 %351
        %v353 = vperm.slane %v247, 0
        %v354 = vlaneseq
        %v355 = vshrl.u32 %v354, 7
        %357 = vset.pattern.permute.xlu0 %v355
        %358 = vperm.xlu0 %357, %v353
        %v359 = vpop.permute.xlu0 %358
        %v360 = vperm.slane %v247, 1
        %v361 = vlaneseq
        %v362 = vshrl.u32 %v361, 7
        %364 = vset.pattern.permute.xlu0 %v362
        %365 = vperm.xlu0 %364, %v360
        %v366 = vpop.permute.xlu0 %365
        %v367 = vperm.slane %v247, 2
        %v368 = vlaneseq
        %v369 = vshrl.u32 %v368, 7
        %371 = vset.pattern.permute.xlu0 %v369
        %372 = vperm.xlu0 %371, %v367
        %v373 = vpop.permute.xlu0 %372
        %v374 = vperm.slane %v247, 3
        %v375 = vlaneseq
        %v376 = vshrl.u32 %v375, 7
        %378 = vset.pattern.permute.xlu0 %v376
        %379 = vperm.xlu0 %378, %v374
        %v380 = vpop.permute.xlu0 %379
        %v381 = vperm.slane %v248, 0
        %v382 = vlaneseq
        %v383 = vshrl.u32 %v382, 7
        %385 = vset.pattern.permute.xlu0 %v383
        %386 = vperm.xlu0 %385, %v381
        %v387 = vpop.permute.xlu0 %386
        %v388 = vperm.slane %v248, 1
        %v389 = vlaneseq
        %v390 = vshrl.u32 %v389, 7
        %392 = vset.pattern.permute.xlu0 %v390
        %393 = vperm.xlu0 %392, %v388
        %v394 = vpop.permute.xlu0 %393
        %v395 = vperm.slane %v248, 2
        %v396 = vlaneseq
        %v397 = vshrl.u32 %v396, 7
        %399 = vset.pattern.permute.xlu0 %v397
        %400 = vperm.xlu0 %399, %v395
        %v401 = vpop.permute.xlu0 %400
        %v402 = vperm.slane %v248, 3
        %v403 = vlaneseq
        %v404 = vshrl.u32 %v403, 7
        %406 = vset.pattern.permute.xlu0 %v404
        %407 = vperm.xlu0 %406, %v402
        %v408 = vpop.permute.xlu0 %407
        %v409 = vlaneseq
        %v410 = vshrl.u32 %v409, 7
        %v411 = vadd.s32 %v410, 1
        %412 = vset.pattern.permute.xlu0 %v411
        %413 = vperm.xlu0 %412, %v297
        %v414 = vpop.permute.xlu0 %413
        %v415 = vlaneseq
        %v416 = vshrl.u32 %v415, 7
        %v417 = vadd.s32 %v416, 1
        %418 = vset.pattern.permute.xlu0 %v417
        %419 = vperm.xlu0 %418, %v304
        %v420 = vpop.permute.xlu0 %419
        %v421 = vlaneseq
        %v422 = vshrl.u32 %v421, 7
        %v423 = vadd.s32 %v422, 1
        %424 = vset.pattern.permute.xlu0 %v423
        %425 = vperm.xlu0 %424, %v311
        %v426 = vpop.permute.xlu0 %425
        %v427 = vlaneseq
        %v428 = vshrl.u32 %v427, 7
        %v429 = vadd.s32 %v428, 1
        %430 = vset.pattern.permute.xlu0 %v429
        %431 = vperm.xlu0 %430, %v318
        %v432 = vpop.permute.xlu0 %431
        %v433 = vlaneseq
        %v434 = vshrl.u32 %v433, 7
        %v435 = vadd.s32 %v434, 1
        %436 = vset.pattern.permute.xlu0 %v435
        %437 = vperm.xlu0 %436, %v325
        %v438 = vpop.permute.xlu0 %437
        %v439 = vlaneseq
        %v440 = vshrl.u32 %v439, 7
        %v441 = vadd.s32 %v440, 1
        %442 = vset.pattern.permute.xlu0 %v441
        %443 = vperm.xlu0 %442, %v332
        %v444 = vpop.permute.xlu0 %443
        %v445 = vlaneseq
        %v446 = vshrl.u32 %v445, 7
        %v447 = vadd.s32 %v446, 1
        %448 = vset.pattern.permute.xlu0 %v447
        %449 = vperm.xlu0 %448, %v339
        %v450 = vpop.permute.xlu0 %449
        %v451 = vlaneseq
        %v452 = vshrl.u32 %v451, 7
        %v453 = vadd.s32 %v452, 1
        %454 = vset.pattern.permute.xlu0 %v453
        %455 = vperm.xlu0 %454, %v346
        %v456 = vpop.permute.xlu0 %455
        %v457 = vlaneseq
        %v458 = vshrl.u32 %v457, 7
        %v459 = vadd.s32 %v458, 1
        %460 = vset.pattern.permute.xlu0 %v459
        %461 = vperm.xlu0 %460, %v353
        %v462 = vpop.permute.xlu0 %461
        %v463 = vlaneseq
        %v464 = vshrl.u32 %v463, 7
        %v465 = vadd.s32 %v464, 1
        %466 = vset.pattern.permute.xlu0 %v465
        %467 = vperm.xlu0 %466, %v360
        %v468 = vpop.permute.xlu0 %467
        %v469 = vlaneseq
        %v470 = vshrl.u32 %v469, 7
        %v471 = vadd.s32 %v470, 1
        %472 = vset.pattern.permute.xlu0 %v471
        %473 = vperm.xlu0 %472, %v367
        %v474 = vpop.permute.xlu0 %473
        %v475 = vlaneseq
        %v476 = vshrl.u32 %v475, 7
        %v477 = vadd.s32 %v476, 1
        %478 = vset.pattern.permute.xlu0 %v477
        %479 = vperm.xlu0 %478, %v374
        %v480 = vpop.permute.xlu0 %479
        %v481 = vlaneseq
        %v482 = vshrl.u32 %v481, 7
        %v483 = vadd.s32 %v482, 1
        %484 = vset.pattern.permute.xlu0 %v483
        %485 = vperm.xlu0 %484, %v381
        %v486 = vpop.permute.xlu0 %485
        %v487 = vlaneseq
        %v488 = vshrl.u32 %v487, 7
        %v489 = vadd.s32 %v488, 1
        %490 = vset.pattern.permute.xlu0 %v489
        %491 = vperm.xlu0 %490, %v388
        %v492 = vpop.permute.xlu0 %491
        %v493 = vlaneseq
        %v494 = vshrl.u32 %v493, 7
        %v495 = vadd.s32 %v494, 1
        %496 = vset.pattern.permute.xlu0 %v495
        %497 = vperm.xlu0 %496, %v395
        %v498 = vpop.permute.xlu0 %497
        %v499 = vlaneseq
        %v500 = vshrl.u32 %v499, 7
        %v501 = vadd.s32 %v500, 1
        %502 = vset.pattern.permute.xlu0 %v501
        %503 = vperm.xlu0 %502, %v402
        %v504 = vpop.permute.xlu0 %503
        %v505 = vlaneseq
        %v506 = vshrl.u32 %v505, 7
        %v507 = vadd.s32 %v506, 2
        %508 = vset.pattern.permute.xlu0 %v507
        %509 = vperm.xlu0 %508, %v297
        %v510 = vpop.permute.xlu0 %509
        %v511 = vlaneseq
        %v512 = vshrl.u32 %v511, 7
        %v513 = vadd.s32 %v512, 2
        %514 = vset.pattern.permute.xlu0 %v513
        %515 = vperm.xlu0 %514, %v304
        %v516 = vpop.permute.xlu0 %515
        %v517 = vlaneseq
        %v518 = vshrl.u32 %v517, 7
        %v519 = vadd.s32 %v518, 2
        %520 = vset.pattern.permute.xlu0 %v519
        %521 = vperm.xlu0 %520, %v311
        %v522 = vpop.permute.xlu0 %521
        %v523 = vlaneseq
        %v524 = vshrl.u32 %v523, 7
        %v525 = vadd.s32 %v524, 2
        %526 = vset.pattern.permute.xlu0 %v525
        %527 = vperm.xlu0 %526, %v318
        %v528 = vpop.permute.xlu0 %527
        %v529 = vlaneseq
        %v530 = vshrl.u32 %v529, 7
        %v531 = vadd.s32 %v530, 2
        %532 = vset.pattern.permute.xlu0 %v531
        %533 = vperm.xlu0 %532, %v325
        %v534 = vpop.permute.xlu0 %533
        %v535 = vlaneseq
        %v536 = vshrl.u32 %v535, 7
        %v537 = vadd.s32 %v536, 2
        %538 = vset.pattern.permute.xlu0 %v537
        %539 = vperm.xlu0 %538, %v332
        %v540 = vpop.permute.xlu0 %539
        %v541 = vlaneseq
        %v542 = vshrl.u32 %v541, 7
        %v543 = vadd.s32 %v542, 2
        %544 = vset.pattern.permute.xlu0 %v543
        %545 = vperm.xlu0 %544, %v339
        %v546 = vpop.permute.xlu0 %545
        %v547 = vlaneseq
        %v548 = vshrl.u32 %v547, 7
        %v549 = vadd.s32 %v548, 2
        %550 = vset.pattern.permute.xlu0 %v549
        %551 = vperm.xlu0 %550, %v346
        %v552 = vpop.permute.xlu0 %551
        %v553 = vlaneseq
        %v554 = vshrl.u32 %v553, 7
        %v555 = vadd.s32 %v554, 2
        %556 = vset.pattern.permute.xlu0 %v555
        %557 = vperm.xlu0 %556, %v353
        %v558 = vpop.permute.xlu0 %557
        %v559 = vlaneseq
        %v560 = vshrl.u32 %v559, 7
        %v561 = vadd.s32 %v560, 2
        %562 = vset.pattern.permute.xlu0 %v561
        %563 = vperm.xlu0 %562, %v360
        %v564 = vpop.permute.xlu0 %563
        %v565 = vlaneseq
        %v566 = vshrl.u32 %v565, 7
        %v567 = vadd.s32 %v566, 2
        %568 = vset.pattern.permute.xlu0 %v567
        %569 = vperm.xlu0 %568, %v367
        %v570 = vpop.permute.xlu0 %569
        %v571 = vlaneseq
        %v572 = vshrl.u32 %v571, 7
        %v573 = vadd.s32 %v572, 2
        %574 = vset.pattern.permute.xlu0 %v573
        %575 = vperm.xlu0 %574, %v374
        %v576 = vpop.permute.xlu0 %575
        %v577 = vlaneseq
        %v578 = vshrl.u32 %v577, 7
        %v579 = vadd.s32 %v578, 2
        %580 = vset.pattern.permute.xlu0 %v579
        %581 = vperm.xlu0 %580, %v381
        %v582 = vpop.permute.xlu0 %581
        %v583 = vlaneseq
        %v584 = vshrl.u32 %v583, 7
        %v585 = vadd.s32 %v584, 2
        %586 = vset.pattern.permute.xlu0 %v585
        %587 = vperm.xlu0 %586, %v388
        %v588 = vpop.permute.xlu0 %587
        %v589 = vlaneseq
        %v590 = vshrl.u32 %v589, 7
        %v591 = vadd.s32 %v590, 2
        %592 = vset.pattern.permute.xlu0 %v591
        %593 = vperm.xlu0 %592, %v395
        %v594 = vpop.permute.xlu0 %593
        %v595 = vlaneseq
        %v596 = vshrl.u32 %v595, 7
        %v597 = vadd.s32 %v596, 2
        %598 = vset.pattern.permute.xlu0 %v597
        %599 = vperm.xlu0 %598, %v402
        %v600 = vpop.permute.xlu0 %599
        %v601 = vlaneseq
        %v602 = vshrl.u32 %v601, 7
        %v603 = vadd.s32 %v602, 3
        %604 = vset.pattern.permute.xlu0 %v603
        %605 = vperm.xlu0 %604, %v297
        %v606 = vpop.permute.xlu0 %605
        %v607 = vlaneseq
        %v608 = vshrl.u32 %v607, 7
        %v609 = vadd.s32 %v608, 3
        %610 = vset.pattern.permute.xlu0 %v609
        %611 = vperm.xlu0 %610, %v304
        %v612 = vpop.permute.xlu0 %611
        %v613 = vlaneseq
        %v614 = vshrl.u32 %v613, 7
        %v615 = vadd.s32 %v614, 3
        %616 = vset.pattern.permute.xlu0 %v615
        %617 = vperm.xlu0 %616, %v311
        %v618 = vpop.permute.xlu0 %617
        %v619 = vlaneseq
        %v620 = vshrl.u32 %v619, 7
        %v621 = vadd.s32 %v620, 3
        %622 = vset.pattern.permute.xlu0 %v621
        %623 = vperm.xlu0 %622, %v318
        %v624 = vpop.permute.xlu0 %623
        %v625 = vlaneseq
        %v626 = vshrl.u32 %v625, 7
        %v627 = vadd.s32 %v626, 3
        %628 = vset.pattern.permute.xlu0 %v627
        %629 = vperm.xlu0 %628, %v325
        %v630 = vpop.permute.xlu0 %629
        %v631 = vlaneseq
        %v632 = vshrl.u32 %v631, 7
        %v633 = vadd.s32 %v632, 3
        %634 = vset.pattern.permute.xlu0 %v633
        %635 = vperm.xlu0 %634, %v332
        %v636 = vpop.permute.xlu0 %635
        %v637 = vlaneseq
        %v638 = vshrl.u32 %v637, 7
        %v639 = vadd.s32 %v638, 3
        %640 = vset.pattern.permute.xlu0 %v639
        %641 = vperm.xlu0 %640, %v339
        %v642 = vpop.permute.xlu0 %641
        %v643 = vlaneseq
        %v644 = vshrl.u32 %v643, 7
        %v645 = vadd.s32 %v644, 3
        %646 = vset.pattern.permute.xlu0 %v645
        %647 = vperm.xlu0 %646, %v346
        %v648 = vpop.permute.xlu0 %647
        %v649 = vperm.slane %v251, 0
        %v650 = vlaneseq
        %v651 = vshrl.u32 %v650, 7
        %653 = vset.pattern.permute.xlu0 %v651
        %654 = vperm.xlu0 %653, %v649
        %v655 = vpop.permute.xlu0 %654
        %v656 = vperm.slane %v251, 1
        %v657 = vlaneseq
        %v658 = vshrl.u32 %v657, 7
        %660 = vset.pattern.permute.xlu0 %v658
        %661 = vperm.xlu0 %660, %v656
        %v662 = vpop.permute.xlu0 %661
        %v663 = vperm.slane %v251, 2
        %v664 = vlaneseq
        %v665 = vshrl.u32 %v664, 7
        %667 = vset.pattern.permute.xlu0 %v665
        %668 = vperm.xlu0 %667, %v663
        %v669 = vpop.permute.xlu0 %668
        %v670 = vperm.slane %v251, 3
        %v671 = vlaneseq
        %v672 = vshrl.u32 %v671, 7
        %674 = vset.pattern.permute.xlu0 %v672
        %675 = vperm.xlu0 %674, %v670
        %v676 = vpop.permute.xlu0 %675
        %v677 = vperm.slane %v252, 0
        %v678 = vlaneseq
        %v679 = vshrl.u32 %v678, 7
        %681 = vset.pattern.permute.xlu0 %v679
        %682 = vperm.xlu0 %681, %v677
        %v683 = vpop.permute.xlu0 %682
        %v684 = vperm.slane %v252, 1
        %v685 = vlaneseq
        %v686 = vshrl.u32 %v685, 7
        %688 = vset.pattern.permute.xlu0 %v686
        %689 = vperm.xlu0 %688, %v684
        %v690 = vpop.permute.xlu0 %689
        %v691 = vperm.slane %v252, 2
        %v692 = vlaneseq
        %v693 = vshrl.u32 %v692, 7
        %695 = vset.pattern.permute.xlu0 %v693
        %696 = vperm.xlu0 %695, %v691
        %v697 = vpop.permute.xlu0 %696
        %v698 = vperm.slane %v252, 3
        %v699 = vlaneseq
        %v700 = vshrl.u32 %v699, 7
        %702 = vset.pattern.permute.xlu0 %v700
        %703 = vperm.xlu0 %702, %v698
        %v704 = vpop.permute.xlu0 %703
        %v705 = vperm.slane %v255, 0
        %v706 = vlaneseq
        %v707 = vshrl.u32 %v706, 7
        %709 = vset.pattern.permute.xlu0 %v707
        %710 = vperm.xlu0 %709, %v705
        %v711 = vpop.permute.xlu0 %710
        %v712 = vperm.slane %v255, 1
        %v713 = vlaneseq
        %v714 = vshrl.u32 %v713, 7
        %716 = vset.pattern.permute.xlu0 %v714
        %717 = vperm.xlu0 %716, %v712
        %v718 = vpop.permute.xlu0 %717
        %v719 = vperm.slane %v255, 2
        %v720 = vlaneseq
        %v721 = vshrl.u32 %v720, 7
        %723 = vset.pattern.permute.xlu0 %v721
        %724 = vperm.xlu0 %723, %v719
        %v725 = vpop.permute.xlu0 %724
        %v726 = vperm.slane %v255, 3
        %v727 = vlaneseq
        %v728 = vshrl.u32 %v727, 7
        %730 = vset.pattern.permute.xlu0 %v728
        %731 = vperm.xlu0 %730, %v726
        %v732 = vpop.permute.xlu0 %731
        %v733 = vperm.slane %v256, 0
        %v734 = vlaneseq
        %v735 = vshrl.u32 %v734, 7
        %737 = vset.pattern.permute.xlu0 %v735
        %738 = vperm.xlu0 %737, %v733
        %v739 = vpop.permute.xlu0 %738
        %v740 = vperm.slane %v256, 1
        %v741 = vlaneseq
        %v742 = vshrl.u32 %v741, 7
        %744 = vset.pattern.permute.xlu0 %v742
        %745 = vperm.xlu0 %744, %v740
        %v746 = vpop.permute.xlu0 %745
        %v747 = vperm.slane %v256, 2
        %v748 = vlaneseq
        %v749 = vshrl.u32 %v748, 7
        %751 = vset.pattern.permute.xlu0 %v749
        %752 = vperm.xlu0 %751, %v747
        %v753 = vpop.permute.xlu0 %752
        %v754 = vperm.slane %v256, 3
        %v755 = vlaneseq
        %v756 = vshrl.u32 %v755, 7
        %758 = vset.pattern.permute.xlu0 %v756
        %759 = vperm.xlu0 %758, %v754
        %v760 = vpop.permute.xlu0 %759
        %v761 = vlaneseq
        %v762 = vshrl.u32 %v761, 7
        %v763 = vadd.s32 %v762, 1
        %764 = vset.pattern.permute.xlu0 %v763
        %765 = vperm.xlu0 %764, %v649
        %v766 = vpop.permute.xlu0 %765
        %v767 = vlaneseq
        %v768 = vshrl.u32 %v767, 7
        %v769 = vadd.s32 %v768, 1
        %770 = vset.pattern.permute.xlu0 %v769
        %771 = vperm.xlu0 %770, %v656
        %v772 = vpop.permute.xlu0 %771
        %v773 = vlaneseq
        %v774 = vshrl.u32 %v773, 7
        %v775 = vadd.s32 %v774, 1
        %776 = vset.pattern.permute.xlu0 %v775
        %777 = vperm.xlu0 %776, %v663
        %v778 = vpop.permute.xlu0 %777
        %v779 = vlaneseq
        %v780 = vshrl.u32 %v779, 7
        %v781 = vadd.s32 %v780, 1
        %782 = vset.pattern.permute.xlu0 %v781
        %783 = vperm.xlu0 %782, %v670
        %v784 = vpop.permute.xlu0 %783
        %v785 = vlaneseq
        %v786 = vshrl.u32 %v785, 7
        %v787 = vadd.s32 %v786, 1
        %788 = vset.pattern.permute.xlu0 %v787
        %789 = vperm.xlu0 %788, %v677
        %v790 = vpop.permute.xlu0 %789
        %v791 = vlaneseq
        %v792 = vshrl.u32 %v791, 7
        %v793 = vadd.s32 %v792, 1
        %794 = vset.pattern.permute.xlu0 %v793
        %795 = vperm.xlu0 %794, %v684
        %v796 = vpop.permute.xlu0 %795
        %v797 = vlaneseq
        %v798 = vshrl.u32 %v797, 7
        %v799 = vadd.s32 %v798, 1
        %800 = vset.pattern.permute.xlu0 %v799
        %801 = vperm.xlu0 %800, %v691
        %v802 = vpop.permute.xlu0 %801
        %v803 = vlaneseq
        %v804 = vshrl.u32 %v803, 7
        %v805 = vadd.s32 %v804, 1
        %806 = vset.pattern.permute.xlu0 %v805
        %807 = vperm.xlu0 %806, %v698
        %v808 = vpop.permute.xlu0 %807
        %v809 = vlaneseq
        %v810 = vshrl.u32 %v809, 7
        %v811 = vadd.s32 %v810, 1
        %812 = vset.pattern.permute.xlu0 %v811
        %813 = vperm.xlu0 %812, %v705
        %v814 = vpop.permute.xlu0 %813
        %v815 = vlaneseq
        %v816 = vshrl.u32 %v815, 7
        %v817 = vadd.s32 %v816, 1
        %818 = vset.pattern.permute.xlu0 %v817
        %819 = vperm.xlu0 %818, %v712
        %v820 = vpop.permute.xlu0 %819
        %v821 = vlaneseq
        %v822 = vshrl.u32 %v821, 7
        %v823 = vadd.s32 %v822, 1
        %824 = vset.pattern.permute.xlu0 %v823
        %825 = vperm.xlu0 %824, %v719
        %v826 = vpop.permute.xlu0 %825
        %v827 = vlaneseq
        %v828 = vshrl.u32 %v827, 7
        %v829 = vadd.s32 %v828, 1
        %830 = vset.pattern.permute.xlu0 %v829
        %831 = vperm.xlu0 %830, %v726
        %v832 = vpop.permute.xlu0 %831
        %v833 = vlaneseq
        %v834 = vshrl.u32 %v833, 7
        %v835 = vadd.s32 %v834, 1
        %836 = vset.pattern.permute.xlu0 %v835
        %837 = vperm.xlu0 %836, %v733
        %v838 = vpop.permute.xlu0 %837
        %v839 = vlaneseq
        %v840 = vshrl.u32 %v839, 7
        %v841 = vadd.s32 %v840, 1
        %842 = vset.pattern.permute.xlu0 %v841
        %843 = vperm.xlu0 %842, %v740
        %v844 = vpop.permute.xlu0 %843
        %v845 = vlaneseq
        %v846 = vshrl.u32 %v845, 7
        %v847 = vadd.s32 %v846, 1
        %848 = vset.pattern.permute.xlu0 %v847
        %849 = vperm.xlu0 %848, %v747
        %v850 = vpop.permute.xlu0 %849
        %v851 = vlaneseq
        %v852 = vshrl.u32 %v851, 7
        %v853 = vadd.s32 %v852, 1
        %854 = vset.pattern.permute.xlu0 %v853
        %855 = vperm.xlu0 %854, %v754
        %v856 = vpop.permute.xlu0 %855
        %v857 = vlaneseq
        %v858 = vshrl.u32 %v857, 7
        %v859 = vadd.s32 %v858, 2
        %860 = vset.pattern.permute.xlu0 %v859
        %861 = vperm.xlu0 %860, %v649
        %v862 = vpop.permute.xlu0 %861
        %v863 = vlaneseq
        %v864 = vshrl.u32 %v863, 7
        %v865 = vadd.s32 %v864, 2
        %866 = vset.pattern.permute.xlu0 %v865
        %867 = vperm.xlu0 %866, %v656
        %v868 = vpop.permute.xlu0 %867
        %v869 = vlaneseq
        %v870 = vshrl.u32 %v869, 7
        %v871 = vadd.s32 %v870, 2
        %872 = vset.pattern.permute.xlu0 %v871
        %873 = vperm.xlu0 %872, %v663
        %v874 = vpop.permute.xlu0 %873
        %v875 = vlaneseq
        %v876 = vshrl.u32 %v875, 7
        %v877 = vadd.s32 %v876, 2
        %878 = vset.pattern.permute.xlu0 %v877
        %879 = vperm.xlu0 %878, %v670
        %v880 = vpop.permute.xlu0 %879
        %v881 = vlaneseq
        %v882 = vshrl.u32 %v881, 7
        %v883 = vadd.s32 %v882, 2
        %884 = vset.pattern.permute.xlu0 %v883
        %885 = vperm.xlu0 %884, %v677
        %v886 = vpop.permute.xlu0 %885
        %v887 = vlaneseq
        %v888 = vshrl.u32 %v887, 7
        %v889 = vadd.s32 %v888, 2
        %890 = vset.pattern.permute.xlu0 %v889
        %891 = vperm.xlu0 %890, %v684
        %v892 = vpop.permute.xlu0 %891
        %v893 = vlaneseq
        %v894 = vshrl.u32 %v893, 7
        %v895 = vadd.s32 %v894, 2
        %896 = vset.pattern.permute.xlu0 %v895
        %897 = vperm.xlu0 %896, %v691
        %v898 = vpop.permute.xlu0 %897
        %v899 = vlaneseq
        %v900 = vshrl.u32 %v899, 7
        %v901 = vadd.s32 %v900, 2
        %902 = vset.pattern.permute.xlu0 %v901
        %903 = vperm.xlu0 %902, %v698
        %v904 = vpop.permute.xlu0 %903
        %v905 = vlaneseq
        %v906 = vshrl.u32 %v905, 7
        %v907 = vadd.s32 %v906, 2
        %908 = vset.pattern.permute.xlu0 %v907
        %909 = vperm.xlu0 %908, %v705
        %v910 = vpop.permute.xlu0 %909
        %v911 = vlaneseq
        %v912 = vshrl.u32 %v911, 7
        %v913 = vadd.s32 %v912, 2
        %914 = vset.pattern.permute.xlu0 %v913
        %915 = vperm.xlu0 %914, %v712
        %v916 = vpop.permute.xlu0 %915
        %v917 = vlaneseq
        %v918 = vshrl.u32 %v917, 7
        %v919 = vadd.s32 %v918, 2
        %920 = vset.pattern.permute.xlu0 %v919
        %921 = vperm.xlu0 %920, %v719
        %v922 = vpop.permute.xlu0 %921
        %v923 = vlaneseq
        %v924 = vshrl.u32 %v923, 7
        %v925 = vadd.s32 %v924, 2
        %926 = vset.pattern.permute.xlu0 %v925
        %927 = vperm.xlu0 %926, %v726
        %v928 = vpop.permute.xlu0 %927
        %v929 = vlaneseq
        %v930 = vshrl.u32 %v929, 7
        %v931 = vadd.s32 %v930, 2
        %932 = vset.pattern.permute.xlu0 %v931
        %933 = vperm.xlu0 %932, %v733
        %v934 = vpop.permute.xlu0 %933
        %v935 = vlaneseq
        %v936 = vshrl.u32 %v935, 7
        %v937 = vadd.s32 %v936, 2
        %938 = vset.pattern.permute.xlu0 %v937
        %939 = vperm.xlu0 %938, %v740
        %v940 = vpop.permute.xlu0 %939
        %v941 = vlaneseq
        %v942 = vshrl.u32 %v941, 7
        %v943 = vadd.s32 %v942, 2
        %944 = vset.pattern.permute.xlu0 %v943
        %945 = vperm.xlu0 %944, %v747
        %v946 = vpop.permute.xlu0 %945
        %v947 = vlaneseq
        %v948 = vshrl.u32 %v947, 7
        %v949 = vadd.s32 %v948, 2
        %950 = vset.pattern.permute.xlu0 %v949
        %951 = vperm.xlu0 %950, %v754
        %v952 = vpop.permute.xlu0 %951
        %v953 = vlaneseq
        %v954 = vshrl.u32 %v953, 7
        %v955 = vadd.s32 %v954, 3
        %956 = vset.pattern.permute.xlu0 %v955
        %957 = vperm.xlu0 %956, %v649
        %v958 = vpop.permute.xlu0 %957
        %v959 = vlaneseq
        %v960 = vshrl.u32 %v959, 7
        %v961 = vadd.s32 %v960, 3
        %962 = vset.pattern.permute.xlu0 %v961
        %963 = vperm.xlu0 %962, %v656
        %v964 = vpop.permute.xlu0 %963
        %v965 = vlaneseq
        %v966 = vshrl.u32 %v965, 7
        %v967 = vadd.s32 %v966, 3
        %968 = vset.pattern.permute.xlu0 %v967
        %969 = vperm.xlu0 %968, %v663
        %v970 = vpop.permute.xlu0 %969
        %v971 = vlaneseq
        %v972 = vshrl.u32 %v971, 7
        %v973 = vadd.s32 %v972, 3
        %974 = vset.pattern.permute.xlu0 %v973
        %975 = vperm.xlu0 %974, %v670
        %v976 = vpop.permute.xlu0 %975
        %v977 = vlaneseq
        %v978 = vshrl.u32 %v977, 7
        %v979 = vadd.s32 %v978, 3
        %980 = vset.pattern.permute.xlu0 %v979
        %981 = vperm.xlu0 %980, %v677
        %v982 = vpop.permute.xlu0 %981
        %v983 = vlaneseq
        %v984 = vshrl.u32 %v983, 7
        %v985 = vadd.s32 %v984, 3
        %986 = vset.pattern.permute.xlu0 %v985
        %987 = vperm.xlu0 %986, %v684
        %v988 = vpop.permute.xlu0 %987
        %v989 = vlaneseq
        %v990 = vshrl.u32 %v989, 7
        %v991 = vadd.s32 %v990, 3
        %992 = vset.pattern.permute.xlu0 %v991
        %993 = vperm.xlu0 %992, %v691
        %v994 = vpop.permute.xlu0 %993
        %v995 = vlaneseq
        %v996 = vshrl.u32 %v995, 7
        %v997 = vadd.s32 %v996, 3
        %998 = vset.pattern.permute.xlu0 %v997
        %999 = vperm.xlu0 %998, %v698
        %v1000 = vpop.permute.xlu0 %999
        %v1001 = vperm.slane %v259, 0
        %v1002 = vlaneseq
        %v1003 = vshrl.u32 %v1002, 7
        %1005 = vset.pattern.permute.xlu0 %v1003
        %1006 = vperm.xlu0 %1005, %v1001
        %v1007 = vpop.permute.xlu0 %1006
        %v1008 = vperm.slane %v259, 1
        %v1009 = vlaneseq
        %v1010 = vshrl.u32 %v1009, 7
        %1012 = vset.pattern.permute.xlu0 %v1010
        %1013 = vperm.xlu0 %1012, %v1008
        %v1014 = vpop.permute.xlu0 %1013
        %v1015 = vperm.slane %v259, 2
        %v1016 = vlaneseq
        %v1017 = vshrl.u32 %v1016, 7
        %1019 = vset.pattern.permute.xlu0 %v1017
        %1020 = vperm.xlu0 %1019, %v1015
        %v1021 = vpop.permute.xlu0 %1020
        %v1022 = vperm.slane %v259, 3
        %v1023 = vlaneseq
        %v1024 = vshrl.u32 %v1023, 7
        %1026 = vset.pattern.permute.xlu0 %v1024
        %1027 = vperm.xlu0 %1026, %v1022
        %v1028 = vpop.permute.xlu0 %1027
        %v1029 = vperm.slane %v260, 0
        %v1030 = vlaneseq
        %v1031 = vshrl.u32 %v1030, 7
        %1033 = vset.pattern.permute.xlu0 %v1031
        %1034 = vperm.xlu0 %1033, %v1029
        %v1035 = vpop.permute.xlu0 %1034
        %v1036 = vperm.slane %v260, 1
        %v1037 = vlaneseq
        %v1038 = vshrl.u32 %v1037, 7
        %1040 = vset.pattern.permute.xlu0 %v1038
        %1041 = vperm.xlu0 %1040, %v1036
        %v1042 = vpop.permute.xlu0 %1041
        %v1043 = vperm.slane %v260, 2
        %v1044 = vlaneseq
        %v1045 = vshrl.u32 %v1044, 7
        %1047 = vset.pattern.permute.xlu0 %v1045
        %1048 = vperm.xlu0 %1047, %v1043
        %v1049 = vpop.permute.xlu0 %1048
        %v1050 = vperm.slane %v260, 3
        %v1051 = vlaneseq
        %v1052 = vshrl.u32 %v1051, 7
        %1054 = vset.pattern.permute.xlu0 %v1052
        %1055 = vperm.xlu0 %1054, %v1050
        %v1056 = vpop.permute.xlu0 %1055
        %v1057 = vperm.slane %v263, 0
        %v1058 = vlaneseq
        %v1059 = vshrl.u32 %v1058, 7
        %1061 = vset.pattern.permute.xlu0 %v1059
        %1062 = vperm.xlu0 %1061, %v1057
        %v1063 = vpop.permute.xlu0 %1062
        %v1064 = vperm.slane %v263, 1
        %v1065 = vlaneseq
        %v1066 = vshrl.u32 %v1065, 7
        %1068 = vset.pattern.permute.xlu0 %v1066
        %1069 = vperm.xlu0 %1068, %v1064
        %v1070 = vpop.permute.xlu0 %1069
        %v1071 = vperm.slane %v263, 2
        %v1072 = vlaneseq
        %v1073 = vshrl.u32 %v1072, 7
        %1075 = vset.pattern.permute.xlu0 %v1073
        %1076 = vperm.xlu0 %1075, %v1071
        %v1077 = vpop.permute.xlu0 %1076
        %v1078 = vperm.slane %v263, 3
        %v1079 = vlaneseq
        %v1080 = vshrl.u32 %v1079, 7
        %1082 = vset.pattern.permute.xlu0 %v1080
        %1083 = vperm.xlu0 %1082, %v1078
        %v1084 = vpop.permute.xlu0 %1083
        %v1085 = vperm.slane %v264, 0
        %v1086 = vlaneseq
        %v1087 = vshrl.u32 %v1086, 7
        %1089 = vset.pattern.permute.xlu0 %v1087
        %1090 = vperm.xlu0 %1089, %v1085
        %v1091 = vpop.permute.xlu0 %1090
        %v1092 = vperm.slane %v264, 1
        %v1093 = vlaneseq
        %v1094 = vshrl.u32 %v1093, 7
        %1096 = vset.pattern.permute.xlu0 %v1094
        %1097 = vperm.xlu0 %1096, %v1092
        %v1098 = vpop.permute.xlu0 %1097
        %v1099 = vperm.slane %v264, 2
        %v1100 = vlaneseq
        %v1101 = vshrl.u32 %v1100, 7
        %1103 = vset.pattern.permute.xlu0 %v1101
        %1104 = vperm.xlu0 %1103, %v1099
        %v1105 = vpop.permute.xlu0 %1104
        %v1106 = vperm.slane %v264, 3
        %v1107 = vlaneseq
        %v1108 = vshrl.u32 %v1107, 7
        %1110 = vset.pattern.permute.xlu0 %v1108
        %1111 = vperm.xlu0 %1110, %v1106
        %v1112 = vpop.permute.xlu0 %1111
        %v1113 = vlaneseq
        %v1114 = vshrl.u32 %v1113, 7
        %v1115 = vadd.s32 %v1114, 1
        %1116 = vset.pattern.permute.xlu0 %v1115
        %1117 = vperm.xlu0 %1116, %v1001
        %v1118 = vpop.permute.xlu0 %1117
        %v1119 = vlaneseq
        %v1120 = vshrl.u32 %v1119, 7
        %v1121 = vadd.s32 %v1120, 1
        %1122 = vset.pattern.permute.xlu0 %v1121
        %1123 = vperm.xlu0 %1122, %v1008
        %v1124 = vpop.permute.xlu0 %1123
        %v1125 = vlaneseq
        %v1126 = vshrl.u32 %v1125, 7
        %v1127 = vadd.s32 %v1126, 1
        %1128 = vset.pattern.permute.xlu0 %v1127
        %1129 = vperm.xlu0 %1128, %v1015
        %v1130 = vpop.permute.xlu0 %1129
        %v1131 = vlaneseq
        %v1132 = vshrl.u32 %v1131, 7
        %v1133 = vadd.s32 %v1132, 1
        %1134 = vset.pattern.permute.xlu0 %v1133
        %1135 = vperm.xlu0 %1134, %v1022
        %v1136 = vpop.permute.xlu0 %1135
        %v1137 = vlaneseq
        %v1138 = vshrl.u32 %v1137, 7
        %v1139 = vadd.s32 %v1138, 1
        %1140 = vset.pattern.permute.xlu0 %v1139
        %1141 = vperm.xlu0 %1140, %v1029
        %v1142 = vpop.permute.xlu0 %1141
        %v1143 = vlaneseq
        %v1144 = vshrl.u32 %v1143, 7
        %v1145 = vadd.s32 %v1144, 1
        %1146 = vset.pattern.permute.xlu0 %v1145
        %1147 = vperm.xlu0 %1146, %v1036
        %v1148 = vpop.permute.xlu0 %1147
        %v1149 = vlaneseq
        %v1150 = vshrl.u32 %v1149, 7
        %v1151 = vadd.s32 %v1150, 1
        %1152 = vset.pattern.permute.xlu0 %v1151
        %1153 = vperm.xlu0 %1152, %v1043
        %v1154 = vpop.permute.xlu0 %1153
        %v1155 = vlaneseq
        %v1156 = vshrl.u32 %v1155, 7
        %v1157 = vadd.s32 %v1156, 1
        %1158 = vset.pattern.permute.xlu0 %v1157
        %1159 = vperm.xlu0 %1158, %v1050
        %v1160 = vpop.permute.xlu0 %1159
        %v1161 = vlaneseq
        %v1162 = vshrl.u32 %v1161, 7
        %v1163 = vadd.s32 %v1162, 1
        %1164 = vset.pattern.permute.xlu0 %v1163
        %1165 = vperm.xlu0 %1164, %v1057
        %v1166 = vpop.permute.xlu0 %1165
        %v1167 = vlaneseq
        %v1168 = vshrl.u32 %v1167, 7
        %v1169 = vadd.s32 %v1168, 1
        %1170 = vset.pattern.permute.xlu0 %v1169
        %1171 = vperm.xlu0 %1170, %v1064
        %v1172 = vpop.permute.xlu0 %1171
        %v1173 = vlaneseq
        %v1174 = vshrl.u32 %v1173, 7
        %v1175 = vadd.s32 %v1174, 1
        %1176 = vset.pattern.permute.xlu0 %v1175
        %1177 = vperm.xlu0 %1176, %v1071
        %v1178 = vpop.permute.xlu0 %1177
        %v1179 = vlaneseq
        %v1180 = vshrl.u32 %v1179, 7
        %v1181 = vadd.s32 %v1180, 1
        %1182 = vset.pattern.permute.xlu0 %v1181
        %1183 = vperm.xlu0 %1182, %v1078
        %v1184 = vpop.permute.xlu0 %1183
        %v1185 = vlaneseq
        %v1186 = vshrl.u32 %v1185, 7
        %v1187 = vadd.s32 %v1186, 1
        %1188 = vset.pattern.permute.xlu0 %v1187
        %1189 = vperm.xlu0 %1188, %v1085
        %v1190 = vpop.permute.xlu0 %1189
        %v1191 = vlaneseq
        %v1192 = vshrl.u32 %v1191, 7
        %v1193 = vadd.s32 %v1192, 1
        %1194 = vset.pattern.permute.xlu0 %v1193
        %1195 = vperm.xlu0 %1194, %v1092
        %v1196 = vpop.permute.xlu0 %1195
        %v1197 = vlaneseq
        %v1198 = vshrl.u32 %v1197, 7
        %v1199 = vadd.s32 %v1198, 1
        %1200 = vset.pattern.permute.xlu0 %v1199
        %1201 = vperm.xlu0 %1200, %v1099
        %v1202 = vpop.permute.xlu0 %1201
        %v1203 = vlaneseq
        %v1204 = vshrl.u32 %v1203, 7
        %v1205 = vadd.s32 %v1204, 1
        %1206 = vset.pattern.permute.xlu0 %v1205
        %1207 = vperm.xlu0 %1206, %v1106
        %v1208 = vpop.permute.xlu0 %1207
        %v1209 = vlaneseq
        %v1210 = vshrl.u32 %v1209, 7
        %v1211 = vadd.s32 %v1210, 2
        %1212 = vset.pattern.permute.xlu0 %v1211
        %1213 = vperm.xlu0 %1212, %v1001
        %v1214 = vpop.permute.xlu0 %1213
        %v1215 = vlaneseq
        %v1216 = vshrl.u32 %v1215, 7
        %v1217 = vadd.s32 %v1216, 2
        %1218 = vset.pattern.permute.xlu0 %v1217
        %1219 = vperm.xlu0 %1218, %v1008
        %v1220 = vpop.permute.xlu0 %1219
        %v1221 = vlaneseq
        %v1222 = vshrl.u32 %v1221, 7
        %v1223 = vadd.s32 %v1222, 2
        %1224 = vset.pattern.permute.xlu0 %v1223
        %1225 = vperm.xlu0 %1224, %v1015
        %v1226 = vpop.permute.xlu0 %1225
        %v1227 = vlaneseq
        %v1228 = vshrl.u32 %v1227, 7
        %v1229 = vadd.s32 %v1228, 2
        %1230 = vset.pattern.permute.xlu0 %v1229
        %1231 = vperm.xlu0 %1230, %v1022
        %v1232 = vpop.permute.xlu0 %1231
        %v1233 = vlaneseq
        %v1234 = vshrl.u32 %v1233, 7
        %v1235 = vadd.s32 %v1234, 2
        %1236 = vset.pattern.permute.xlu0 %v1235
        %1237 = vperm.xlu0 %1236, %v1029
        %v1238 = vpop.permute.xlu0 %1237
        %v1239 = vlaneseq
        %v1240 = vshrl.u32 %v1239, 7
        %v1241 = vadd.s32 %v1240, 2
        %1242 = vset.pattern.permute.xlu0 %v1241
        %1243 = vperm.xlu0 %1242, %v1036
        %v1244 = vpop.permute.xlu0 %1243
        %v1245 = vlaneseq
        %v1246 = vshrl.u32 %v1245, 7
        %v1247 = vadd.s32 %v1246, 2
        %1248 = vset.pattern.permute.xlu0 %v1247
        %1249 = vperm.xlu0 %1248, %v1043
        %v1250 = vpop.permute.xlu0 %1249
        %v1251 = vlaneseq
        %v1252 = vshrl.u32 %v1251, 7
        %v1253 = vadd.s32 %v1252, 2
        %1254 = vset.pattern.permute.xlu0 %v1253
        %1255 = vperm.xlu0 %1254, %v1050
        %v1256 = vpop.permute.xlu0 %1255
        %v1257 = vlaneseq
        %v1258 = vshrl.u32 %v1257, 7
        %v1259 = vadd.s32 %v1258, 2
        %1260 = vset.pattern.permute.xlu0 %v1259
        %1261 = vperm.xlu0 %1260, %v1057
        %v1262 = vpop.permute.xlu0 %1261
        %v1263 = vlaneseq
        %v1264 = vshrl.u32 %v1263, 7
        %v1265 = vadd.s32 %v1264, 2
        %1266 = vset.pattern.permute.xlu0 %v1265
        %1267 = vperm.xlu0 %1266, %v1064
        %v1268 = vpop.permute.xlu0 %1267
        %v1269 = vlaneseq
        %v1270 = vshrl.u32 %v1269, 7
        %v1271 = vadd.s32 %v1270, 2
        %1272 = vset.pattern.permute.xlu0 %v1271
        %1273 = vperm.xlu0 %1272, %v1071
        %v1274 = vpop.permute.xlu0 %1273
        %v1275 = vlaneseq
        %v1276 = vshrl.u32 %v1275, 7
        %v1277 = vadd.s32 %v1276, 2
        %1278 = vset.pattern.permute.xlu0 %v1277
        %1279 = vperm.xlu0 %1278, %v1078
        %v1280 = vpop.permute.xlu0 %1279
        %v1281 = vlaneseq
        %v1282 = vshrl.u32 %v1281, 7
        %v1283 = vadd.s32 %v1282, 2
        %1284 = vset.pattern.permute.xlu0 %v1283
        %1285 = vperm.xlu0 %1284, %v1085
        %v1286 = vpop.permute.xlu0 %1285
        %v1287 = vlaneseq
        %v1288 = vshrl.u32 %v1287, 7
        %v1289 = vadd.s32 %v1288, 2
        %1290 = vset.pattern.permute.xlu0 %v1289
        %1291 = vperm.xlu0 %1290, %v1092
        %v1292 = vpop.permute.xlu0 %1291
        %v1293 = vlaneseq
        %v1294 = vshrl.u32 %v1293, 7
        %v1295 = vadd.s32 %v1294, 2
        %1296 = vset.pattern.permute.xlu0 %v1295
        %1297 = vperm.xlu0 %1296, %v1099
        %v1298 = vpop.permute.xlu0 %1297
        %v1299 = vlaneseq
        %v1300 = vshrl.u32 %v1299, 7
        %v1301 = vadd.s32 %v1300, 2
        %1302 = vset.pattern.permute.xlu0 %v1301
        %1303 = vperm.xlu0 %1302, %v1106
        %v1304 = vpop.permute.xlu0 %1303
        %v1305 = vlaneseq
        %v1306 = vshrl.u32 %v1305, 7
        %v1307 = vadd.s32 %v1306, 3
        %1308 = vset.pattern.permute.xlu0 %v1307
        %1309 = vperm.xlu0 %1308, %v1001
        %v1310 = vpop.permute.xlu0 %1309
        %v1311 = vlaneseq
        %v1312 = vshrl.u32 %v1311, 7
        %v1313 = vadd.s32 %v1312, 3
        %1314 = vset.pattern.permute.xlu0 %v1313
        %1315 = vperm.xlu0 %1314, %v1008
        %v1316 = vpop.permute.xlu0 %1315
        %v1317 = vlaneseq
        %v1318 = vshrl.u32 %v1317, 7
        %v1319 = vadd.s32 %v1318, 3
        %1320 = vset.pattern.permute.xlu0 %v1319
        %1321 = vperm.xlu0 %1320, %v1015
        %v1322 = vpop.permute.xlu0 %1321
        %v1323 = vlaneseq
        %v1324 = vshrl.u32 %v1323, 7
        %v1325 = vadd.s32 %v1324, 3
        %1326 = vset.pattern.permute.xlu0 %v1325
        %1327 = vperm.xlu0 %1326, %v1022
        %v1328 = vpop.permute.xlu0 %1327
        %v1329 = vlaneseq
        %v1330 = vshrl.u32 %v1329, 7
        %v1331 = vadd.s32 %v1330, 3
        %1332 = vset.pattern.permute.xlu0 %v1331
        %1333 = vperm.xlu0 %1332, %v1029
        %v1334 = vpop.permute.xlu0 %1333
        %v1335 = vlaneseq
        %v1336 = vshrl.u32 %v1335, 7
        %v1337 = vadd.s32 %v1336, 3
        %1338 = vset.pattern.permute.xlu0 %v1337
        %1339 = vperm.xlu0 %1338, %v1036
        %v1340 = vpop.permute.xlu0 %1339
        %v1341 = vlaneseq
        %v1342 = vshrl.u32 %v1341, 7
        %v1343 = vadd.s32 %v1342, 3
        %1344 = vset.pattern.permute.xlu0 %v1343
        %1345 = vperm.xlu0 %1344, %v1043
        %v1346 = vpop.permute.xlu0 %1345
        %v1347 = vlaneseq
        %v1348 = vshrl.u32 %v1347, 7
        %v1349 = vadd.s32 %v1348, 3
        %1350 = vset.pattern.permute.xlu0 %v1349
        %1351 = vperm.xlu0 %1350, %v1050
        %v1352 = vpop.permute.xlu0 %1351
        %v1353 = vperm.slane %v267, 0
        %v1354 = vlaneseq
        %v1355 = vshrl.u32 %v1354, 7
        %1357 = vset.pattern.permute.xlu0 %v1355
        %1358 = vperm.xlu0 %1357, %v1353
        %v1359 = vpop.permute.xlu0 %1358
        %v1360 = vperm.slane %v267, 1
        %v1361 = vlaneseq
        %v1362 = vshrl.u32 %v1361, 7
        %1364 = vset.pattern.permute.xlu0 %v1362
        %1365 = vperm.xlu0 %1364, %v1360
        %v1366 = vpop.permute.xlu0 %1365
        %v1367 = vperm.slane %v267, 2
        %v1368 = vlaneseq
        %v1369 = vshrl.u32 %v1368, 7
        %1371 = vset.pattern.permute.xlu0 %v1369
        %1372 = vperm.xlu0 %1371, %v1367
        %v1373 = vpop.permute.xlu0 %1372
        %v1374 = vperm.slane %v267, 3
        %v1375 = vlaneseq
        %v1376 = vshrl.u32 %v1375, 7
        %1378 = vset.pattern.permute.xlu0 %v1376
        %1379 = vperm.xlu0 %1378, %v1374
        %v1380 = vpop.permute.xlu0 %1379
        %v1381 = vperm.slane %v268, 0
        %v1382 = vlaneseq
        %v1383 = vshrl.u32 %v1382, 7
        %1385 = vset.pattern.permute.xlu0 %v1383
        %1386 = vperm.xlu0 %1385, %v1381
        %v1387 = vpop.permute.xlu0 %1386
        %v1388 = vperm.slane %v268, 1
        %v1389 = vlaneseq
        %v1390 = vshrl.u32 %v1389, 7
        %1392 = vset.pattern.permute.xlu0 %v1390
        %1393 = vperm.xlu0 %1392, %v1388
        %v1394 = vpop.permute.xlu0 %1393
        %v1395 = vperm.slane %v268, 2
        %v1396 = vlaneseq
        %v1397 = vshrl.u32 %v1396, 7
        %1399 = vset.pattern.permute.xlu0 %v1397
        %1400 = vperm.xlu0 %1399, %v1395
        %v1401 = vpop.permute.xlu0 %1400
        %v1402 = vperm.slane %v268, 3
        %v1403 = vlaneseq
        %v1404 = vshrl.u32 %v1403, 7
        %1406 = vset.pattern.permute.xlu0 %v1404
        %1407 = vperm.xlu0 %1406, %v1402
        %v1408 = vpop.permute.xlu0 %1407
        %v1409 = vperm.slane %v271, 0
        %v1410 = vlaneseq
        %v1411 = vshrl.u32 %v1410, 7
        %1413 = vset.pattern.permute.xlu0 %v1411
        %1414 = vperm.xlu0 %1413, %v1409
        %v1415 = vpop.permute.xlu0 %1414
        %v1416 = vperm.slane %v271, 1
        %v1417 = vlaneseq
        %v1418 = vshrl.u32 %v1417, 7
        %1420 = vset.pattern.permute.xlu0 %v1418
        %1421 = vperm.xlu0 %1420, %v1416
        %v1422 = vpop.permute.xlu0 %1421
        %v1423 = vperm.slane %v271, 2
        %v1424 = vlaneseq
        %v1425 = vshrl.u32 %v1424, 7
        %1427 = vset.pattern.permute.xlu0 %v1425
        %1428 = vperm.xlu0 %1427, %v1423
        %v1429 = vpop.permute.xlu0 %1428
        %v1430 = vperm.slane %v271, 3
        %v1431 = vlaneseq
        %v1432 = vshrl.u32 %v1431, 7
        %1434 = vset.pattern.permute.xlu0 %v1432
        %1435 = vperm.xlu0 %1434, %v1430
        %v1436 = vpop.permute.xlu0 %1435
        %v1437 = vperm.slane %v272, 0
        %v1438 = vlaneseq
        %v1439 = vshrl.u32 %v1438, 7
        %1441 = vset.pattern.permute.xlu0 %v1439
        %1442 = vperm.xlu0 %1441, %v1437
        %v1443 = vpop.permute.xlu0 %1442
        %v1444 = vperm.slane %v272, 1
        %v1445 = vlaneseq
        %v1446 = vshrl.u32 %v1445, 7
        %1448 = vset.pattern.permute.xlu0 %v1446
        %1449 = vperm.xlu0 %1448, %v1444
        %v1450 = vpop.permute.xlu0 %1449
        %v1451 = vperm.slane %v272, 2
        %v1452 = vlaneseq
        %v1453 = vshrl.u32 %v1452, 7
        %1455 = vset.pattern.permute.xlu0 %v1453
        %1456 = vperm.xlu0 %1455, %v1451
        %v1457 = vpop.permute.xlu0 %1456
        %v1458 = vperm.slane %v272, 3
        %v1459 = vlaneseq
        %v1460 = vshrl.u32 %v1459, 7
        %1462 = vset.pattern.permute.xlu0 %v1460
        %1463 = vperm.xlu0 %1462, %v1458
        %v1464 = vpop.permute.xlu0 %1463
        %v1465 = vlaneseq
        %v1466 = vshrl.u32 %v1465, 7
        %v1467 = vadd.s32 %v1466, 1
        %1468 = vset.pattern.permute.xlu0 %v1467
        %1469 = vperm.xlu0 %1468, %v1353
        %v1470 = vpop.permute.xlu0 %1469
        %v1471 = vlaneseq
        %v1472 = vshrl.u32 %v1471, 7
        %v1473 = vadd.s32 %v1472, 1
        %1474 = vset.pattern.permute.xlu0 %v1473
        %1475 = vperm.xlu0 %1474, %v1360
        %v1476 = vpop.permute.xlu0 %1475
        %v1477 = vlaneseq
        %v1478 = vshrl.u32 %v1477, 7
        %v1479 = vadd.s32 %v1478, 1
        %1480 = vset.pattern.permute.xlu0 %v1479
        %1481 = vperm.xlu0 %1480, %v1367
        %v1482 = vpop.permute.xlu0 %1481
        %v1483 = vlaneseq
        %v1484 = vshrl.u32 %v1483, 7
        %v1485 = vadd.s32 %v1484, 1
        %1486 = vset.pattern.permute.xlu0 %v1485
        %1487 = vperm.xlu0 %1486, %v1374
        %v1488 = vpop.permute.xlu0 %1487
        %v1489 = vlaneseq
        %v1490 = vshrl.u32 %v1489, 7
        %v1491 = vadd.s32 %v1490, 1
        %1492 = vset.pattern.permute.xlu0 %v1491
        %1493 = vperm.xlu0 %1492, %v1381
        %v1494 = vpop.permute.xlu0 %1493
        %v1495 = vlaneseq
        %v1496 = vshrl.u32 %v1495, 7
        %v1497 = vadd.s32 %v1496, 1
        %1498 = vset.pattern.permute.xlu0 %v1497
        %1499 = vperm.xlu0 %1498, %v1388
        %v1500 = vpop.permute.xlu0 %1499
        %v1501 = vlaneseq
        %v1502 = vshrl.u32 %v1501, 7
        %v1503 = vadd.s32 %v1502, 1
        %1504 = vset.pattern.permute.xlu0 %v1503
        %1505 = vperm.xlu0 %1504, %v1395
        %v1506 = vpop.permute.xlu0 %1505
        %v1507 = vlaneseq
        %v1508 = vshrl.u32 %v1507, 7
        %v1509 = vadd.s32 %v1508, 1
        %1510 = vset.pattern.permute.xlu0 %v1509
        %1511 = vperm.xlu0 %1510, %v1402
        %v1512 = vpop.permute.xlu0 %1511
        %v1513 = vlaneseq
        %v1514 = vshrl.u32 %v1513, 7
        %v1515 = vadd.s32 %v1514, 1
        %1516 = vset.pattern.permute.xlu0 %v1515
        %1517 = vperm.xlu0 %1516, %v1409
        %v1518 = vpop.permute.xlu0 %1517
        %v1519 = vlaneseq
        %v1520 = vshrl.u32 %v1519, 7
        %v1521 = vadd.s32 %v1520, 1
        %1522 = vset.pattern.permute.xlu0 %v1521
        %1523 = vperm.xlu0 %1522, %v1416
        %v1524 = vpop.permute.xlu0 %1523
        %v1525 = vlaneseq
        %v1526 = vshrl.u32 %v1525, 7
        %v1527 = vadd.s32 %v1526, 1
        %1528 = vset.pattern.permute.xlu0 %v1527
        %1529 = vperm.xlu0 %1528, %v1423
        %v1530 = vpop.permute.xlu0 %1529
        %v1531 = vlaneseq
        %v1532 = vshrl.u32 %v1531, 7
        %v1533 = vadd.s32 %v1532, 1
        %1534 = vset.pattern.permute.xlu0 %v1533
        %1535 = vperm.xlu0 %1534, %v1430
        %v1536 = vpop.permute.xlu0 %1535
        %v1537 = vlaneseq
        %v1538 = vshrl.u32 %v1537, 7
        %v1539 = vadd.s32 %v1538, 1
        %1540 = vset.pattern.permute.xlu0 %v1539
        %1541 = vperm.xlu0 %1540, %v1437
        %v1542 = vpop.permute.xlu0 %1541
        %v1543 = vlaneseq
        %v1544 = vshrl.u32 %v1543, 7
        %v1545 = vadd.s32 %v1544, 1
        %1546 = vset.pattern.permute.xlu0 %v1545
        %1547 = vperm.xlu0 %1546, %v1444
        %v1548 = vpop.permute.xlu0 %1547
        %v1549 = vlaneseq
        %v1550 = vshrl.u32 %v1549, 7
        %v1551 = vadd.s32 %v1550, 1
        %1552 = vset.pattern.permute.xlu0 %v1551
        %1553 = vperm.xlu0 %1552, %v1451
        %v1554 = vpop.permute.xlu0 %1553
        %v1555 = vlaneseq
        %v1556 = vshrl.u32 %v1555, 7
        %v1557 = vadd.s32 %v1556, 1
        %1558 = vset.pattern.permute.xlu0 %v1557
        %1559 = vperm.xlu0 %1558, %v1458
        %v1560 = vpop.permute.xlu0 %1559
        %v1561 = vlaneseq
        %v1562 = vshrl.u32 %v1561, 7
        %v1563 = vadd.s32 %v1562, 2
        %1564 = vset.pattern.permute.xlu0 %v1563
        %1565 = vperm.xlu0 %1564, %v1353
        %v1566 = vpop.permute.xlu0 %1565
        %v1567 = vlaneseq
        %v1568 = vshrl.u32 %v1567, 7
        %v1569 = vadd.s32 %v1568, 2
        %1570 = vset.pattern.permute.xlu0 %v1569
        %1571 = vperm.xlu0 %1570, %v1360
        %v1572 = vpop.permute.xlu0 %1571
        %v1573 = vlaneseq
        %v1574 = vshrl.u32 %v1573, 7
        %v1575 = vadd.s32 %v1574, 2
        %1576 = vset.pattern.permute.xlu0 %v1575
        %1577 = vperm.xlu0 %1576, %v1367
        %v1578 = vpop.permute.xlu0 %1577
        %v1579 = vlaneseq
        %v1580 = vshrl.u32 %v1579, 7
        %v1581 = vadd.s32 %v1580, 2
        %1582 = vset.pattern.permute.xlu0 %v1581
        %1583 = vperm.xlu0 %1582, %v1374
        %v1584 = vpop.permute.xlu0 %1583
        %v1585 = vlaneseq
        %v1586 = vshrl.u32 %v1585, 7
        %v1587 = vadd.s32 %v1586, 2
        %1588 = vset.pattern.permute.xlu0 %v1587
        %1589 = vperm.xlu0 %1588, %v1381
        %v1590 = vpop.permute.xlu0 %1589
        %v1591 = vlaneseq
        %v1592 = vshrl.u32 %v1591, 7
        %v1593 = vadd.s32 %v1592, 2
        %1594 = vset.pattern.permute.xlu0 %v1593
        %1595 = vperm.xlu0 %1594, %v1388
        %v1596 = vpop.permute.xlu0 %1595
        %v1597 = vlaneseq
        %v1598 = vshrl.u32 %v1597, 7
        %v1599 = vadd.s32 %v1598, 2
        %1600 = vset.pattern.permute.xlu0 %v1599
        %1601 = vperm.xlu0 %1600, %v1395
        %v1602 = vpop.permute.xlu0 %1601
        %v1603 = vlaneseq
        %v1604 = vshrl.u32 %v1603, 7
        %v1605 = vadd.s32 %v1604, 2
        %1606 = vset.pattern.permute.xlu0 %v1605
        %1607 = vperm.xlu0 %1606, %v1402
        %v1608 = vpop.permute.xlu0 %1607
        %v1609 = vlaneseq
        %v1610 = vshrl.u32 %v1609, 7
        %v1611 = vadd.s32 %v1610, 2
        %1612 = vset.pattern.permute.xlu0 %v1611
        %1613 = vperm.xlu0 %1612, %v1409
        %v1614 = vpop.permute.xlu0 %1613
        %v1615 = vlaneseq
        %v1616 = vshrl.u32 %v1615, 7
        %v1617 = vadd.s32 %v1616, 2
        %1618 = vset.pattern.permute.xlu0 %v1617
        %1619 = vperm.xlu0 %1618, %v1416
        %v1620 = vpop.permute.xlu0 %1619
        %v1621 = vlaneseq
        %v1622 = vshrl.u32 %v1621, 7
        %v1623 = vadd.s32 %v1622, 2
        %1624 = vset.pattern.permute.xlu0 %v1623
        %1625 = vperm.xlu0 %1624, %v1423
        %v1626 = vpop.permute.xlu0 %1625
        %v1627 = vlaneseq
        %v1628 = vshrl.u32 %v1627, 7
        %v1629 = vadd.s32 %v1628, 2
        %1630 = vset.pattern.permute.xlu0 %v1629
        %1631 = vperm.xlu0 %1630, %v1430
        %v1632 = vpop.permute.xlu0 %1631
        %v1633 = vlaneseq
        %v1634 = vshrl.u32 %v1633, 7
        %v1635 = vadd.s32 %v1634, 2
        %1636 = vset.pattern.permute.xlu0 %v1635
        %1637 = vperm.xlu0 %1636, %v1437
        %v1638 = vpop.permute.xlu0 %1637
        %v1639 = vlaneseq
        %v1640 = vshrl.u32 %v1639, 7
        %v1641 = vadd.s32 %v1640, 2
        %1642 = vset.pattern.permute.xlu0 %v1641
        %1643 = vperm.xlu0 %1642, %v1444
        %v1644 = vpop.permute.xlu0 %1643
        %v1645 = vlaneseq
        %v1646 = vshrl.u32 %v1645, 7
        %v1647 = vadd.s32 %v1646, 2
        %1648 = vset.pattern.permute.xlu0 %v1647
        %1649 = vperm.xlu0 %1648, %v1451
        %v1650 = vpop.permute.xlu0 %1649
        %v1651 = vlaneseq
        %v1652 = vshrl.u32 %v1651, 7
        %v1653 = vadd.s32 %v1652, 2
        %1654 = vset.pattern.permute.xlu0 %v1653
        %1655 = vperm.xlu0 %1654, %v1458
        %v1656 = vpop.permute.xlu0 %1655
        %v1657 = vlaneseq
        %v1658 = vshrl.u32 %v1657, 7
        %v1659 = vadd.s32 %v1658, 3
        %1660 = vset.pattern.permute.xlu0 %v1659
        %1661 = vperm.xlu0 %1660, %v1353
        %v1662 = vpop.permute.xlu0 %1661
        %v1663 = vlaneseq
        %v1664 = vshrl.u32 %v1663, 7
        %v1665 = vadd.s32 %v1664, 3
        %1666 = vset.pattern.permute.xlu0 %v1665
        %1667 = vperm.xlu0 %1666, %v1360
        %v1668 = vpop.permute.xlu0 %1667
        %v1669 = vlaneseq
        %v1670 = vshrl.u32 %v1669, 7
        %v1671 = vadd.s32 %v1670, 3
        %1672 = vset.pattern.permute.xlu0 %v1671
        %1673 = vperm.xlu0 %1672, %v1367
        %v1674 = vpop.permute.xlu0 %1673
        %v1675 = vlaneseq
        %v1676 = vshrl.u32 %v1675, 7
        %v1677 = vadd.s32 %v1676, 3
        %1678 = vset.pattern.permute.xlu0 %v1677
        %1679 = vperm.xlu0 %1678, %v1374
        %v1680 = vpop.permute.xlu0 %1679
        %v1681 = vlaneseq
        %v1682 = vshrl.u32 %v1681, 7
        %v1683 = vadd.s32 %v1682, 3
        %1684 = vset.pattern.permute.xlu0 %v1683
        %1685 = vperm.xlu0 %1684, %v1381
        %v1686 = vpop.permute.xlu0 %1685
        %v1687 = vlaneseq
        %v1688 = vshrl.u32 %v1687, 7
        %v1689 = vadd.s32 %v1688, 3
        %1690 = vset.pattern.permute.xlu0 %v1689
        %1691 = vperm.xlu0 %1690, %v1388
        %v1692 = vpop.permute.xlu0 %1691
        %v1693 = vlaneseq
        %v1694 = vshrl.u32 %v1693, 7
        %v1695 = vadd.s32 %v1694, 3
        %1696 = vset.pattern.permute.xlu0 %v1695
        %1697 = vperm.xlu0 %1696, %v1395
        %v1698 = vpop.permute.xlu0 %1697
        %v1699 = vlaneseq
        %v1700 = vshrl.u32 %v1699, 7
        %v1701 = vadd.s32 %v1700, 3
        %1702 = vset.pattern.permute.xlu0 %v1701
        %1703 = vperm.xlu0 %1702, %v1402
        %v1704 = vpop.permute.xlu0 %1703
        %v1705 = vperm.slane %v275, 0
        %v1706 = vlaneseq
        %v1707 = vshrl.u32 %v1706, 7
        %1709 = vset.pattern.permute.xlu0 %v1707
        %1710 = vperm.xlu0 %1709, %v1705
        %v1711 = vpop.permute.xlu0 %1710
        %v1712 = vperm.slane %v275, 1
        %v1713 = vlaneseq
        %v1714 = vshrl.u32 %v1713, 7
        %1716 = vset.pattern.permute.xlu0 %v1714
        %1717 = vperm.xlu0 %1716, %v1712
        %v1718 = vpop.permute.xlu0 %1717
        %v1719 = vperm.slane %v275, 2
        %v1720 = vlaneseq
        %v1721 = vshrl.u32 %v1720, 7
        %1723 = vset.pattern.permute.xlu0 %v1721
        %1724 = vperm.xlu0 %1723, %v1719
        %v1725 = vpop.permute.xlu0 %1724
        %v1726 = vperm.slane %v275, 3
        %v1727 = vlaneseq
        %v1728 = vshrl.u32 %v1727, 7
        %1730 = vset.pattern.permute.xlu0 %v1728
        %1731 = vperm.xlu0 %1730, %v1726
        %v1732 = vpop.permute.xlu0 %1731
        %v1733 = vperm.slane %v276, 0
        %v1734 = vlaneseq
        %v1735 = vshrl.u32 %v1734, 7
        %1737 = vset.pattern.permute.xlu0 %v1735
        %1738 = vperm.xlu0 %1737, %v1733
        %v1739 = vpop.permute.xlu0 %1738
        %v1740 = vperm.slane %v276, 1
        %v1741 = vlaneseq
        %v1742 = vshrl.u32 %v1741, 7
        %1744 = vset.pattern.permute.xlu0 %v1742
        %1745 = vperm.xlu0 %1744, %v1740
        %v1746 = vpop.permute.xlu0 %1745
        %v1747 = vperm.slane %v276, 2
        %v1748 = vlaneseq
        %v1749 = vshrl.u32 %v1748, 7
        %1751 = vset.pattern.permute.xlu0 %v1749
        %1752 = vperm.xlu0 %1751, %v1747
        %v1753 = vpop.permute.xlu0 %1752
        %v1754 = vperm.slane %v276, 3
        %v1755 = vlaneseq
        %v1756 = vshrl.u32 %v1755, 7
        %1758 = vset.pattern.permute.xlu0 %v1756
        %1759 = vperm.xlu0 %1758, %v1754
        %v1760 = vpop.permute.xlu0 %1759
        %v1761 = vperm.slane %v279, 0
        %v1762 = vlaneseq
        %v1763 = vshrl.u32 %v1762, 7
        %1765 = vset.pattern.permute.xlu0 %v1763
        %1766 = vperm.xlu0 %1765, %v1761
        %v1767 = vpop.permute.xlu0 %1766
        %v1768 = vperm.slane %v279, 1
        %v1769 = vlaneseq
        %v1770 = vshrl.u32 %v1769, 7
        %1772 = vset.pattern.permute.xlu0 %v1770
        %1773 = vperm.xlu0 %1772, %v1768
        %v1774 = vpop.permute.xlu0 %1773
        %v1775 = vperm.slane %v279, 2
        %v1776 = vlaneseq
        %v1777 = vshrl.u32 %v1776, 7
        %1779 = vset.pattern.permute.xlu0 %v1777
        %1780 = vperm.xlu0 %1779, %v1775
        %v1781 = vpop.permute.xlu0 %1780
        %v1782 = vperm.slane %v279, 3
        %v1783 = vlaneseq
        %v1784 = vshrl.u32 %v1783, 7
        %1786 = vset.pattern.permute.xlu0 %v1784
        %1787 = vperm.xlu0 %1786, %v1782
        %v1788 = vpop.permute.xlu0 %1787
        %v1789 = vperm.slane %v280, 0
        %v1790 = vlaneseq
        %v1791 = vshrl.u32 %v1790, 7
        %1793 = vset.pattern.permute.xlu0 %v1791
        %1794 = vperm.xlu0 %1793, %v1789
        %v1795 = vpop.permute.xlu0 %1794
        %v1796 = vperm.slane %v280, 1
        %v1797 = vlaneseq
        %v1798 = vshrl.u32 %v1797, 7
        %1800 = vset.pattern.permute.xlu0 %v1798
        %1801 = vperm.xlu0 %1800, %v1796
        %v1802 = vpop.permute.xlu0 %1801
        %v1803 = vperm.slane %v280, 2
        %v1804 = vlaneseq
        %v1805 = vshrl.u32 %v1804, 7
        %1807 = vset.pattern.permute.xlu0 %v1805
        %1808 = vperm.xlu0 %1807, %v1803
        %v1809 = vpop.permute.xlu0 %1808
        %v1810 = vperm.slane %v280, 3
        %v1811 = vlaneseq
        %v1812 = vshrl.u32 %v1811, 7
        %1814 = vset.pattern.permute.xlu0 %v1812
        %1815 = vperm.xlu0 %1814, %v1810
        %v1816 = vpop.permute.xlu0 %1815
        %v1817 = vlaneseq
        %v1818 = vshrl.u32 %v1817, 7
        %v1819 = vadd.s32 %v1818, 1
        %1820 = vset.pattern.permute.xlu0 %v1819
        %1821 = vperm.xlu0 %1820, %v1705
        %v1822 = vpop.permute.xlu0 %1821
        %v1823 = vlaneseq
        %v1824 = vshrl.u32 %v1823, 7
        %v1825 = vadd.s32 %v1824, 1
        %1826 = vset.pattern.permute.xlu0 %v1825
        %1827 = vperm.xlu0 %1826, %v1712
        %v1828 = vpop.permute.xlu0 %1827
        %v1829 = vlaneseq
        %v1830 = vshrl.u32 %v1829, 7
        %v1831 = vadd.s32 %v1830, 1
        %1832 = vset.pattern.permute.xlu0 %v1831
        %1833 = vperm.xlu0 %1832, %v1719
        %v1834 = vpop.permute.xlu0 %1833
        %v1835 = vlaneseq
        %v1836 = vshrl.u32 %v1835, 7
        %v1837 = vadd.s32 %v1836, 1
        %1838 = vset.pattern.permute.xlu0 %v1837
        %1839 = vperm.xlu0 %1838, %v1726
        %v1840 = vpop.permute.xlu0 %1839
        %v1841 = vlaneseq
        %v1842 = vshrl.u32 %v1841, 7
        %v1843 = vadd.s32 %v1842, 1
        %1844 = vset.pattern.permute.xlu0 %v1843
        %1845 = vperm.xlu0 %1844, %v1733
        %v1846 = vpop.permute.xlu0 %1845
        %v1847 = vlaneseq
        %v1848 = vshrl.u32 %v1847, 7
        %v1849 = vadd.s32 %v1848, 1
        %1850 = vset.pattern.permute.xlu0 %v1849
        %1851 = vperm.xlu0 %1850, %v1740
        %v1852 = vpop.permute.xlu0 %1851
        %v1853 = vlaneseq
        %v1854 = vshrl.u32 %v1853, 7
        %v1855 = vadd.s32 %v1854, 1
        %1856 = vset.pattern.permute.xlu0 %v1855
        %1857 = vperm.xlu0 %1856, %v1747
        %v1858 = vpop.permute.xlu0 %1857
        %v1859 = vlaneseq
        %v1860 = vshrl.u32 %v1859, 7
        %v1861 = vadd.s32 %v1860, 1
        %1862 = vset.pattern.permute.xlu0 %v1861
        %1863 = vperm.xlu0 %1862, %v1754
        %v1864 = vpop.permute.xlu0 %1863
        %v1865 = vlaneseq
        %v1866 = vshrl.u32 %v1865, 7
        %v1867 = vadd.s32 %v1866, 1
        %1868 = vset.pattern.permute.xlu0 %v1867
        %1869 = vperm.xlu0 %1868, %v1761
        %v1870 = vpop.permute.xlu0 %1869
        %v1871 = vlaneseq
        %v1872 = vshrl.u32 %v1871, 7
        %v1873 = vadd.s32 %v1872, 1
        %1874 = vset.pattern.permute.xlu0 %v1873
        %1875 = vperm.xlu0 %1874, %v1768
        %v1876 = vpop.permute.xlu0 %1875
        %v1877 = vlaneseq
        %v1878 = vshrl.u32 %v1877, 7
        %v1879 = vadd.s32 %v1878, 1
        %1880 = vset.pattern.permute.xlu0 %v1879
        %1881 = vperm.xlu0 %1880, %v1775
        %v1882 = vpop.permute.xlu0 %1881
        %v1883 = vlaneseq
        %v1884 = vshrl.u32 %v1883, 7
        %v1885 = vadd.s32 %v1884, 1
        %1886 = vset.pattern.permute.xlu0 %v1885
        %1887 = vperm.xlu0 %1886, %v1782
        %v1888 = vpop.permute.xlu0 %1887
        %v1889 = vlaneseq
        %v1890 = vshrl.u32 %v1889, 7
        %v1891 = vadd.s32 %v1890, 1
        %1892 = vset.pattern.permute.xlu0 %v1891
        %1893 = vperm.xlu0 %1892, %v1789
        %v1894 = vpop.permute.xlu0 %1893
        %v1895 = vlaneseq
        %v1896 = vshrl.u32 %v1895, 7
        %v1897 = vadd.s32 %v1896, 1
        %1898 = vset.pattern.permute.xlu0 %v1897
        %1899 = vperm.xlu0 %1898, %v1796
        %v1900 = vpop.permute.xlu0 %1899
        %v1901 = vlaneseq
        %v1902 = vshrl.u32 %v1901, 7
        %v1903 = vadd.s32 %v1902, 1
        %1904 = vset.pattern.permute.xlu0 %v1903
        %1905 = vperm.xlu0 %1904, %v1803
        %v1906 = vpop.permute.xlu0 %1905
        %v1907 = vlaneseq
        %v1908 = vshrl.u32 %v1907, 7
        %v1909 = vadd.s32 %v1908, 1
        %1910 = vset.pattern.permute.xlu0 %v1909
        %1911 = vperm.xlu0 %1910, %v1810
        %v1912 = vpop.permute.xlu0 %1911
        %v1913 = vlaneseq
        %v1914 = vshrl.u32 %v1913, 7
        %v1915 = vadd.s32 %v1914, 2
        %1916 = vset.pattern.permute.xlu0 %v1915
        %1917 = vperm.xlu0 %1916, %v1705
        %v1918 = vpop.permute.xlu0 %1917
        %v1919 = vlaneseq
        %v1920 = vshrl.u32 %v1919, 7
        %v1921 = vadd.s32 %v1920, 2
        %1922 = vset.pattern.permute.xlu0 %v1921
        %1923 = vperm.xlu0 %1922, %v1712
        %v1924 = vpop.permute.xlu0 %1923
        %v1925 = vlaneseq
        %v1926 = vshrl.u32 %v1925, 7
        %v1927 = vadd.s32 %v1926, 2
        %1928 = vset.pattern.permute.xlu0 %v1927
        %1929 = vperm.xlu0 %1928, %v1719
        %v1930 = vpop.permute.xlu0 %1929
        %v1931 = vlaneseq
        %v1932 = vshrl.u32 %v1931, 7
        %v1933 = vadd.s32 %v1932, 2
        %1934 = vset.pattern.permute.xlu0 %v1933
        %1935 = vperm.xlu0 %1934, %v1726
        %v1936 = vpop.permute.xlu0 %1935
        %v1937 = vlaneseq
        %v1938 = vshrl.u32 %v1937, 7
        %v1939 = vadd.s32 %v1938, 2
        %1940 = vset.pattern.permute.xlu0 %v1939
        %1941 = vperm.xlu0 %1940, %v1733
        %v1942 = vpop.permute.xlu0 %1941
        %v1943 = vlaneseq
        %v1944 = vshrl.u32 %v1943, 7
        %v1945 = vadd.s32 %v1944, 2
        %1946 = vset.pattern.permute.xlu0 %v1945
        %1947 = vperm.xlu0 %1946, %v1740
        %v1948 = vpop.permute.xlu0 %1947
        %v1949 = vlaneseq
        %v1950 = vshrl.u32 %v1949, 7
        %v1951 = vadd.s32 %v1950, 2
        %1952 = vset.pattern.permute.xlu0 %v1951
        %1953 = vperm.xlu0 %1952, %v1747
        %v1954 = vpop.permute.xlu0 %1953
        %v1955 = vlaneseq
        %v1956 = vshrl.u32 %v1955, 7
        %v1957 = vadd.s32 %v1956, 2
        %1958 = vset.pattern.permute.xlu0 %v1957
        %1959 = vperm.xlu0 %1958, %v1754
        %v1960 = vpop.permute.xlu0 %1959
        %v1961 = vlaneseq
        %v1962 = vshrl.u32 %v1961, 7
        %v1963 = vadd.s32 %v1962, 2
        %1964 = vset.pattern.permute.xlu0 %v1963
        %1965 = vperm.xlu0 %1964, %v1761
        %v1966 = vpop.permute.xlu0 %1965
        %v1967 = vlaneseq
        %v1968 = vshrl.u32 %v1967, 7
        %v1969 = vadd.s32 %v1968, 2
        %1970 = vset.pattern.permute.xlu0 %v1969
        %1971 = vperm.xlu0 %1970, %v1768
        %v1972 = vpop.permute.xlu0 %1971
        %v1973 = vlaneseq
        %v1974 = vshrl.u32 %v1973, 7
        %v1975 = vadd.s32 %v1974, 2
        %1976 = vset.pattern.permute.xlu0 %v1975
        %1977 = vperm.xlu0 %1976, %v1775
        %v1978 = vpop.permute.xlu0 %1977
        %v1979 = vlaneseq
        %v1980 = vshrl.u32 %v1979, 7
        %v1981 = vadd.s32 %v1980, 2
        %1982 = vset.pattern.permute.xlu0 %v1981
        %1983 = vperm.xlu0 %1982, %v1782
        %v1984 = vpop.permute.xlu0 %1983
        %v1985 = vlaneseq
        %v1986 = vshrl.u32 %v1985, 7
        %v1987 = vadd.s32 %v1986, 2
        %1988 = vset.pattern.permute.xlu0 %v1987
        %1989 = vperm.xlu0 %1988, %v1789
        %v1990 = vpop.permute.xlu0 %1989
        %v1991 = vlaneseq
        %v1992 = vshrl.u32 %v1991, 7
        %v1993 = vadd.s32 %v1992, 2
        %1994 = vset.pattern.permute.xlu0 %v1993
        %1995 = vperm.xlu0 %1994, %v1796
        %v1996 = vpop.permute.xlu0 %1995
        %v1997 = vlaneseq
        %v1998 = vshrl.u32 %v1997, 7
        %v1999 = vadd.s32 %v1998, 2
        %2000 = vset.pattern.permute.xlu0 %v1999
        %2001 = vperm.xlu0 %2000, %v1803
        %v2002 = vpop.permute.xlu0 %2001
        %v2003 = vlaneseq
        %v2004 = vshrl.u32 %v2003, 7
        %v2005 = vadd.s32 %v2004, 2
        %2006 = vset.pattern.permute.xlu0 %v2005
        %2007 = vperm.xlu0 %2006, %v1810
        %v2008 = vpop.permute.xlu0 %2007
        %v2009 = vlaneseq
        %v2010 = vshrl.u32 %v2009, 7
        %v2011 = vadd.s32 %v2010, 3
        %2012 = vset.pattern.permute.xlu0 %v2011
        %2013 = vperm.xlu0 %2012, %v1705
        %v2014 = vpop.permute.xlu0 %2013
        %v2015 = vlaneseq
        %v2016 = vshrl.u32 %v2015, 7
        %v2017 = vadd.s32 %v2016, 3
        %2018 = vset.pattern.permute.xlu0 %v2017
        %2019 = vperm.xlu0 %2018, %v1712
        %v2020 = vpop.permute.xlu0 %2019
        %v2021 = vlaneseq
        %v2022 = vshrl.u32 %v2021, 7
        %v2023 = vadd.s32 %v2022, 3
        %2024 = vset.pattern.permute.xlu0 %v2023
        %2025 = vperm.xlu0 %2024, %v1719
        %v2026 = vpop.permute.xlu0 %2025
        %v2027 = vlaneseq
        %v2028 = vshrl.u32 %v2027, 7
        %v2029 = vadd.s32 %v2028, 3
        %2030 = vset.pattern.permute.xlu0 %v2029
        %2031 = vperm.xlu0 %2030, %v1726
        %v2032 = vpop.permute.xlu0 %2031
        %v2033 = vlaneseq
        %v2034 = vshrl.u32 %v2033, 7
        %v2035 = vadd.s32 %v2034, 3
        %2036 = vset.pattern.permute.xlu0 %v2035
        %2037 = vperm.xlu0 %2036, %v1733
        %v2038 = vpop.permute.xlu0 %2037
        %v2039 = vlaneseq
        %v2040 = vshrl.u32 %v2039, 7
        %v2041 = vadd.s32 %v2040, 3
        %2042 = vset.pattern.permute.xlu0 %v2041
        %2043 = vperm.xlu0 %2042, %v1740
        %v2044 = vpop.permute.xlu0 %2043
        %v2045 = vlaneseq
        %v2046 = vshrl.u32 %v2045, 7
        %v2047 = vadd.s32 %v2046, 3
        %2048 = vset.pattern.permute.xlu0 %v2047
        %2049 = vperm.xlu0 %2048, %v1747
        %v2050 = vpop.permute.xlu0 %2049
        %v2051 = vlaneseq
        %v2052 = vshrl.u32 %v2051, 7
        %v2053 = vadd.s32 %v2052, 3
        %2054 = vset.pattern.permute.xlu0 %v2053
        %2055 = vperm.xlu0 %2054, %v1754
        %v2056 = vpop.permute.xlu0 %2055
        %v2057 = vperm.slane %v283, 0
        %v2058 = vlaneseq
        %v2059 = vshrl.u32 %v2058, 7
        %2061 = vset.pattern.permute.xlu0 %v2059
        %2062 = vperm.xlu0 %2061, %v2057
        %v2063 = vpop.permute.xlu0 %2062
        %v2064 = vperm.slane %v283, 1
        %v2065 = vlaneseq
        %v2066 = vshrl.u32 %v2065, 7
        %2068 = vset.pattern.permute.xlu0 %v2066
        %2069 = vperm.xlu0 %2068, %v2064
        %v2070 = vpop.permute.xlu0 %2069
        %v2071 = vperm.slane %v283, 2
        %v2072 = vlaneseq
        %v2073 = vshrl.u32 %v2072, 7
        %2075 = vset.pattern.permute.xlu0 %v2073
        %2076 = vperm.xlu0 %2075, %v2071
        %v2077 = vpop.permute.xlu0 %2076
        %v2078 = vperm.slane %v283, 3
        %v2079 = vlaneseq
        %v2080 = vshrl.u32 %v2079, 7
        %2082 = vset.pattern.permute.xlu0 %v2080
        %2083 = vperm.xlu0 %2082, %v2078
        %v2084 = vpop.permute.xlu0 %2083
        %v2085 = vperm.slane %v284, 0
        %v2086 = vlaneseq
        %v2087 = vshrl.u32 %v2086, 7
        %2089 = vset.pattern.permute.xlu0 %v2087
        %2090 = vperm.xlu0 %2089, %v2085
        %v2091 = vpop.permute.xlu0 %2090
        %v2092 = vperm.slane %v284, 1
        %v2093 = vlaneseq
        %v2094 = vshrl.u32 %v2093, 7
        %2096 = vset.pattern.permute.xlu0 %v2094
        %2097 = vperm.xlu0 %2096, %v2092
        %v2098 = vpop.permute.xlu0 %2097
        %v2099 = vperm.slane %v284, 2
        %v2100 = vlaneseq
        %v2101 = vshrl.u32 %v2100, 7
        %2103 = vset.pattern.permute.xlu0 %v2101
        %2104 = vperm.xlu0 %2103, %v2099
        %v2105 = vpop.permute.xlu0 %2104
        %v2106 = vperm.slane %v284, 3
        %v2107 = vlaneseq
        %v2108 = vshrl.u32 %v2107, 7
        %2110 = vset.pattern.permute.xlu0 %v2108
        %2111 = vperm.xlu0 %2110, %v2106
        %v2112 = vpop.permute.xlu0 %2111
        %v2113 = vperm.slane %v287, 0
        %v2114 = vlaneseq
        %v2115 = vshrl.u32 %v2114, 7
        %2117 = vset.pattern.permute.xlu0 %v2115
        %2118 = vperm.xlu0 %2117, %v2113
        %v2119 = vpop.permute.xlu0 %2118
        %v2120 = vperm.slane %v287, 1
        %v2121 = vlaneseq
        %v2122 = vshrl.u32 %v2121, 7
        %2124 = vset.pattern.permute.xlu0 %v2122
        %2125 = vperm.xlu0 %2124, %v2120
        %v2126 = vpop.permute.xlu0 %2125
        %v2127 = vperm.slane %v287, 2
        %v2128 = vlaneseq
        %v2129 = vshrl.u32 %v2128, 7
        %2131 = vset.pattern.permute.xlu0 %v2129
        %2132 = vperm.xlu0 %2131, %v2127
        %v2133 = vpop.permute.xlu0 %2132
        %v2134 = vperm.slane %v287, 3
        %v2135 = vlaneseq
        %v2136 = vshrl.u32 %v2135, 7
        %2138 = vset.pattern.permute.xlu0 %v2136
        %2139 = vperm.xlu0 %2138, %v2134
        %v2140 = vpop.permute.xlu0 %2139
        %v2141 = vperm.slane %v288, 0
        %v2142 = vlaneseq
        %v2143 = vshrl.u32 %v2142, 7
        %2145 = vset.pattern.permute.xlu0 %v2143
        %2146 = vperm.xlu0 %2145, %v2141
        %v2147 = vpop.permute.xlu0 %2146
        %v2148 = vperm.slane %v288, 1
        %v2149 = vlaneseq
        %v2150 = vshrl.u32 %v2149, 7
        %2152 = vset.pattern.permute.xlu0 %v2150
        %2153 = vperm.xlu0 %2152, %v2148
        %v2154 = vpop.permute.xlu0 %2153
        %v2155 = vperm.slane %v288, 2
        %v2156 = vlaneseq
        %v2157 = vshrl.u32 %v2156, 7
        %2159 = vset.pattern.permute.xlu0 %v2157
        %2160 = vperm.xlu0 %2159, %v2155
        %v2161 = vpop.permute.xlu0 %2160
        %v2162 = vperm.slane %v288, 3
        %v2163 = vlaneseq
        %v2164 = vshrl.u32 %v2163, 7
        %2166 = vset.pattern.permute.xlu0 %v2164
        %2167 = vperm.xlu0 %2166, %v2162
        %v2168 = vpop.permute.xlu0 %2167
        %v2169 = vlaneseq
        %v2170 = vshrl.u32 %v2169, 7
        %v2171 = vadd.s32 %v2170, 1
        %2172 = vset.pattern.permute.xlu0 %v2171
        %2173 = vperm.xlu0 %2172, %v2057
        %v2174 = vpop.permute.xlu0 %2173
        %v2175 = vlaneseq
        %v2176 = vshrl.u32 %v2175, 7
        %v2177 = vadd.s32 %v2176, 1
        %2178 = vset.pattern.permute.xlu0 %v2177
        %2179 = vperm.xlu0 %2178, %v2064
        %v2180 = vpop.permute.xlu0 %2179
        %v2181 = vlaneseq
        %v2182 = vshrl.u32 %v2181, 7
        %v2183 = vadd.s32 %v2182, 1
        %2184 = vset.pattern.permute.xlu0 %v2183
        %2185 = vperm.xlu0 %2184, %v2071
        %v2186 = vpop.permute.xlu0 %2185
        %v2187 = vlaneseq
        %v2188 = vshrl.u32 %v2187, 7
        %v2189 = vadd.s32 %v2188, 1
        %2190 = vset.pattern.permute.xlu0 %v2189
        %2191 = vperm.xlu0 %2190, %v2078
        %v2192 = vpop.permute.xlu0 %2191
        %v2193 = vlaneseq
        %v2194 = vshrl.u32 %v2193, 7
        %v2195 = vadd.s32 %v2194, 1
        %2196 = vset.pattern.permute.xlu0 %v2195
        %2197 = vperm.xlu0 %2196, %v2085
        %v2198 = vpop.permute.xlu0 %2197
        %v2199 = vlaneseq
        %v2200 = vshrl.u32 %v2199, 7
        %v2201 = vadd.s32 %v2200, 1
        %2202 = vset.pattern.permute.xlu0 %v2201
        %2203 = vperm.xlu0 %2202, %v2092
        %v2204 = vpop.permute.xlu0 %2203
        %v2205 = vlaneseq
        %v2206 = vshrl.u32 %v2205, 7
        %v2207 = vadd.s32 %v2206, 1
        %2208 = vset.pattern.permute.xlu0 %v2207
        %2209 = vperm.xlu0 %2208, %v2099
        %v2210 = vpop.permute.xlu0 %2209
        %v2211 = vlaneseq
        %v2212 = vshrl.u32 %v2211, 7
        %v2213 = vadd.s32 %v2212, 1
        %2214 = vset.pattern.permute.xlu0 %v2213
        %2215 = vperm.xlu0 %2214, %v2106
        %v2216 = vpop.permute.xlu0 %2215
        %v2217 = vlaneseq
        %v2218 = vshrl.u32 %v2217, 7
        %v2219 = vadd.s32 %v2218, 1
        %2220 = vset.pattern.permute.xlu0 %v2219
        %2221 = vperm.xlu0 %2220, %v2113
        %v2222 = vpop.permute.xlu0 %2221
        %v2223 = vlaneseq
        %v2224 = vshrl.u32 %v2223, 7
        %v2225 = vadd.s32 %v2224, 1
        %2226 = vset.pattern.permute.xlu0 %v2225
        %2227 = vperm.xlu0 %2226, %v2120
        %v2228 = vpop.permute.xlu0 %2227
        %v2229 = vlaneseq
        %v2230 = vshrl.u32 %v2229, 7
        %v2231 = vadd.s32 %v2230, 1
        %2232 = vset.pattern.permute.xlu0 %v2231
        %2233 = vperm.xlu0 %2232, %v2127
        %v2234 = vpop.permute.xlu0 %2233
        %v2235 = vlaneseq
        %v2236 = vshrl.u32 %v2235, 7
        %v2237 = vadd.s32 %v2236, 1
        %2238 = vset.pattern.permute.xlu0 %v2237
        %2239 = vperm.xlu0 %2238, %v2134
        %v2240 = vpop.permute.xlu0 %2239
        %v2241 = vlaneseq
        %v2242 = vshrl.u32 %v2241, 7
        %v2243 = vadd.s32 %v2242, 1
        %2244 = vset.pattern.permute.xlu0 %v2243
        %2245 = vperm.xlu0 %2244, %v2141
        %v2246 = vpop.permute.xlu0 %2245
        %v2247 = vlaneseq
        %v2248 = vshrl.u32 %v2247, 7
        %v2249 = vadd.s32 %v2248, 1
        %2250 = vset.pattern.permute.xlu0 %v2249
        %2251 = vperm.xlu0 %2250, %v2148
        %v2252 = vpop.permute.xlu0 %2251
        %v2253 = vlaneseq
        %v2254 = vshrl.u32 %v2253, 7
        %v2255 = vadd.s32 %v2254, 1
        %2256 = vset.pattern.permute.xlu0 %v2255
        %2257 = vperm.xlu0 %2256, %v2155
        %v2258 = vpop.permute.xlu0 %2257
        %v2259 = vlaneseq
        %v2260 = vshrl.u32 %v2259, 7
        %v2261 = vadd.s32 %v2260, 1
        %2262 = vset.pattern.permute.xlu0 %v2261
        %2263 = vperm.xlu0 %2262, %v2162
        %v2264 = vpop.permute.xlu0 %2263
        %v2265 = vlaneseq
        %v2266 = vshrl.u32 %v2265, 7
        %v2267 = vadd.s32 %v2266, 2
        %2268 = vset.pattern.permute.xlu0 %v2267
        %2269 = vperm.xlu0 %2268, %v2057
        %v2270 = vpop.permute.xlu0 %2269
        %v2271 = vlaneseq
        %v2272 = vshrl.u32 %v2271, 7
        %v2273 = vadd.s32 %v2272, 2
        %2274 = vset.pattern.permute.xlu0 %v2273
        %2275 = vperm.xlu0 %2274, %v2064
        %v2276 = vpop.permute.xlu0 %2275
        %v2277 = vlaneseq
        %v2278 = vshrl.u32 %v2277, 7
        %v2279 = vadd.s32 %v2278, 2
        %2280 = vset.pattern.permute.xlu0 %v2279
        %2281 = vperm.xlu0 %2280, %v2071
        %v2282 = vpop.permute.xlu0 %2281
        %v2283 = vlaneseq
        %v2284 = vshrl.u32 %v2283, 7
        %v2285 = vadd.s32 %v2284, 2
        %2286 = vset.pattern.permute.xlu0 %v2285
        %2287 = vperm.xlu0 %2286, %v2078
        %v2288 = vpop.permute.xlu0 %2287
        %v2289 = vlaneseq
        %v2290 = vshrl.u32 %v2289, 7
        %v2291 = vadd.s32 %v2290, 2
        %2292 = vset.pattern.permute.xlu0 %v2291
        %2293 = vperm.xlu0 %2292, %v2085
        %v2294 = vpop.permute.xlu0 %2293
        %v2295 = vlaneseq
        %v2296 = vshrl.u32 %v2295, 7
        %v2297 = vadd.s32 %v2296, 2
        %2298 = vset.pattern.permute.xlu0 %v2297
        %2299 = vperm.xlu0 %2298, %v2092
        %v2300 = vpop.permute.xlu0 %2299
        %v2301 = vlaneseq
        %v2302 = vshrl.u32 %v2301, 7
        %v2303 = vadd.s32 %v2302, 2
        %2304 = vset.pattern.permute.xlu0 %v2303
        %2305 = vperm.xlu0 %2304, %v2099
        %v2306 = vpop.permute.xlu0 %2305
        %v2307 = vlaneseq
        %v2308 = vshrl.u32 %v2307, 7
        %v2309 = vadd.s32 %v2308, 2
        %2310 = vset.pattern.permute.xlu0 %v2309
        %2311 = vperm.xlu0 %2310, %v2106
        %v2312 = vpop.permute.xlu0 %2311
        %v2313 = vlaneseq
        %v2314 = vshrl.u32 %v2313, 7
        %v2315 = vadd.s32 %v2314, 2
        %2316 = vset.pattern.permute.xlu0 %v2315
        %2317 = vperm.xlu0 %2316, %v2113
        %v2318 = vpop.permute.xlu0 %2317
        %v2319 = vlaneseq
        %v2320 = vshrl.u32 %v2319, 7
        %v2321 = vadd.s32 %v2320, 2
        %2322 = vset.pattern.permute.xlu0 %v2321
        %2323 = vperm.xlu0 %2322, %v2120
        %v2324 = vpop.permute.xlu0 %2323
        %v2325 = vlaneseq
        %v2326 = vshrl.u32 %v2325, 7
        %v2327 = vadd.s32 %v2326, 2
        %2328 = vset.pattern.permute.xlu0 %v2327
        %2329 = vperm.xlu0 %2328, %v2127
        %v2330 = vpop.permute.xlu0 %2329
        %v2331 = vlaneseq
        %v2332 = vshrl.u32 %v2331, 7
        %v2333 = vadd.s32 %v2332, 2
        %2334 = vset.pattern.permute.xlu0 %v2333
        %2335 = vperm.xlu0 %2334, %v2134
        %v2336 = vpop.permute.xlu0 %2335
        %v2337 = vlaneseq
        %v2338 = vshrl.u32 %v2337, 7
        %v2339 = vadd.s32 %v2338, 2
        %2340 = vset.pattern.permute.xlu0 %v2339
        %2341 = vperm.xlu0 %2340, %v2141
        %v2342 = vpop.permute.xlu0 %2341
        %v2343 = vlaneseq
        %v2344 = vshrl.u32 %v2343, 7
        %v2345 = vadd.s32 %v2344, 2
        %2346 = vset.pattern.permute.xlu0 %v2345
        %2347 = vperm.xlu0 %2346, %v2148
        %v2348 = vpop.permute.xlu0 %2347
        %v2349 = vlaneseq
        %v2350 = vshrl.u32 %v2349, 7
        %v2351 = vadd.s32 %v2350, 2
        %2352 = vset.pattern.permute.xlu0 %v2351
        %2353 = vperm.xlu0 %2352, %v2155
        %v2354 = vpop.permute.xlu0 %2353
        %v2355 = vlaneseq
        %v2356 = vshrl.u32 %v2355, 7
        %v2357 = vadd.s32 %v2356, 2
        %2358 = vset.pattern.permute.xlu0 %v2357
        %2359 = vperm.xlu0 %2358, %v2162
        %v2360 = vpop.permute.xlu0 %2359
        %v2361 = vlaneseq
        %v2362 = vshrl.u32 %v2361, 7
        %v2363 = vadd.s32 %v2362, 3
        %2364 = vset.pattern.permute.xlu0 %v2363
        %2365 = vperm.xlu0 %2364, %v2057
        %v2366 = vpop.permute.xlu0 %2365
        %v2367 = vlaneseq
        %v2368 = vshrl.u32 %v2367, 7
        %v2369 = vadd.s32 %v2368, 3
        %2370 = vset.pattern.permute.xlu0 %v2369
        %2371 = vperm.xlu0 %2370, %v2064
        %v2372 = vpop.permute.xlu0 %2371
        %v2373 = vlaneseq
        %v2374 = vshrl.u32 %v2373, 7
        %v2375 = vadd.s32 %v2374, 3
        %2376 = vset.pattern.permute.xlu0 %v2375
        %2377 = vperm.xlu0 %2376, %v2071
        %v2378 = vpop.permute.xlu0 %2377
        %v2379 = vlaneseq
        %v2380 = vshrl.u32 %v2379, 7
        %v2381 = vadd.s32 %v2380, 3
        %2382 = vset.pattern.permute.xlu0 %v2381
        %2383 = vperm.xlu0 %2382, %v2078
        %v2384 = vpop.permute.xlu0 %2383
        %v2385 = vlaneseq
        %v2386 = vshrl.u32 %v2385, 7
        %v2387 = vadd.s32 %v2386, 3
        %2388 = vset.pattern.permute.xlu0 %v2387
        %2389 = vperm.xlu0 %2388, %v2085
        %v2390 = vpop.permute.xlu0 %2389
        %v2391 = vlaneseq
        %v2392 = vshrl.u32 %v2391, 7
        %v2393 = vadd.s32 %v2392, 3
        %2394 = vset.pattern.permute.xlu0 %v2393
        %2395 = vperm.xlu0 %2394, %v2092
        %v2396 = vpop.permute.xlu0 %2395
        %v2397 = vlaneseq
        %v2398 = vshrl.u32 %v2397, 7
        %v2399 = vadd.s32 %v2398, 3
        %2400 = vset.pattern.permute.xlu0 %v2399
        %2401 = vperm.xlu0 %2400, %v2099
        %v2402 = vpop.permute.xlu0 %2401
        %v2403 = vlaneseq
        %v2404 = vshrl.u32 %v2403, 7
        %v2405 = vadd.s32 %v2404, 3
        %2406 = vset.pattern.permute.xlu0 %v2405
        %2407 = vperm.xlu0 %2406, %v2106
        %v2408 = vpop.permute.xlu0 %2407
        %v2409 = vperm.slane %v291, 0
        %v2410 = vlaneseq
        %v2411 = vshrl.u32 %v2410, 7
        %2413 = vset.pattern.permute.xlu0 %v2411
        %2414 = vperm.xlu0 %2413, %v2409
        %v2415 = vpop.permute.xlu0 %2414
        %v2416 = vperm.slane %v291, 1
        %v2417 = vlaneseq
        %v2418 = vshrl.u32 %v2417, 7
        %2420 = vset.pattern.permute.xlu0 %v2418
        %2421 = vperm.xlu0 %2420, %v2416
        %v2422 = vpop.permute.xlu0 %2421
        %v2423 = vperm.slane %v291, 2
        %v2424 = vlaneseq
        %v2425 = vshrl.u32 %v2424, 7
        %2427 = vset.pattern.permute.xlu0 %v2425
        %2428 = vperm.xlu0 %2427, %v2423
        %v2429 = vpop.permute.xlu0 %2428
        %v2430 = vperm.slane %v291, 3
        %v2431 = vlaneseq
        %v2432 = vshrl.u32 %v2431, 7
        %2434 = vset.pattern.permute.xlu0 %v2432
        %2435 = vperm.xlu0 %2434, %v2430
        %v2436 = vpop.permute.xlu0 %2435
        %v2437 = vperm.slane %v292, 0
        %v2438 = vlaneseq
        %v2439 = vshrl.u32 %v2438, 7
        %2441 = vset.pattern.permute.xlu0 %v2439
        %2442 = vperm.xlu0 %2441, %v2437
        %v2443 = vpop.permute.xlu0 %2442
        %v2444 = vperm.slane %v292, 1
        %v2445 = vlaneseq
        %v2446 = vshrl.u32 %v2445, 7
        %2448 = vset.pattern.permute.xlu0 %v2446
        %2449 = vperm.xlu0 %2448, %v2444
        %v2450 = vpop.permute.xlu0 %2449
        %v2451 = vperm.slane %v292, 2
        %v2452 = vlaneseq
        %v2453 = vshrl.u32 %v2452, 7
        %2455 = vset.pattern.permute.xlu0 %v2453
        %2456 = vperm.xlu0 %2455, %v2451
        %v2457 = vpop.permute.xlu0 %2456
        %v2458 = vperm.slane %v292, 3
        %v2459 = vlaneseq
        %v2460 = vshrl.u32 %v2459, 7
        %2462 = vset.pattern.permute.xlu0 %v2460
        %2463 = vperm.xlu0 %2462, %v2458
        %v2464 = vpop.permute.xlu0 %2463
        %v2465 = vperm.slane %v295, 0
        %v2466 = vlaneseq
        %v2467 = vshrl.u32 %v2466, 7
        %2469 = vset.pattern.permute.xlu0 %v2467
        %2470 = vperm.xlu0 %2469, %v2465
        %v2471 = vpop.permute.xlu0 %2470
        %v2472 = vperm.slane %v295, 1
        %v2473 = vlaneseq
        %v2474 = vshrl.u32 %v2473, 7
        %2476 = vset.pattern.permute.xlu0 %v2474
        %2477 = vperm.xlu0 %2476, %v2472
        %v2478 = vpop.permute.xlu0 %2477
        %v2479 = vperm.slane %v295, 2
        %v2480 = vlaneseq
        %v2481 = vshrl.u32 %v2480, 7
        %2483 = vset.pattern.permute.xlu0 %v2481
        %2484 = vperm.xlu0 %2483, %v2479
        %v2485 = vpop.permute.xlu0 %2484
        %v2486 = vperm.slane %v295, 3
        %v2487 = vlaneseq
        %v2488 = vshrl.u32 %v2487, 7
        %2490 = vset.pattern.permute.xlu0 %v2488
        %2491 = vperm.xlu0 %2490, %v2486
        %v2492 = vpop.permute.xlu0 %2491
        %v2493 = vperm.slane %v296, 0
        %v2494 = vlaneseq
        %v2495 = vshrl.u32 %v2494, 7
        %2497 = vset.pattern.permute.xlu0 %v2495
        %2498 = vperm.xlu0 %2497, %v2493
        %v2499 = vpop.permute.xlu0 %2498
        %v2500 = vperm.slane %v296, 1
        %v2501 = vlaneseq
        %v2502 = vshrl.u32 %v2501, 7
        %2504 = vset.pattern.permute.xlu0 %v2502
        %2505 = vperm.xlu0 %2504, %v2500
        %v2506 = vpop.permute.xlu0 %2505
        %v2507 = vperm.slane %v296, 2
        %v2508 = vlaneseq
        %v2509 = vshrl.u32 %v2508, 7
        %2511 = vset.pattern.permute.xlu0 %v2509
        %2512 = vperm.xlu0 %2511, %v2507
        %v2513 = vpop.permute.xlu0 %2512
        %v2514 = vperm.slane %v296, 3
        %v2515 = vlaneseq
        %v2516 = vshrl.u32 %v2515, 7
        %2518 = vset.pattern.permute.xlu0 %v2516
        %2519 = vperm.xlu0 %2518, %v2514
        %v2520 = vpop.permute.xlu0 %2519
        %v2521 = vlaneseq
        %v2522 = vshrl.u32 %v2521, 7
        %v2523 = vadd.s32 %v2522, 1
        %2524 = vset.pattern.permute.xlu0 %v2523
        %2525 = vperm.xlu0 %2524, %v2409
        %v2526 = vpop.permute.xlu0 %2525
        %v2527 = vlaneseq
        %v2528 = vshrl.u32 %v2527, 7
        %v2529 = vadd.s32 %v2528, 1
        %2530 = vset.pattern.permute.xlu0 %v2529
        %2531 = vperm.xlu0 %2530, %v2416
        %v2532 = vpop.permute.xlu0 %2531
        %v2533 = vlaneseq
        %v2534 = vshrl.u32 %v2533, 7
        %v2535 = vadd.s32 %v2534, 1
        %2536 = vset.pattern.permute.xlu0 %v2535
        %2537 = vperm.xlu0 %2536, %v2423
        %v2538 = vpop.permute.xlu0 %2537
        %v2539 = vlaneseq
        %v2540 = vshrl.u32 %v2539, 7
        %v2541 = vadd.s32 %v2540, 1
        %2542 = vset.pattern.permute.xlu0 %v2541
        %2543 = vperm.xlu0 %2542, %v2430
        %v2544 = vpop.permute.xlu0 %2543
        %v2545 = vlaneseq
        %v2546 = vshrl.u32 %v2545, 7
        %v2547 = vadd.s32 %v2546, 1
        %2548 = vset.pattern.permute.xlu0 %v2547
        %2549 = vperm.xlu0 %2548, %v2437
        %v2550 = vpop.permute.xlu0 %2549
        %v2551 = vlaneseq
        %v2552 = vshrl.u32 %v2551, 7
        %v2553 = vadd.s32 %v2552, 1
        %2554 = vset.pattern.permute.xlu0 %v2553
        %2555 = vperm.xlu0 %2554, %v2444
        %v2556 = vpop.permute.xlu0 %2555
        %v2557 = vlaneseq
        %v2558 = vshrl.u32 %v2557, 7
        %v2559 = vadd.s32 %v2558, 1
        %2560 = vset.pattern.permute.xlu0 %v2559
        %2561 = vperm.xlu0 %2560, %v2451
        %v2562 = vpop.permute.xlu0 %2561
        %v2563 = vlaneseq
        %v2564 = vshrl.u32 %v2563, 7
        %v2565 = vadd.s32 %v2564, 1
        %2566 = vset.pattern.permute.xlu0 %v2565
        %2567 = vperm.xlu0 %2566, %v2458
        %v2568 = vpop.permute.xlu0 %2567
        %v2569 = vlaneseq
        %v2570 = vshrl.u32 %v2569, 7
        %v2571 = vadd.s32 %v2570, 1
        %2572 = vset.pattern.permute.xlu0 %v2571
        %2573 = vperm.xlu0 %2572, %v2465
        %v2574 = vpop.permute.xlu0 %2573
        %v2575 = vlaneseq
        %v2576 = vshrl.u32 %v2575, 7
        %v2577 = vadd.s32 %v2576, 1
        %2578 = vset.pattern.permute.xlu0 %v2577
        %2579 = vperm.xlu0 %2578, %v2472
        %v2580 = vpop.permute.xlu0 %2579
        %v2581 = vlaneseq
        %v2582 = vshrl.u32 %v2581, 7
        %v2583 = vadd.s32 %v2582, 1
        %2584 = vset.pattern.permute.xlu0 %v2583
        %2585 = vperm.xlu0 %2584, %v2479
        %v2586 = vpop.permute.xlu0 %2585
        %v2587 = vlaneseq
        %v2588 = vshrl.u32 %v2587, 7
        %v2589 = vadd.s32 %v2588, 1
        %2590 = vset.pattern.permute.xlu0 %v2589
        %2591 = vperm.xlu0 %2590, %v2486
        %v2592 = vpop.permute.xlu0 %2591
        %v2593 = vlaneseq
        %v2594 = vshrl.u32 %v2593, 7
        %v2595 = vadd.s32 %v2594, 1
        %2596 = vset.pattern.permute.xlu0 %v2595
        %2597 = vperm.xlu0 %2596, %v2493
        %v2598 = vpop.permute.xlu0 %2597
        %v2599 = vlaneseq
        %v2600 = vshrl.u32 %v2599, 7
        %v2601 = vadd.s32 %v2600, 1
        %2602 = vset.pattern.permute.xlu0 %v2601
        %2603 = vperm.xlu0 %2602, %v2500
        %v2604 = vpop.permute.xlu0 %2603
        %v2605 = vlaneseq
        %v2606 = vshrl.u32 %v2605, 7
        %v2607 = vadd.s32 %v2606, 1
        %2608 = vset.pattern.permute.xlu0 %v2607
        %2609 = vperm.xlu0 %2608, %v2507
        %v2610 = vpop.permute.xlu0 %2609
        %v2611 = vlaneseq
        %v2612 = vshrl.u32 %v2611, 7
        %v2613 = vadd.s32 %v2612, 1
        %2614 = vset.pattern.permute.xlu0 %v2613
        %2615 = vperm.xlu0 %2614, %v2514
        %v2616 = vpop.permute.xlu0 %2615
        %v2617 = vlaneseq
        %v2618 = vshrl.u32 %v2617, 7
        %v2619 = vadd.s32 %v2618, 2
        %2620 = vset.pattern.permute.xlu0 %v2619
        %2621 = vperm.xlu0 %2620, %v2409
        %v2622 = vpop.permute.xlu0 %2621
        %v2623 = vlaneseq
        %v2624 = vshrl.u32 %v2623, 7
        %v2625 = vadd.s32 %v2624, 2
        %2626 = vset.pattern.permute.xlu0 %v2625
        %2627 = vperm.xlu0 %2626, %v2416
        %v2628 = vpop.permute.xlu0 %2627
        %v2629 = vlaneseq
        %v2630 = vshrl.u32 %v2629, 7
        %v2631 = vadd.s32 %v2630, 2
        %2632 = vset.pattern.permute.xlu0 %v2631
        %2633 = vperm.xlu0 %2632, %v2423
        %v2634 = vpop.permute.xlu0 %2633
        %v2635 = vlaneseq
        %v2636 = vshrl.u32 %v2635, 7
        %v2637 = vadd.s32 %v2636, 2
        %2638 = vset.pattern.permute.xlu0 %v2637
        %2639 = vperm.xlu0 %2638, %v2430
        %v2640 = vpop.permute.xlu0 %2639
        %v2641 = vlaneseq
        %v2642 = vshrl.u32 %v2641, 7
        %v2643 = vadd.s32 %v2642, 2
        %2644 = vset.pattern.permute.xlu0 %v2643
        %2645 = vperm.xlu0 %2644, %v2437
        %v2646 = vpop.permute.xlu0 %2645
        %v2647 = vlaneseq
        %v2648 = vshrl.u32 %v2647, 7
        %v2649 = vadd.s32 %v2648, 2
        %2650 = vset.pattern.permute.xlu0 %v2649
        %2651 = vperm.xlu0 %2650, %v2444
        %v2652 = vpop.permute.xlu0 %2651
        %v2653 = vlaneseq
        %v2654 = vshrl.u32 %v2653, 7
        %v2655 = vadd.s32 %v2654, 2
        %2656 = vset.pattern.permute.xlu0 %v2655
        %2657 = vperm.xlu0 %2656, %v2451
        %v2658 = vpop.permute.xlu0 %2657
        %v2659 = vlaneseq
        %v2660 = vshrl.u32 %v2659, 7
        %v2661 = vadd.s32 %v2660, 2
        %2662 = vset.pattern.permute.xlu0 %v2661
        %2663 = vperm.xlu0 %2662, %v2458
        %v2664 = vpop.permute.xlu0 %2663
        %v2665 = vlaneseq
        %v2666 = vshrl.u32 %v2665, 7
        %v2667 = vadd.s32 %v2666, 2
        %2668 = vset.pattern.permute.xlu0 %v2667
        %2669 = vperm.xlu0 %2668, %v2465
        %v2670 = vpop.permute.xlu0 %2669
        %v2671 = vlaneseq
        %v2672 = vshrl.u32 %v2671, 7
        %v2673 = vadd.s32 %v2672, 2
        %2674 = vset.pattern.permute.xlu0 %v2673
        %2675 = vperm.xlu0 %2674, %v2472
        %v2676 = vpop.permute.xlu0 %2675
        %v2677 = vlaneseq
        %v2678 = vshrl.u32 %v2677, 7
        %v2679 = vadd.s32 %v2678, 2
        %2680 = vset.pattern.permute.xlu0 %v2679
        %2681 = vperm.xlu0 %2680, %v2479
        %v2682 = vpop.permute.xlu0 %2681
        %v2683 = vlaneseq
        %v2684 = vshrl.u32 %v2683, 7
        %v2685 = vadd.s32 %v2684, 2
        %2686 = vset.pattern.permute.xlu0 %v2685
        %2687 = vperm.xlu0 %2686, %v2486
        %v2688 = vpop.permute.xlu0 %2687
        %v2689 = vlaneseq
        %v2690 = vshrl.u32 %v2689, 7
        %v2691 = vadd.s32 %v2690, 2
        %2692 = vset.pattern.permute.xlu0 %v2691
        %2693 = vperm.xlu0 %2692, %v2493
        %v2694 = vpop.permute.xlu0 %2693
        %v2695 = vlaneseq
        %v2696 = vshrl.u32 %v2695, 7
        %v2697 = vadd.s32 %v2696, 2
        %2698 = vset.pattern.permute.xlu0 %v2697
        %2699 = vperm.xlu0 %2698, %v2500
        %v2700 = vpop.permute.xlu0 %2699
        %v2701 = vlaneseq
        %v2702 = vshrl.u32 %v2701, 7
        %v2703 = vadd.s32 %v2702, 2
        %2704 = vset.pattern.permute.xlu0 %v2703
        %2705 = vperm.xlu0 %2704, %v2507
        %v2706 = vpop.permute.xlu0 %2705
        %v2707 = vlaneseq
        %v2708 = vshrl.u32 %v2707, 7
        %v2709 = vadd.s32 %v2708, 2
        %2710 = vset.pattern.permute.xlu0 %v2709
        %2711 = vperm.xlu0 %2710, %v2514
        %v2712 = vpop.permute.xlu0 %2711
        %v2713 = vlaneseq
        %v2714 = vshrl.u32 %v2713, 7
        %v2715 = vadd.s32 %v2714, 3
        %2716 = vset.pattern.permute.xlu0 %v2715
        %2717 = vperm.xlu0 %2716, %v2409
        %v2718 = vpop.permute.xlu0 %2717
        %v2719 = vlaneseq
        %v2720 = vshrl.u32 %v2719, 7
        %v2721 = vadd.s32 %v2720, 3
        %2722 = vset.pattern.permute.xlu0 %v2721
        %2723 = vperm.xlu0 %2722, %v2416
        %v2724 = vpop.permute.xlu0 %2723
        %v2725 = vlaneseq
        %v2726 = vshrl.u32 %v2725, 7
        %v2727 = vadd.s32 %v2726, 3
        %2728 = vset.pattern.permute.xlu0 %v2727
        %2729 = vperm.xlu0 %2728, %v2423
        %v2730 = vpop.permute.xlu0 %2729
        %v2731 = vlaneseq
        %v2732 = vshrl.u32 %v2731, 7
        %v2733 = vadd.s32 %v2732, 3
        %2734 = vset.pattern.permute.xlu0 %v2733
        %2735 = vperm.xlu0 %2734, %v2430
        %v2736 = vpop.permute.xlu0 %2735
        %v2737 = vlaneseq
        %v2738 = vshrl.u32 %v2737, 7
        %v2739 = vadd.s32 %v2738, 3
        %2740 = vset.pattern.permute.xlu0 %v2739
        %2741 = vperm.xlu0 %2740, %v2437
        %v2742 = vpop.permute.xlu0 %2741
        %v2743 = vlaneseq
        %v2744 = vshrl.u32 %v2743, 7
        %v2745 = vadd.s32 %v2744, 3
        %2746 = vset.pattern.permute.xlu0 %v2745
        %2747 = vperm.xlu0 %2746, %v2444
        %v2748 = vpop.permute.xlu0 %2747
        %v2749 = vlaneseq
        %v2750 = vshrl.u32 %v2749, 7
        %v2751 = vadd.s32 %v2750, 3
        %2752 = vset.pattern.permute.xlu0 %v2751
        %2753 = vperm.xlu0 %2752, %v2451
        %v2754 = vpop.permute.xlu0 %2753
        %v2755 = vlaneseq
        %v2756 = vshrl.u32 %v2755, 7
        %v2757 = vadd.s32 %v2756, 3
        %2758 = vset.pattern.permute.xlu0 %v2757
        %2759 = vperm.xlu0 %2758, %v2458
        %v2760 = vpop.permute.xlu0 %2759
        %vm2761 = vcmask 7168
        %v2762 = vsel %vm2761, %v303, %v359
        %v2763 = vsel %vm2761, %v310, %v366
        %v2764 = vsel %vm2761, %v317, %v373
        %v2765 = vsel %vm2761, %v324, %v380
        %v2766 = vsel %vm2761, %v331, %v387
        %v2767 = vsel %vm2761, %v338, %v394
        %v2768 = vsel %vm2761, %v345, %v401
        %v2769 = vsel %vm2761, %v352, %v408
        %vm2770 = vcmask 15360
        %v2771 = vsel %vm2770, %v2762, %v414
        %v2772 = vsel %vm2770, %v2763, %v420
        %v2773 = vsel %vm2770, %v2764, %v426
        %v2774 = vsel %vm2770, %v2765, %v432
        %v2775 = vsel %vm2770, %v2766, %v438
        %v2776 = vsel %vm2770, %v2767, %v444
        %v2777 = vsel %vm2770, %v2768, %v450
        %v2778 = vsel %vm2770, %v2769, %v456
        %vm2779 = vcmask 23552
        %v2780 = vsel %vm2779, %v2771, %v462
        %v2781 = vsel %vm2779, %v2772, %v468
        %v2782 = vsel %vm2779, %v2773, %v474
        %v2783 = vsel %vm2779, %v2774, %v480
        %v2784 = vsel %vm2779, %v2775, %v486
        %v2785 = vsel %vm2779, %v2776, %v492
        %v2786 = vsel %vm2779, %v2777, %v498
        %v2787 = vsel %vm2779, %v2778, %v504
        %vm2788 = vcmask 31744
        %v2789 = vsel %vm2788, %v2780, %v510
        %v2790 = vsel %vm2788, %v2781, %v516
        %v2791 = vsel %vm2788, %v2782, %v522
        %v2792 = vsel %vm2788, %v2783, %v528
        %v2793 = vsel %vm2788, %v2784, %v534
        %v2794 = vsel %vm2788, %v2785, %v540
        %v2795 = vsel %vm2788, %v2786, %v546
        %v2796 = vsel %vm2788, %v2787, %v552
        %vm2797 = vcmask 39936
        %v2798 = vsel %vm2797, %v2789, %v558
        %v2799 = vsel %vm2797, %v2790, %v564
        %v2800 = vsel %vm2797, %v2791, %v570
        %v2801 = vsel %vm2797, %v2792, %v576
        %v2802 = vsel %vm2797, %v2793, %v582
        %v2803 = vsel %vm2797, %v2794, %v588
        %v2804 = vsel %vm2797, %v2795, %v594
        %v2805 = vsel %vm2797, %v2796, %v600
        %vm2806 = vcmask 48128
        %v2807 = vsel %vm2806, %v2798, %v606
        %v2808 = vsel %vm2806, %v2799, %v612
        %v2809 = vsel %vm2806, %v2800, %v618
        %v2810 = vsel %vm2806, %v2801, %v624
        %v2811 = vsel %vm2806, %v2802, %v630
        %v2812 = vsel %vm2806, %v2803, %v636
        %v2813 = vsel %vm2806, %v2804, %v642
        %v2814 = vsel %vm2806, %v2805, %v648
        %vm2815 = vcmask 56320
        %v2816 = vsel %vm2815, %v2807, %v655
        %v2817 = vsel %vm2815, %v2808, %v662
        %v2818 = vsel %vm2815, %v2809, %v669
        %v2819 = vsel %vm2815, %v2810, %v676
        %v2820 = vsel %vm2815, %v2811, %v683
        %v2821 = vsel %vm2815, %v2812, %v690
        %v2822 = vsel %vm2815, %v2813, %v697
        %v2823 = vsel %vm2815, %v2814, %v704
        %vm2824 = vcmask 64512
        %v2825 = vsel %vm2824, %v2816, %v711
        %v2826 = vsel %vm2824, %v2817, %v718
        %v2827 = vsel %vm2824, %v2818, %v725
        %v2828 = vsel %vm2824, %v2819, %v732
        %v2829 = vsel %vm2824, %v2820, %v739
        %v2830 = vsel %vm2824, %v2821, %v746
        %v2831 = vsel %vm2824, %v2822, %v753
        %v2832 = vsel %vm2824, %v2823, %v760
        %vm2833 = vcmask 72704
        %v2834 = vsel %vm2833, %v2825, %v766
        %v2835 = vsel %vm2833, %v2826, %v772
        %v2836 = vsel %vm2833, %v2827, %v778
        %v2837 = vsel %vm2833, %v2828, %v784
        %v2838 = vsel %vm2833, %v2829, %v790
        %v2839 = vsel %vm2833, %v2830, %v796
        %v2840 = vsel %vm2833, %v2831, %v802
        %v2841 = vsel %vm2833, %v2832, %v808
        %vm2842 = vcmask 80896
        %v2843 = vsel %vm2842, %v2834, %v814
        %v2844 = vsel %vm2842, %v2835, %v820
        %v2845 = vsel %vm2842, %v2836, %v826
        %v2846 = vsel %vm2842, %v2837, %v832
        %v2847 = vsel %vm2842, %v2838, %v838
        %v2848 = vsel %vm2842, %v2839, %v844
        %v2849 = vsel %vm2842, %v2840, %v850
        %v2850 = vsel %vm2842, %v2841, %v856
        %vm2851 = vcmask 89088
        %v2852 = vsel %vm2851, %v2843, %v862
        %v2853 = vsel %vm2851, %v2844, %v868
        %v2854 = vsel %vm2851, %v2845, %v874
        %v2855 = vsel %vm2851, %v2846, %v880
        %v2856 = vsel %vm2851, %v2847, %v886
        %v2857 = vsel %vm2851, %v2848, %v892
        %v2858 = vsel %vm2851, %v2849, %v898
        %v2859 = vsel %vm2851, %v2850, %v904
        %vm2860 = vcmask 97280
        %v2861 = vsel %vm2860, %v2852, %v910
        %v2862 = vsel %vm2860, %v2853, %v916
        %v2863 = vsel %vm2860, %v2854, %v922
        %v2864 = vsel %vm2860, %v2855, %v928
        %v2865 = vsel %vm2860, %v2856, %v934
        %v2866 = vsel %vm2860, %v2857, %v940
        %v2867 = vsel %vm2860, %v2858, %v946
        %v2868 = vsel %vm2860, %v2859, %v952
        %vm2869 = vcmask 105472
        %v2870 = vsel %vm2869, %v2861, %v958
        %v2871 = vsel %vm2869, %v2862, %v964
        %v2872 = vsel %vm2869, %v2863, %v970
        %v2873 = vsel %vm2869, %v2864, %v976
        %v2874 = vsel %vm2869, %v2865, %v982
        %v2875 = vsel %vm2869, %v2866, %v988
        %v2876 = vsel %vm2869, %v2867, %v994
        %v2877 = vsel %vm2869, %v2868, %v1000
        %vm2878 = vcmask 113664
        %v2879 = vsel %vm2878, %v2870, %v1007
        %v2880 = vsel %vm2878, %v2871, %v1014
        %v2881 = vsel %vm2878, %v2872, %v1021
        %v2882 = vsel %vm2878, %v2873, %v1028
        %v2883 = vsel %vm2878, %v2874, %v1035
        %v2884 = vsel %vm2878, %v2875, %v1042
        %v2885 = vsel %vm2878, %v2876, %v1049
        %v2886 = vsel %vm2878, %v2877, %v1056
        %vm2887 = vcmask 121856
        %v2888 = vsel %vm2887, %v2879, %v1063
        %v2889 = vsel %vm2887, %v2880, %v1070
        %v2890 = vsel %vm2887, %v2881, %v1077
        %v2891 = vsel %vm2887, %v2882, %v1084
        %v2892 = vsel %vm2887, %v2883, %v1091
        %v2893 = vsel %vm2887, %v2884, %v1098
        %v2894 = vsel %vm2887, %v2885, %v1105
        %v2895 = vsel %vm2887, %v2886, %v1112
        %v2896 = vsel %vm2761, %v1118, %v1166
        %v2897 = vsel %vm2761, %v1124, %v1172
        %v2898 = vsel %vm2761, %v1130, %v1178
        %v2899 = vsel %vm2761, %v1136, %v1184
        %v2900 = vsel %vm2761, %v1142, %v1190
        %v2901 = vsel %vm2761, %v1148, %v1196
        %v2902 = vsel %vm2761, %v1154, %v1202
        %v2903 = vsel %vm2761, %v1160, %v1208
        %v2904 = vsel %vm2770, %v2896, %v1214
        %v2905 = vsel %vm2770, %v2897, %v1220
        %v2906 = vsel %vm2770, %v2898, %v1226
        %v2907 = vsel %vm2770, %v2899, %v1232
        %v2908 = vsel %vm2770, %v2900, %v1238
        %v2909 = vsel %vm2770, %v2901, %v1244
        %v2910 = vsel %vm2770, %v2902, %v1250
        %v2911 = vsel %vm2770, %v2903, %v1256
        %v2912 = vsel %vm2779, %v2904, %v1262
        %v2913 = vsel %vm2779, %v2905, %v1268
        %v2914 = vsel %vm2779, %v2906, %v1274
        %v2915 = vsel %vm2779, %v2907, %v1280
        %v2916 = vsel %vm2779, %v2908, %v1286
        %v2917 = vsel %vm2779, %v2909, %v1292
        %v2918 = vsel %vm2779, %v2910, %v1298
        %v2919 = vsel %vm2779, %v2911, %v1304
        %v2920 = vsel %vm2788, %v2912, %v1310
        %v2921 = vsel %vm2788, %v2913, %v1316
        %v2922 = vsel %vm2788, %v2914, %v1322
        %v2923 = vsel %vm2788, %v2915, %v1328
        %v2924 = vsel %vm2788, %v2916, %v1334
        %v2925 = vsel %vm2788, %v2917, %v1340
        %v2926 = vsel %vm2788, %v2918, %v1346
        %v2927 = vsel %vm2788, %v2919, %v1352
        %v2928 = vsel %vm2797, %v2920, %v1359
        %v2929 = vsel %vm2797, %v2921, %v1366
        %v2930 = vsel %vm2797, %v2922, %v1373
        %v2931 = vsel %vm2797, %v2923, %v1380
        %v2932 = vsel %vm2797, %v2924, %v1387
        %v2933 = vsel %vm2797, %v2925, %v1394
        %v2934 = vsel %vm2797, %v2926, %v1401
        %v2935 = vsel %vm2797, %v2927, %v1408
        %v2936 = vsel %vm2806, %v2928, %v1415
        %v2937 = vsel %vm2806, %v2929, %v1422
        %v2938 = vsel %vm2806, %v2930, %v1429
        %v2939 = vsel %vm2806, %v2931, %v1436
        %v2940 = vsel %vm2806, %v2932, %v1443
        %v2941 = vsel %vm2806, %v2933, %v1450
        %v2942 = vsel %vm2806, %v2934, %v1457
        %v2943 = vsel %vm2806, %v2935, %v1464
        %v2944 = vsel %vm2815, %v2936, %v1470
        %v2945 = vsel %vm2815, %v2937, %v1476
        %v2946 = vsel %vm2815, %v2938, %v1482
        %v2947 = vsel %vm2815, %v2939, %v1488
        %v2948 = vsel %vm2815, %v2940, %v1494
        %v2949 = vsel %vm2815, %v2941, %v1500
        %v2950 = vsel %vm2815, %v2942, %v1506
        %v2951 = vsel %vm2815, %v2943, %v1512
        %v2952 = vsel %vm2824, %v2944, %v1518
        %v2953 = vsel %vm2824, %v2945, %v1524
        %v2954 = vsel %vm2824, %v2946, %v1530
        %v2955 = vsel %vm2824, %v2947, %v1536
        %v2956 = vsel %vm2824, %v2948, %v1542
        %v2957 = vsel %vm2824, %v2949, %v1548
        %v2958 = vsel %vm2824, %v2950, %v1554
        %v2959 = vsel %vm2824, %v2951, %v1560
        %v2960 = vsel %vm2833, %v2952, %v1566
        %v2961 = vsel %vm2833, %v2953, %v1572
        %v2962 = vsel %vm2833, %v2954, %v1578
        %v2963 = vsel %vm2833, %v2955, %v1584
        %v2964 = vsel %vm2833, %v2956, %v1590
        %v2965 = vsel %vm2833, %v2957, %v1596
        %v2966 = vsel %vm2833, %v2958, %v1602
        %v2967 = vsel %vm2833, %v2959, %v1608
        %v2968 = vsel %vm2842, %v2960, %v1614
        %v2969 = vsel %vm2842, %v2961, %v1620
        %v2970 = vsel %vm2842, %v2962, %v1626
        %v2971 = vsel %vm2842, %v2963, %v1632
        %v2972 = vsel %vm2842, %v2964, %v1638
        %v2973 = vsel %vm2842, %v2965, %v1644
        %v2974 = vsel %vm2842, %v2966, %v1650
        %v2975 = vsel %vm2842, %v2967, %v1656
        %v2976 = vsel %vm2851, %v2968, %v1662
        %v2977 = vsel %vm2851, %v2969, %v1668
        %v2978 = vsel %vm2851, %v2970, %v1674
        %v2979 = vsel %vm2851, %v2971, %v1680
        %v2980 = vsel %vm2851, %v2972, %v1686
        %v2981 = vsel %vm2851, %v2973, %v1692
        %v2982 = vsel %vm2851, %v2974, %v1698
        %v2983 = vsel %vm2851, %v2975, %v1704
        %v2984 = vsel %vm2860, %v2976, %v1711
        %v2985 = vsel %vm2860, %v2977, %v1718
        %v2986 = vsel %vm2860, %v2978, %v1725
        %v2987 = vsel %vm2860, %v2979, %v1732
        %v2988 = vsel %vm2860, %v2980, %v1739
        %v2989 = vsel %vm2860, %v2981, %v1746
        %v2990 = vsel %vm2860, %v2982, %v1753
        %v2991 = vsel %vm2860, %v2983, %v1760
        %v2992 = vsel %vm2869, %v2984, %v1767
        %v2993 = vsel %vm2869, %v2985, %v1774
        %v2994 = vsel %vm2869, %v2986, %v1781
        %v2995 = vsel %vm2869, %v2987, %v1788
        %v2996 = vsel %vm2869, %v2988, %v1795
        %v2997 = vsel %vm2869, %v2989, %v1802
        %v2998 = vsel %vm2869, %v2990, %v1809
        %v2999 = vsel %vm2869, %v2991, %v1816
        %v3000 = vsel %vm2878, %v2992, %v1822
        %v3001 = vsel %vm2878, %v2993, %v1828
        %v3002 = vsel %vm2878, %v2994, %v1834
        %v3003 = vsel %vm2878, %v2995, %v1840
        %v3004 = vsel %vm2878, %v2996, %v1846
        %v3005 = vsel %vm2878, %v2997, %v1852
        %v3006 = vsel %vm2878, %v2998, %v1858
        %v3007 = vsel %vm2878, %v2999, %v1864
        %v3008 = vsel %vm2887, %v3000, %v1870
        %v3009 = vsel %vm2887, %v3001, %v1876
        %v3010 = vsel %vm2887, %v3002, %v1882
        %v3011 = vsel %vm2887, %v3003, %v1888
        %v3012 = vsel %vm2887, %v3004, %v1894
        %v3013 = vsel %vm2887, %v3005, %v1900
        %v3014 = vsel %vm2887, %v3006, %v1906
        %v3015 = vsel %vm2887, %v3007, %v1912
        %v3016 = vsel %vm2761, %v1918, %v1966
        %v3017 = vsel %vm2761, %v1924, %v1972
        %v3018 = vsel %vm2761, %v1930, %v1978
        %v3019 = vsel %vm2761, %v1936, %v1984
        %v3020 = vsel %vm2761, %v1942, %v1990
        %v3021 = vsel %vm2761, %v1948, %v1996
        %v3022 = vsel %vm2761, %v1954, %v2002
        %v3023 = vsel %vm2761, %v1960, %v2008
        %v3024 = vsel %vm2770, %v3016, %v2014
        %v3025 = vsel %vm2770, %v3017, %v2020
        %v3026 = vsel %vm2770, %v3018, %v2026
        %v3027 = vsel %vm2770, %v3019, %v2032
        %v3028 = vsel %vm2770, %v3020, %v2038
        %v3029 = vsel %vm2770, %v3021, %v2044
        %v3030 = vsel %vm2770, %v3022, %v2050
        %v3031 = vsel %vm2770, %v3023, %v2056
        %v3032 = vsel %vm2779, %v3024, %v2063
        %v3033 = vsel %vm2779, %v3025, %v2070
        %v3034 = vsel %vm2779, %v3026, %v2077
        %v3035 = vsel %vm2779, %v3027, %v2084
        %v3036 = vsel %vm2779, %v3028, %v2091
        %v3037 = vsel %vm2779, %v3029, %v2098
        %v3038 = vsel %vm2779, %v3030, %v2105
        %v3039 = vsel %vm2779, %v3031, %v2112
        %v3040 = vsel %vm2788, %v3032, %v2119
        %v3041 = vsel %vm2788, %v3033, %v2126
        %v3042 = vsel %vm2788, %v3034, %v2133
        %v3043 = vsel %vm2788, %v3035, %v2140
        %v3044 = vsel %vm2788, %v3036, %v2147
        %v3045 = vsel %vm2788, %v3037, %v2154
        %v3046 = vsel %vm2788, %v3038, %v2161
        %v3047 = vsel %vm2788, %v3039, %v2168
        %v3048 = vsel %vm2797, %v3040, %v2174
        %v3049 = vsel %vm2797, %v3041, %v2180
        %v3050 = vsel %vm2797, %v3042, %v2186
        %v3051 = vsel %vm2797, %v3043, %v2192
        %v3052 = vsel %vm2797, %v3044, %v2198
        %v3053 = vsel %vm2797, %v3045, %v2204
        %v3054 = vsel %vm2797, %v3046, %v2210
        %v3055 = vsel %vm2797, %v3047, %v2216
        %v3056 = vsel %vm2806, %v3048, %v2222
        %v3057 = vsel %vm2806, %v3049, %v2228
        %v3058 = vsel %vm2806, %v3050, %v2234
        %v3059 = vsel %vm2806, %v3051, %v2240
        %v3060 = vsel %vm2806, %v3052, %v2246
        %v3061 = vsel %vm2806, %v3053, %v2252
        %v3062 = vsel %vm2806, %v3054, %v2258
        %v3063 = vsel %vm2806, %v3055, %v2264
        %v3064 = vsel %vm2815, %v3056, %v2270
        %v3065 = vsel %vm2815, %v3057, %v2276
        %v3066 = vsel %vm2815, %v3058, %v2282
        %v3067 = vsel %vm2815, %v3059, %v2288
        %v3068 = vsel %vm2815, %v3060, %v2294
        %v3069 = vsel %vm2815, %v3061, %v2300
        %v3070 = vsel %vm2815, %v3062, %v2306
        %v3071 = vsel %vm2815, %v3063, %v2312
        %v3072 = vsel %vm2824, %v3064, %v2318
        %v3073 = vsel %vm2824, %v3065, %v2324
        %v3074 = vsel %vm2824, %v3066, %v2330
        %v3075 = vsel %vm2824, %v3067, %v2336
        %v3076 = vsel %vm2824, %v3068, %v2342
        %v3077 = vsel %vm2824, %v3069, %v2348
        %v3078 = vsel %vm2824, %v3070, %v2354
        %v3079 = vsel %vm2824, %v3071, %v2360
        %v3080 = vsel %vm2833, %v3072, %v2366
        %v3081 = vsel %vm2833, %v3073, %v2372
        %v3082 = vsel %vm2833, %v3074, %v2378
        %v3083 = vsel %vm2833, %v3075, %v2384
        %v3084 = vsel %vm2833, %v3076, %v2390
        %v3085 = vsel %vm2833, %v3077, %v2396
        %v3086 = vsel %vm2833, %v3078, %v2402
        %v3087 = vsel %vm2833, %v3079, %v2408
        %v3088 = vsel %vm2842, %v3080, %v2415
        %v3089 = vsel %vm2842, %v3081, %v2422
        %v3090 = vsel %vm2842, %v3082, %v2429
        %v3091 = vsel %vm2842, %v3083, %v2436
        %v3092 = vsel %vm2842, %v3084, %v2443
        %v3093 = vsel %vm2842, %v3085, %v2450
        %v3094 = vsel %vm2842, %v3086, %v2457
        %v3095 = vsel %vm2842, %v3087, %v2464
        %v3096 = vsel %vm2851, %v3088, %v2471
        %v3097 = vsel %vm2851, %v3089, %v2478
        %v3098 = vsel %vm2851, %v3090, %v2485
        %v3099 = vsel %vm2851, %v3091, %v2492
        %v3100 = vsel %vm2851, %v3092, %v2499
        %v3101 = vsel %vm2851, %v3093, %v2506
        %v3102 = vsel %vm2851, %v3094, %v2513
        %v3103 = vsel %vm2851, %v3095, %v2520
        %v3104 = vsel %vm2860, %v3096, %v2526
        %v3105 = vsel %vm2860, %v3097, %v2532
        %v3106 = vsel %vm2860, %v3098, %v2538
        %v3107 = vsel %vm2860, %v3099, %v2544
        %v3108 = vsel %vm2860, %v3100, %v2550
        %v3109 = vsel %vm2860, %v3101, %v2556
        %v3110 = vsel %vm2860, %v3102, %v2562
        %v3111 = vsel %vm2860, %v3103, %v2568
        %v3112 = vsel %vm2869, %v3104, %v2574
        %v3113 = vsel %vm2869, %v3105, %v2580
        %v3114 = vsel %vm2869, %v3106, %v2586
        %v3115 = vsel %vm2869, %v3107, %v2592
        %v3116 = vsel %vm2869, %v3108, %v2598
        %v3117 = vsel %vm2869, %v3109, %v2604
        %v3118 = vsel %vm2869, %v3110, %v2610
        %v3119 = vsel %vm2869, %v3111, %v2616
        %v3120 = vsel %vm2878, %v3112, %v2622
        %v3121 = vsel %vm2878, %v3113, %v2628
        %v3122 = vsel %vm2878, %v3114, %v2634
        %v3123 = vsel %vm2878, %v3115, %v2640
        %v3124 = vsel %vm2878, %v3116, %v2646
        %v3125 = vsel %vm2878, %v3117, %v2652
        %v3126 = vsel %vm2878, %v3118, %v2658
        %v3127 = vsel %vm2878, %v3119, %v2664
        %v3128 = vsel %vm2887, %v3120, %v2670
        %v3129 = vsel %vm2887, %v3121, %v2676
        %v3130 = vsel %vm2887, %v3122, %v2682
        %v3131 = vsel %vm2887, %v3123, %v2688
        %v3132 = vsel %vm2887, %v3124, %v2694
        %v3133 = vsel %vm2887, %v3125, %v2700
        %v3134 = vsel %vm2887, %v3126, %v2706
        %v3135 = vsel %vm2887, %v3127, %v2712
        %v3136 = vsel %vm2761, %v2718, 0.0
        %v3137 = vsel %vm2761, %v2724, 0.0
        %v3138 = vsel %vm2761, %v2730, 0.0
        %v3139 = vsel %vm2761, %v2736, 0.0
        %v3140 = vsel %vm2761, %v2742, 0.0
        %v3141 = vsel %vm2761, %v2748, 0.0
        %v3142 = vsel %vm2761, %v2754, 0.0
        %v3143 = vsel %vm2761, %v2760, 0.0
        %v3144 = vsel %vm2770, %v3136, 0.0
        %v3145 = vsel %vm2770, %v3137, 0.0
        %v3146 = vsel %vm2770, %v3138, 0.0
        %v3147 = vsel %vm2770, %v3139, 0.0
        %v3148 = vsel %vm2770, %v3140, 0.0
        %v3149 = vsel %vm2770, %v3141, 0.0
        %v3150 = vsel %vm2770, %v3142, 0.0
        %v3151 = vsel %vm2770, %v3143, 0.0
        %v3152 = vsel %vm2779, %v3144, 0.0
        %v3153 = vsel %vm2779, %v3145, 0.0
        %v3154 = vsel %vm2779, %v3146, 0.0
        %v3155 = vsel %vm2779, %v3147, 0.0
        %v3156 = vsel %vm2779, %v3148, 0.0
        %v3157 = vsel %vm2779, %v3149, 0.0
        %v3158 = vsel %vm2779, %v3150, 0.0
        %v3159 = vsel %vm2779, %v3151, 0.0
        %v3160 = vsel %vm2788, %v3152, 0.0
        %v3161 = vsel %vm2788, %v3153, 0.0
        %v3162 = vsel %vm2788, %v3154, 0.0
        %v3163 = vsel %vm2788, %v3155, 0.0
        %v3164 = vsel %vm2788, %v3156, 0.0
        %v3165 = vsel %vm2788, %v3157, 0.0
        %v3166 = vsel %vm2788, %v3158, 0.0
        %v3167 = vsel %vm2788, %v3159, 0.0
        %v3168 = vsel %vm2797, %v3160, 0.0
        %v3169 = vsel %vm2797, %v3161, 0.0
        %v3170 = vsel %vm2797, %v3162, 0.0
        %v3171 = vsel %vm2797, %v3163, 0.0
        %v3172 = vsel %vm2797, %v3164, 0.0
        %v3173 = vsel %vm2797, %v3165, 0.0
        %v3174 = vsel %vm2797, %v3166, 0.0
        %v3175 = vsel %vm2797, %v3167, 0.0
        %v3176 = vsel %vm2806, %v3168, 0.0
        %v3177 = vsel %vm2806, %v3169, 0.0
        %v3178 = vsel %vm2806, %v3170, 0.0
        %v3179 = vsel %vm2806, %v3171, 0.0
        %v3180 = vsel %vm2806, %v3172, 0.0
        %v3181 = vsel %vm2806, %v3173, 0.0
        %v3182 = vsel %vm2806, %v3174, 0.0
        %v3183 = vsel %vm2806, %v3175, 0.0
        %v3184 = vsel %vm2815, %v3176, 0.0
        %v3185 = vsel %vm2815, %v3177, 0.0
        %v3186 = vsel %vm2815, %v3178, 0.0
        %v3187 = vsel %vm2815, %v3179, 0.0
        %v3188 = vsel %vm2815, %v3180, 0.0
        %v3189 = vsel %vm2815, %v3181, 0.0
        %v3190 = vsel %vm2815, %v3182, 0.0
        %v3191 = vsel %vm2815, %v3183, 0.0
        %v3192 = vsel %vm2824, %v3184, 0.0
        %v3193 = vsel %vm2824, %v3185, 0.0
        %v3194 = vsel %vm2824, %v3186, 0.0
        %v3195 = vsel %vm2824, %v3187, 0.0
        %v3196 = vsel %vm2824, %v3188, 0.0
        %v3197 = vsel %vm2824, %v3189, 0.0
        %v3198 = vsel %vm2824, %v3190, 0.0
        %v3199 = vsel %vm2824, %v3191, 0.0
        %v3200 = vsel %vm2833, %v3192, 0.0
        %v3201 = vsel %vm2833, %v3193, 0.0
        %v3202 = vsel %vm2833, %v3194, 0.0
        %v3203 = vsel %vm2833, %v3195, 0.0
        %v3204 = vsel %vm2833, %v3196, 0.0
        %v3205 = vsel %vm2833, %v3197, 0.0
        %v3206 = vsel %vm2833, %v3198, 0.0
        %v3207 = vsel %vm2833, %v3199, 0.0
        %v3208 = vsel %vm2842, %v3200, 0.0
        %v3209 = vsel %vm2842, %v3201, 0.0
        %v3210 = vsel %vm2842, %v3202, 0.0
        %v3211 = vsel %vm2842, %v3203, 0.0
        %v3212 = vsel %vm2842, %v3204, 0.0
        %v3213 = vsel %vm2842, %v3205, 0.0
        %v3214 = vsel %vm2842, %v3206, 0.0
        %v3215 = vsel %vm2842, %v3207, 0.0
        %v3216 = vsel %vm2851, %v3208, 0.0
        %v3217 = vsel %vm2851, %v3209, 0.0
        %v3218 = vsel %vm2851, %v3210, 0.0
        %v3219 = vsel %vm2851, %v3211, 0.0
        %v3220 = vsel %vm2851, %v3212, 0.0
        %v3221 = vsel %vm2851, %v3213, 0.0
        %v3222 = vsel %vm2851, %v3214, 0.0
        %v3223 = vsel %vm2851, %v3215, 0.0
        %v3224 = vsel %vm2860, %v3216, 0.0
        %v3225 = vsel %vm2860, %v3217, 0.0
        %v3226 = vsel %vm2860, %v3218, 0.0
        %v3227 = vsel %vm2860, %v3219, 0.0
        %v3228 = vsel %vm2860, %v3220, 0.0
        %v3229 = vsel %vm2860, %v3221, 0.0
        %v3230 = vsel %vm2860, %v3222, 0.0
        %v3231 = vsel %vm2860, %v3223, 0.0
        %v3232 = vsel %vm2869, %v3224, 0.0
        %v3233 = vsel %vm2869, %v3225, 0.0
        %v3234 = vsel %vm2869, %v3226, 0.0
        %v3235 = vsel %vm2869, %v3227, 0.0
        %v3236 = vsel %vm2869, %v3228, 0.0
        %v3237 = vsel %vm2869, %v3229, 0.0
        %v3238 = vsel %vm2869, %v3230, 0.0
        %v3239 = vsel %vm2869, %v3231, 0.0
        %v3240 = vsel %vm2878, %v3232, 0.0
        %v3241 = vsel %vm2878, %v3233, 0.0
        %v3242 = vsel %vm2878, %v3234, 0.0
        %v3243 = vsel %vm2878, %v3235, 0.0
        %v3244 = vsel %vm2878, %v3236, 0.0
        %v3245 = vsel %vm2878, %v3237, 0.0
        %v3246 = vsel %vm2878, %v3238, 0.0
        %v3247 = vsel %vm2878, %v3239, 0.0
        %v3248 = vsel %vm2887, %v3240, 0.0
        %v3249 = vsel %vm2887, %v3241, 0.0
        %v3250 = vsel %vm2887, %v3242, 0.0
        %v3251 = vsel %vm2887, %v3243, 0.0
        %v3252 = vsel %vm2887, %v3244, 0.0
        %v3253 = vsel %vm2887, %v3245, 0.0
        %v3254 = vsel %vm2887, %v3246, 0.0
        %v3255 = vsel %vm2887, %v3247, 0.0
        %3264 = vrot.lane.b32.xlu0 %v3008, 16
        %v3265 = vpop.permute.xlu0 %3264
        %3266 = vrot.lane.b32.xlu0 %v3009, 16
        %v3267 = vpop.permute.xlu0 %3266
        %3268 = vrot.lane.b32.xlu0 %v3010, 16
        %v3269 = vpop.permute.xlu0 %3268
        %3270 = vrot.lane.b32.xlu0 %v3011, 16
        %v3271 = vpop.permute.xlu0 %3270
        %3272 = vrot.lane.b32.xlu0 %v3012, 16
        %v3273 = vpop.permute.xlu0 %3272
        %3274 = vrot.lane.b32.xlu0 %v3013, 16
        %v3275 = vpop.permute.xlu0 %3274
        %3276 = vrot.lane.b32.xlu0 %v3014, 16
        %v3277 = vpop.permute.xlu0 %3276
        %3278 = vrot.lane.b32.xlu0 %v3015, 16
        %v3279 = vpop.permute.xlu0 %3278
        %3296 = vrot.lane.b32.xlu0 %v3128, 32
        %v3297 = vpop.permute.xlu0 %3296
        %3298 = vrot.lane.b32.xlu0 %v3129, 32
        %v3299 = vpop.permute.xlu0 %3298
        %3300 = vrot.lane.b32.xlu0 %v3130, 32
        %v3301 = vpop.permute.xlu0 %3300
        %3302 = vrot.lane.b32.xlu0 %v3131, 32
        %v3303 = vpop.permute.xlu0 %3302
        %3304 = vrot.lane.b32.xlu0 %v3132, 32
        %v3305 = vpop.permute.xlu0 %3304
        %3306 = vrot.lane.b32.xlu0 %v3133, 32
        %v3307 = vpop.permute.xlu0 %3306
        %3308 = vrot.lane.b32.xlu0 %v3134, 32
        %v3309 = vpop.permute.xlu0 %3308
        %3310 = vrot.lane.b32.xlu0 %v3135, 32
        %v3311 = vpop.permute.xlu0 %3310
        %3328 = vrot.lane.b32.xlu0 %v3248, 48
        %v3329 = vpop.permute.xlu0 %3328
        %3330 = vrot.lane.b32.xlu0 %v3249, 48
        %v3331 = vpop.permute.xlu0 %3330
        %3332 = vrot.lane.b32.xlu0 %v3250, 48
        %v3333 = vpop.permute.xlu0 %3332
        %3334 = vrot.lane.b32.xlu0 %v3251, 48
        %v3335 = vpop.permute.xlu0 %3334
        %3336 = vrot.lane.b32.xlu0 %v3252, 48
        %v3337 = vpop.permute.xlu0 %3336
        %3338 = vrot.lane.b32.xlu0 %v3253, 48
        %v3339 = vpop.permute.xlu0 %3338
        %3340 = vrot.lane.b32.xlu0 %v3254, 48
        %v3341 = vpop.permute.xlu0 %3340
        %3342 = vrot.lane.b32.xlu0 %v3255, 48
        %v3343 = vpop.permute.xlu0 %3342
        %vm3352 = vcmask 130048
        %v3353 = vsel %vm3352, %v2888, %v3265
        %v3354 = vsel %vm3352, %v2889, %v3267
        %v3355 = vsel %vm3352, %v2890, %v3269
        %v3356 = vsel %vm3352, %v2891, %v3271
        %v3357 = vsel %vm3352, %v2892, %v3273
        %v3358 = vsel %vm3352, %v2893, %v3275
        %v3359 = vsel %vm3352, %v2894, %v3277
        %v3360 = vsel %vm3352, %v2895, %v3279
        %vm3361 = vcmask 261120
        %v3362 = vsel %vm3361, %v3353, %v3297
        %v3363 = vsel %vm3361, %v3354, %v3299
        %v3364 = vsel %vm3361, %v3355, %v3301
        %v3365 = vsel %vm3361, %v3356, %v3303
        %v3366 = vsel %vm3361, %v3357, %v3305
        %v3367 = vsel %vm3361, %v3358, %v3307
        %v3368 = vsel %vm3361, %v3359, %v3309
        %v3369 = vsel %vm3361, %v3360, %v3311
        %vm3370 = vcmask 392192
        %v3371 = vsel %vm3370, %v3362, %v3329
        %v3372 = vsel %vm3370, %v3363, %v3331
        %v3373 = vsel %vm3370, %v3364, %v3333
        %v3374 = vsel %vm3370, %v3365, %v3335
        %v3375 = vsel %vm3370, %v3366, %v3337
        %v3376 = vsel %vm3370, %v3367, %v3339
        %v3377 = vsel %vm3370, %v3368, %v3341
        %v3378 = vsel %vm3370, %v3369, %v3343
        %v3379 = vpack.c.bf16 %v3372, %v3371
        %v3380 = vpack.c.bf16 %v3374, %v3373
        %v3381 = vpack.c.bf16 %v3376, %v3375
        %v3382 = vpack.c.bf16 %v3378, %v3377
        %v3383 = vld [vmem:[%s2] sm:$0xf]
        %v3384 = vld [vmem:[%s2 + $0x4] sm:$0xf]
        %v3385 = vld [vmem:[%s2 + $0x8] sm:$0xf]
        %v3386 = vld [vmem:[%s2 + $0xc] sm:$0xf]
        %v3387 = vld [vmem:[%s2 + $0x10] sm:$0xf]
        %v3388 = vld [vmem:[%s2 + $0x14] sm:$0xf]
        %v3389 = vld [vmem:[%s2 + $0x18] sm:$0xf]
        %v3390 = vld [vmem:[%s2 + $0x1c] sm:$0xf]
        %v3399 = vunpack.c.l.b16 %v3383
        %v3400 = vunpack.c.l.b16 %v3384
        %v3401 = vunpack.c.l.b16 %v3385
        %v3402 = vunpack.c.l.b16 %v3386
        %v3403 = vunpack.c.l.b16 %v3387
        %v3404 = vunpack.c.l.b16 %v3388
        %v3405 = vunpack.c.l.b16 %v3389
        %v3406 = vunpack.c.l.b16 %v3390
        %v3407 = vpack.c.b16 %v3400, %v3399
        %v3408 = vpack.c.b16 %v3402, %v3401
        %v3409 = vpack.c.b16 %v3404, %v3403
        %v3410 = vpack.c.b16 %v3406, %v3405
        %vm3415 = vcmask 523264
        %v3417 = vsel %vm3415, %v3379, 0
        %v3420 = vsel %vm3415, %v3380, 0
        %v3423 = vsel %vm3415, %v3381, 0
        %v3426 = vsel %vm3415, %v3382, 0
        %3428 = vmatpush.bf16.msra.mxu0 0
        %3429 = vmatpush.bf16.msra.mxu0 0
        %3430 = vmatpush.bf16.msra.mxu0 0
        %3431 = vmatpush.bf16.msra.mxu0 0
        %3432 = vmatpush.bf16.msra.mxu0 %v3410
        %3433 = vmatpush.bf16.msra.mxu0 %v3409
        %3434 = vmatpush.bf16.msra.mxu0 %v3408
        %3435 = vmatpush.bf16.msra.mxu0 %v3407
        %3436 = vmatmul.bf16.gmra.mxu0 %v3417
        %v3437 = vpop.f32.mrf.mxu0
        %v3438 = vadd.f32 0.0, %v3437
        %v3439 = vpop.f32.mrf.mxu0
        %v3440 = vadd.f32 0.0, %v3439
        %3441 = vmatmul.bf16.gmra.mxu0 %v3420
        %v3442 = vpop.f32.mrf.mxu0
        %v3443 = vadd.f32 0.0, %v3442
        %v3444 = vpop.f32.mrf.mxu0
        %v3445 = vadd.f32 0.0, %v3444
        %3446 = vmatmul.bf16.gmra.mxu0 %v3423
        %v3447 = vpop.f32.mrf.mxu0
        %v3448 = vadd.f32 0.0, %v3447
        %v3449 = vpop.f32.mrf.mxu0
        %v3450 = vadd.f32 0.0, %v3449
        %3451 = vmatmul.bf16.gmra.mxu0 %v3426
        %v3452 = vpop.f32.mrf.mxu0
        %v3453 = vadd.f32 0.0, %v3452
        %v3454 = vpop.f32.mrf.mxu0
        %v3455 = vadd.f32 0.0, %v3454
        %3456 = vdwg.mxu0
        %v3457 = vmax.f32 %v3438, 0.0
        %v3458 = vmax.f32 %v3440, 0.0
        %v3459 = vmax.f32 %v3443, 0.0
        %v3460 = vmax.f32 %v3445, 0.0
        %v3461 = vmax.f32 %v3448, 0.0
        %v3462 = vmax.f32 %v3450, 0.0
        %v3463 = vmax.f32 %v3453, 0.0
        %v3464 = vmax.f32 %v3455, 0.0
        %v3465 = vld [vmem:[#allocation2] sm:$0x3]
        %v3466 = vsel %vm3415, %v3457, 0.0
        %v3467 = vsel %vm3415, %v3458, 0.0
        %v3468 = vadd.f32 %v3466, %v3467
        %v3469 = vsel %vm3415, %v3459, 0.0
        %v3470 = vadd.f32 %v3468, %v3469
        %v3471 = vsel %vm3415, %v3460, 0.0
        %v3472 = vadd.f32 %v3470, %v3471
        %v3473 = vrot.slane %v3472, 4
        %v3474 = vadd.f32 %v3472, %v3473
        %v3475 = vrot.slane %v3474, 2
        %v3476 = vadd.f32 %v3474, %v3475
        %v3477 = vrot.slane %v3476, 1
        %v3478 = vadd.f32 %v3476, %v3477
        %v3479 = vsel %vm3415, %v3461, 0.0
        %v3480 = vsel %vm3415, %v3462, 0.0
        %v3481 = vadd.f32 %v3479, %v3480
        %v3482 = vsel %vm3415, %v3463, 0.0
        %v3483 = vadd.f32 %v3481, %v3482
        %v3484 = vsel %vm3415, %v3464, 0.0
        %v3485 = vadd.f32 %v3483, %v3484
        %v3486 = vrot.slane %v3485, 4
        %v3487 = vadd.f32 %v3485, %v3486
        %v3488 = vrot.slane %v3487, 2
        %v3489 = vadd.f32 %v3487, %v3488
        %v3490 = vrot.slane %v3489, 1
        %v3491 = vadd.f32 %v3489, %v3490
        %vm3494 = vcmask 1041409
        %v3495 = vsel %vm3494, %v3491, %v3478
        %v3497 = vadd.f32 %v3465, %v3495
        %vm3498 = vcmask 517120
        %3499 = vst.msk [vmem:[#allocation2] sm:$0x3] %vm3498, %v3497
        %p3500 = scmp.eq.s32.totalorder %s23, 1
        // Predicated region
        $region45: #{tpu_custom_call.1} parent=39 // pred_check
          %p3501 = pneg %p3500
        $region46: #{tpu_custom_call.1} parent=39 // pred_check_branch
          %3503 = sbr.rel (%p3501) target = $region48
        $region47: #{tpu_custom_call.1} parent=39 // pred_region
          %v3504 = vld [vmem:[#allocation2] sm:$0x3]
          %v3505 = vmul.f32 %v3504, 0.015625
          %v3506 = vpack.c.bf16 %v3505, %v3505
          %v3507 = vld [vmem:[%s3] sm:$0xf]
          %v3508 = vld [vmem:[%s3 + $0x4] sm:$0xf]
          %v3509 = vld [vmem:[%s3 + $0x8] sm:$0xf]
          %v3510 = vld [vmem:[%s3 + $0xc] sm:$0xf]
          %v3511 = vld [vmem:[%s3 + $0x10] sm:$0xf]
          %v3512 = vld [vmem:[%s3 + $0x14] sm:$0xf]
          %v3513 = vld [vmem:[%s3 + $0x18] sm:$0xf]
          %v3514 = vld [vmem:[%s3 + $0x1c] sm:$0xf]
          %v3523 = vunpack.c.l.b16 %v3507
          %v3524 = vunpack.c.l.b16 %v3508
          %v3525 = vunpack.c.l.b16 %v3509
          %v3526 = vunpack.c.l.b16 %v3510
          %v3527 = vunpack.c.l.b16 %v3511
          %v3528 = vunpack.c.l.b16 %v3512
          %v3529 = vunpack.c.l.b16 %v3513
          %v3530 = vunpack.c.l.b16 %v3514
          %v3531 = vpack.c.b16 %v3524, %v3523
          %v3532 = vpack.c.b16 %v3526, %v3525
          %v3533 = vpack.c.b16 %v3528, %v3527
          %v3534 = vpack.c.b16 %v3530, %v3529
          %v3540 = vsel %vm3415, %v3506, 0
          %3542 = vmatpush.bf16.msra.mxu0 0
          %3543 = vmatpush.bf16.msra.mxu0 0
          %3544 = vmatpush.bf16.msra.mxu0 0
          %3545 = vmatpush.bf16.msra.mxu0 0
          %3546 = vmatpush.bf16.msra.mxu0 %v3534
          %3547 = vmatpush.bf16.msra.mxu0 %v3533
          %3548 = vmatpush.bf16.msra.mxu0 %v3532
          %3549 = vmatpush.bf16.msra.mxu0 %v3531
          %3550 = vmatmul.bf16.gmra.mxu0 %v3540
          %v3551 = vpop.f32.mrf.mxu0
          %v3552 = vadd.f32 0.0, %v3551
          %v3553 = vpop.f32.mrf.mxu0
          %3554 = vdwg.mxu0
          %v3555 = vpack.c.bf16 %v3552, %v3552
          %v3556 = vld [vmem:[%s4] sm:$0xf]
          %v3557 = vld [vmem:[%s4 + $0x4] sm:$0xf]
          %v3558 = vld [vmem:[%s4 + $0x8] sm:$0xf]
          %v3559 = vld [vmem:[%s4 + $0xc] sm:$0xf]
          %v3560 = vld [vmem:[%s4 + $0x10] sm:$0xf]
          %v3561 = vld [vmem:[%s4 + $0x14] sm:$0xf]
          %v3562 = vld [vmem:[%s4 + $0x18] sm:$0xf]
          %v3563 = vld [vmem:[%s4 + $0x1c] sm:$0xf]
          %v3572 = vunpack.c.l.b16 %v3556
          %v3573 = vunpack.c.l.b16 %v3557
          %v3574 = vunpack.c.l.b16 %v3558
          %v3575 = vunpack.c.l.b16 %v3559
          %v3576 = vunpack.c.l.b16 %v3560
          %v3577 = vunpack.c.l.b16 %v3561
          %v3578 = vunpack.c.l.b16 %v3562
          %v3579 = vunpack.c.l.b16 %v3563
          %v3580 = vpack.c.b16 %v3573, %v3572
          %v3581 = vpack.c.b16 %v3575, %v3574
          %v3582 = vpack.c.b16 %v3577, %v3576
          %v3583 = vpack.c.b16 %v3579, %v3578
          %v3589 = vsel %vm3415, %v3555, 0
          %3591 = vmatpush.bf16.msra.mxu0 0
          %3592 = vmatpush.bf16.msra.mxu0 0
          %3593 = vmatpush.bf16.msra.mxu0 0
          %3594 = vmatpush.bf16.msra.mxu0 0
          %3595 = vmatpush.bf16.msra.mxu0 %v3583
          %3596 = vmatpush.bf16.msra.mxu0 %v3582
          %3597 = vmatpush.bf16.msra.mxu0 %v3581
          %3598 = vmatpush.bf16.msra.mxu0 %v3580
          %3599 = vmatmul.bf16.gmra.mxu0 %v3589
          %v3600 = vpop.f32.mrf.mxu0
          %v3601 = vadd.f32 0.0, %v3600
          %v3602 = vpop.f32.mrf.mxu0
          %3603 = vdwg.mxu0
          %3604 = vst [vmem:[#allocation4] sm:$0x3] %v3601
        $region48: #{tpu_custom_call.1} parent=39 // pred_fallthru
          _
        // Predicated region
        $region49: #{tpu_custom_call.1} parent=39 // pred_check
          %p3605 = pneg %p158
        $region50: #{tpu_custom_call.1} parent=39 // pred_check_branch
          %3607 = sbr.rel (%p3605) target = $region52
        $region51: #{tpu_custom_call.1} parent=39 // pred_region
          %3609 = vsyncadd [#allocation5], 0
          %s3610 = smul.addr %s22, 2
          %s3611 = scalar_lea.hbm %s5, %s3610
          %s3613 = sshll.u32 [#allocation4], 4
          %s3614 = int_to_ptr.vmem [resolvable:$true] %s3613
          %s3615 = sshll.u32 %s3611, 4
          %s3616 = int_to_ptr.hbm [resolvable:$true] %s3615
          %3618 = dma.vmem_to_hbm [thread:$0]  %s3614, 32, %s3616, [#allocation5]
        $region52: #{tpu_custom_call.1} parent=39 // pred_fallthru
          _
        // Predicated region
        $region53: #{tpu_custom_call.1} parent=39 // pred_check
          %p3619 = pneg %p158
        $region54: #{tpu_custom_call.1} parent=39 // pred_check_branch
          %3621 = sbr.rel (%p3619) target = $region56
        $region55: #{tpu_custom_call.1} parent=39 // pred_region
          %3623 = dma.done [#allocation5], 32
        $region56: #{tpu_custom_call.1} parent=39 // pred_fallthru
          _
      $region40: #{tpu_custom_call.1} parent=5 // pred_fallthru
        _
      %p3624 = scmp.le.s32.totalorder 2, %s13
      // Predicated region
      $region57: #{tpu_custom_call.1} parent=5 // pred_check
        %p3625 = pneg %p3624
      $region58: #{tpu_custom_call.1} parent=5 // pred_check_branch
        %3627 = sbr.rel (%p3625) target = $region60
      $region59: #{tpu_custom_call.1} parent=5 // pred_region
        %s3628 = ssub.s32 %s13, 2
      $region60: #{tpu_custom_call.1} parent=5 // pred_fallthru
        _
    $region6: #{tpu_custom_call.1} parent=1 // loop_footer
      %s17 = sadd.s32 1, %s13
    $region7: #{tpu_custom_call.1} parent=1 // loop_footer_branch
      %12 = sbr.rel target = $region3
    $region8: #{tpu_custom_call.1} parent=1 // loop_exit
      _
    %3629 = vsyncpa [#allocation5], 1
    %s3630 = scalar_lea.sflag [#allocation5], 1
    %3631 = vsyncpa %s3630, 1

</llo_original>
